<compile_context>
chip_gen: v6e
topology: v6e:2x2x1
jax: 0.10.0
libtpu: 0.0.40
codegen_flags: <defaults>
</compile_context>

<pallas_src>
import jax
import jax.numpy as jnp
from jax.experimental import pallas as pl
from jax.experimental.pallas import tpu as pltpu

HIDDEN = 512
OUT = 2352            # 3 * 28 * 28
OUT_PAD = 2432        # 19 * 128 -> lane-dense output tile


def _round_up(x, m):
    return ((x + m - 1) // m) * m


def decoder_kernel(z_ref, w1_ref, b1_ref, w2_ref, b2_ref, o_ref, h_ref):
    # Layer 1: Linear(latent -> 512) + ReLU.  bf16 operands, f32 accumulate.
    h = jnp.dot(z_ref[...], w1_ref[...], preferred_element_type=jnp.float32)
    h = jnp.maximum(h + b1_ref[...], 0.0)       # b1 (1,512) broadcasts over TB
    h_ref[...] = h.astype(jnp.bfloat16)         # explicit VMEM scratch (bf16)

    # Layer 2: Linear(512 -> OUT_PAD) + sigmoid.
    y = jnp.dot(h_ref[...], w2_ref[...], preferred_element_type=jnp.float32)
    y = y + b2_ref[...]                         # b2 (1, OUT_PAD)
    t = jnp.exp(-y)                             # EUP
    o_ref[...] = pl.reciprocal(1.0 + t, approx=True)   # EUP vrcp; sigmoid(y)


@jax.jit
def continuous_decoder(z, w1, b1, w2, b2):
    """z: (B, latent) f32.  w1: (latent, 512) bf16, b1: (1, 512) f32,
    w2: (512, 2352) bf16, b2: (1, 2352) f32.  Returns (B, 3, 28, 28) f32.
    Weights are stored (in_features, out_features), i.e. transposed vs
    torch.nn.Linear, so the kernel computes plain x @ W + b."""
    B, L = z.shape

    # Batch tile: 256 fills the 256x256 MXU on v6e/v7x (2x128 tiles on v5e);
    # for tiny batches use the smallest multiple of 64 that covers B.
    TB = 256 if B >= 256 else _round_up(max(B, 1), 64)
    B_pad = _round_up(B, TB)
    n_blocks = B_pad // TB

    zb = z.astype(jnp.bfloat16)
    if B_pad != B:
        zb = jnp.pad(zb, ((0, B_pad - B), (0, 0)))

    # Pad output features to a lane-dense multiple of 128 (zero columns,
    # sliced off below).
    w2p = jnp.pad(w2, ((0, 0), (0, OUT_PAD - OUT)))
    b2p = jnp.pad(b2, ((0, 0), (0, OUT_PAD - OUT)))

    flops = 2 * B_pad * (L * HIDDEN + HIDDEN * OUT_PAD)
    bytes_accessed = (zb.size * 2 + w1.size * 2 + b1.size * 4
                      + w2p.size * 2 + b2p.size * 4 + B_pad * OUT_PAD * 4)

    flat = pl.pallas_call(
        decoder_kernel,
        out_shape=jax.ShapeDtypeStruct((B_pad, OUT_PAD), jnp.float32),
        grid_spec=pltpu.PrefetchScalarGridSpec(
            num_scalar_prefetch=0,
            grid=(n_blocks,),
            in_specs=[
                pl.BlockSpec((TB, L), lambda i: (i, 0)),            # z tile
                pl.BlockSpec((L, HIDDEN), lambda i: (0, 0)),        # W1 resident
                pl.BlockSpec((1, HIDDEN), lambda i: (0, 0)),        # b1 resident
                pl.BlockSpec((HIDDEN, OUT_PAD), lambda i: (0, 0)),  # W2 resident
                pl.BlockSpec((1, OUT_PAD), lambda i: (0, 0)),       # b2 resident
            ],
            out_specs=pl.BlockSpec((TB, OUT_PAD), lambda i: (i, 0)),
            scratch_shapes=[pltpu.VMEM((TB, HIDDEN), jnp.bfloat16)],
        ),
        compiler_params=pltpu.CompilerParams(
            dimension_semantics=("parallel",),
            vmem_limit_bytes=32 * 1024 * 1024,   # ~10 MB used; fits v5e/v6e/v7x
        ),
        cost_estimate=pl.CostEstimate(
            flops=flops,
            transcendentals=B_pad * OUT_PAD,
            bytes_accessed=bytes_accessed,
        ),
    )(zb, w1, b1, w2p, b2p)

    return flat[:B, :OUT].reshape((-1, 3, 28, 28))


def init_params(key, latent_dims):
    """Deterministic init matching nn.Linear's uniform(-1/sqrt(fan_in), ...).
    Weights are cast to bf16 (kernel matmul dtype); biases stay f32."""
    k1, k2, k3, k4 = jax.random.split(key, 4)
    bound1 = 1.0 / jnp.sqrt(latent_dims)
    bound2 = 1.0 / jnp.sqrt(HIDDEN)
    w1 = jax.random.uniform(k1, (latent_dims, HIDDEN), jnp.float32, -bound1, bound1)
    b1 = jax.random.uniform(k2, (1, HIDDEN), jnp.float32, -bound1, bound1)
    w2 = jax.random.uniform(k3, (HIDDEN, OUT), jnp.float32, -bound2, bound2)
    b2 = jax.random.uniform(k4, (1, OUT), jnp.float32, -bound2, bound2)
    return w1.astype(jnp.bfloat16), b1, w2.astype(jnp.bfloat16), b2


if __name__ == "__main__":
    latent_dims = 32
    batch = 2

    key = jax.random.PRNGKey(0)
    k_z, k_p = jax.random.split(key)
    z = jax.random.normal(k_z, (batch, latent_dims), jnp.float32)
    w1, b1, w2, b2 = init_params(k_p, latent_dims)

    out = continuous_decoder(z, w1, b1, w2, b2)
    out = jax.block_until_ready(out)

    # Reference with the same bf16 weights/activations (f32 accumulation).
    zb = z.astype(jnp.bfloat16)
    h_ref = jnp.maximum(
        jnp.dot(zb, w1, preferred_element_type=jnp.float32) + b1, 0.0)
    y_ref = jnp.dot(h_ref.astype(jnp.bfloat16), w2,
                    preferred_element_type=jnp.float32) + b2
    ref = jax.nn.sigmoid(y_ref).reshape((-1, 3, 28, 28))

    assert out.shape == (batch, 3, 28, 28)
    max_err = float(jnp.max(jnp.abs(out - ref)))
    assert jnp.allclose(out, ref, atol=5e-3, rtol=0.0), max_err

    print("KERNEL_OK")
</pallas_src>

<mosaic_0001>
module attributes {stable_mosaic.version = 11 : i64} {
  func.func @decoder_kernel(%arg0: i32, %arg1: memref<64x32xbf16, #tpu.memory_space<vmem>>, %arg2: memref<32x512xbf16, #tpu.memory_space<vmem>>, %arg3: memref<1x512xf32, #tpu.memory_space<vmem>>, %arg4: memref<512x2432xbf16, #tpu.memory_space<vmem>>, %arg5: memref<1x2432xf32, #tpu.memory_space<vmem>>, %arg6: memref<64x2432xf32, #tpu.memory_space<vmem>>, %arg7: memref<64x512xbf16, #tpu.memory_space<vmem>>) attributes {dimension_semantics = [#tpu.dimension_semantics<parallel>], iteration_bounds = array<i64: 1>, scalar_prefetch = 0 : i64, scratch_operands = 1 : i64, tpu.core_type = #tpu.core_type<tc>, window_params = [{transform_indices = @transform_0, window_bounds = array<i64: 64, 32>}, {pipeline_mode = #tpu.pipeline_mode<synchronous>, transform_indices = @transform_1, window_bounds = array<i64: 32, 512>}, {pipeline_mode = #tpu.pipeline_mode<synchronous>, transform_indices = @transform_2, window_bounds = array<i64: 1, 512>}, {pipeline_mode = #tpu.pipeline_mode<synchronous>, transform_indices = @transform_3, window_bounds = array<i64: 512, 2432>}, {pipeline_mode = #tpu.pipeline_mode<synchronous>, transform_indices = @transform_4, window_bounds = array<i64: 1, 2432>}, {transform_indices = @transform_5, window_bounds = array<i64: 64, 2432>}]} {
    %c0 = arith.constant 0 : index
    %c0_0 = arith.constant 0 : index
    %0 = vector.load %arg1[%c0, %c0_0] : memref<64x32xbf16, #tpu.memory_space<vmem>>, vector<64x32xbf16>
    %c0_1 = arith.constant 0 : index
    %c0_2 = arith.constant 0 : index
    %1 = vector.load %arg2[%c0_1, %c0_2] : memref<32x512xbf16, #tpu.memory_space<vmem>>, vector<32x512xbf16>
    %cst = arith.constant dense<0.000000e+00> : vector<64x512xf32>
    %2 = tpu.matmul %0, %1, %cst {dimension_numbers = #tpu.dot_dimension_numbers<[1], [0], [0], [1], [0, 0, 1, 1], [], []>} : vector<64x32xbf16>, vector<32x512xbf16>, vector<64x512xf32> -> vector<64x512xf32>
    %c0_3 = arith.constant 0 : index
    %c0_4 = arith.constant 0 : index
    %3 = vector.load %arg3[%c0_3, %c0_4] : memref<1x512xf32, #tpu.memory_space<vmem>>, vector<1x512xf32>
    %4 = vector.broadcast %3 : vector<1x512xf32> to vector<64x512xf32>
    %5 = arith.addf %2, %4 : vector<64x512xf32>
    %cst_5 = arith.constant 0.000000e+00 : f32
    %6 = vector.broadcast %cst_5 : f32 to vector<64x512xf32>
    %7 = arith.maximumf %5, %6 : vector<64x512xf32>
    %8 = arith.truncf %7 : vector<64x512xf32> to vector<64x512xbf16>
    %c0_6 = arith.constant 0 : index
    %c0_7 = arith.constant 0 : index
    %9 = vector.load %arg7[%c0_6, %c0_7] : memref<64x512xbf16, #tpu.memory_space<vmem>>, vector<64x512xbf16>
    tpu.vector_store %arg7[%c0_6, %c0_7], %8 {strides = array<i32>} : memref<64x512xbf16, #tpu.memory_space<vmem>>, vector<64x512xbf16>,
    %c0_8 = arith.constant 0 : index
    %c0_9 = arith.constant 0 : index
    %10 = vector.load %arg7[%c0_8, %c0_9] : memref<64x512xbf16, #tpu.memory_space<vmem>>, vector<64x512xbf16>
    %c0_10 = arith.constant 0 : index
    %c0_11 = arith.constant 0 : index
    %11 = vector.load %arg4[%c0_10, %c0_11] : memref<512x2432xbf16, #tpu.memory_space<vmem>>, vector<512x2432xbf16>
    %cst_12 = arith.constant dense<0.000000e+00> : vector<64x2432xf32>
    %12 = tpu.matmul %10, %11, %cst_12 {dimension_numbers = #tpu.dot_dimension_numbers<[1], [0], [0], [1], [0, 0, 1, 1], [], []>} : vector<64x512xbf16>, vector<512x2432xbf16>, vector<64x2432xf32> -> vector<64x2432xf32>
    %c0_13 = arith.constant 0 : index
    %c0_14 = arith.constant 0 : index
    %13 = vector.load %arg5[%c0_13, %c0_14] : memref<1x2432xf32, #tpu.memory_space<vmem>>, vector<1x2432xf32>
    %14 = vector.broadcast %13 : vector<1x2432xf32> to vector<64x2432xf32>
    %15 = arith.addf %12, %14 : vector<64x2432xf32>
    %cst_15 = arith.constant 0.000000e+00 : f32
    %16 = vector.broadcast %cst_15 : f32 to vector<64x2432xf32>
    %17 = arith.subf %16, %15 : vector<64x2432xf32>
    %18 = math.exp %17 : vector<64x2432xf32>
    %cst_16 = arith.constant 1.000000e+00 : f32
    %19 = vector.broadcast %cst_16 : f32 to vector<64x2432xf32>
    %20 = arith.addf %19, %18 : vector<64x2432xf32>
    %21 = tpu.reciprocal %20 {approx = true} : vector<64x2432xf32> -> vector<64x2432xf32>
    %c0_17 = arith.constant 0 : index
    %c0_18 = arith.constant 0 : index
    %22 = vector.load %arg6[%c0_17, %c0_18] : memref<64x2432xf32, #tpu.memory_space<vmem>>, vector<64x2432xf32>
    tpu.vector_store %arg6[%c0_17, %c0_18], %21 {strides = array<i32>} : memref<64x2432xf32, #tpu.memory_space<vmem>>, vector<64x2432xf32>,
    return
  }
  func.func @transform_0(%arg0: i32) -> (i32, i32) {
    %c0_i32 = arith.constant 0 : i32
    %c0_i32_0 = arith.constant 0 : i32
    return %arg0, %c0_i32 : i32, i32
  }
  func.func @transform_1(%arg0: i32) -> (i32, i32) {
    %c0_i32 = arith.constant 0 : i32
    %c0_i32_0 = arith.constant 0 : i32
    %c0_i32_1 = arith.constant 0 : i32
    return %c0_i32, %c0_i32_0 : i32, i32
  }
  func.func @transform_2(%arg0: i32) -> (i32, i32) {
    %c0_i32 = arith.constant 0 : i32
    %c0_i32_0 = arith.constant 0 : i32
    %c0_i32_1 = arith.constant 0 : i32
    return %c0_i32, %c0_i32_0 : i32, i32
  }
  func.func @transform_3(%arg0: i32) -> (i32, i32) {
    %c0_i32 = arith.constant 0 : i32
    %c0_i32_0 = arith.constant 0 : i32
    %c0_i32_1 = arith.constant 0 : i32
    return %c0_i32, %c0_i32_0 : i32, i32
  }
  func.func @transform_4(%arg0: i32) -> (i32, i32) {
    %c0_i32 = arith.constant 0 : i32
    %c0_i32_0 = arith.constant 0 : i32
    %c0_i32_1 = arith.constant 0 : i32
    return %c0_i32, %c0_i32_0 : i32, i32
  }
  func.func @transform_5(%arg0: i32) -> (i32, i32) {
    %c0_i32 = arith.constant 0 : i32
    %c0_i32_0 = arith.constant 0 : i32
    return %arg0, %c0_i32 : i32, i32
  }
}

</mosaic_0001>

<llo_original>
// kernel: continuous_decoder.1
$region0: #{continuous_decoder.1}
  #allocation0 [shape = 'u32[]', space=smem, size = 0x4, offset = 0x4, fixed_abs, tag = 'smem constant byte address 0x4 - core index']
  #allocation1 [shape = 'u32[144,128]{1,0:T(1,128)}', space=vmem, size = 0x12000, scoped, tag = 'internal scratch']
  #allocation2 [shape = 'bf16[64,512]{1,0:T(8,128)(2,1)}', space=vmem, size = 0x10000, scoped, tag = 'scratch operand']
  %s0 = inlined_call_operand.vmem [shape: bf16[64,32], index: 0, kind: input, shape index: {}]
  %s1 = inlined_call_operand.vmem [shape: bf16[32,512], index: 1, kind: input, shape index: {}]
  %s2 = inlined_call_operand.vmem [shape: f32[1,512], index: 2, kind: input, shape index: {}]
  %s3 = inlined_call_operand.vmem [shape: bf16[512,2432], index: 3, kind: input, shape index: {}]
  %s4 = inlined_call_operand.vmem [shape: f32[1,2432], index: 4, kind: input, shape index: {}]
  %s5 = inlined_call_operand.vmem [shape: f32[64,2432], index: 5, kind: output, shape index: {}]
  %s6 = sld [smem:[#allocation0]]
  $region30: #{continuous_decoder.1} parent=0
    _
  %s8 = ssub.s32 1, %s6
  %s9 = scalar_select 0, %s8, %s6
  // Predicated region
  $region2: #{continuous_decoder.1} parent=0 // pred_check
    _
  $region3: #{continuous_decoder.1} parent=0 // pred_check_branch
    %11 = sbr.rel (0) target = $region5
  $region4: #{continuous_decoder.1} parent=0 // pred_region
    _
  $region5: #{continuous_decoder.1} parent=0 // pred_fallthru
    _
  // Predicated region
  $region6: #{continuous_decoder.1} parent=0 // pred_check
    _
  $region7: #{continuous_decoder.1} parent=0 // pred_check_branch
    %13 = sbr.rel (0) target = $region9
  $region8: #{continuous_decoder.1} parent=0 // pred_region
    _
  $region9: #{continuous_decoder.1} parent=0 // pred_fallthru
    _
  // Predicated region
  $region10: #{continuous_decoder.1} parent=0 // pred_check
    _
  $region11: #{continuous_decoder.1} parent=0 // pred_check_branch
    %15 = sbr.rel (0) target = $region13
  $region12: #{continuous_decoder.1} parent=0 // pred_region
    _
  $region13: #{continuous_decoder.1} parent=0 // pred_fallthru
    _
  // Predicated region
  $region14: #{continuous_decoder.1} parent=0 // pred_check
    _
  $region15: #{continuous_decoder.1} parent=0 // pred_check_branch
    %17 = sbr.rel (0) target = $region17
  $region16: #{continuous_decoder.1} parent=0 // pred_region
    _
  $region17: #{continuous_decoder.1} parent=0 // pred_fallthru
    _
  // Predicated region
  $region18: #{continuous_decoder.1} parent=0 // pred_check
    _
  $region19: #{continuous_decoder.1} parent=0 // pred_check_branch
    %19 = sbr.rel (0) target = $region21
  $region20: #{continuous_decoder.1} parent=0 // pred_region
    _
  $region21: #{continuous_decoder.1} parent=0 // pred_fallthru
    _
  %v21 = vld [vmem:[%s0] sm:$0xf]
  %v22 = vld [vmem:[%s0 + $0x4] sm:$0xf]
  %v23 = vld [vmem:[%s0 + $0x8] sm:$0xf]
  %v24 = vld [vmem:[%s0 + $0xc] sm:$0xf]
  %v25 = vld [vmem:[%s0 + $0x10] sm:$0xf]
  %v26 = vld [vmem:[%s0 + $0x14] sm:$0xf]
  %v27 = vld [vmem:[%s0 + $0x18] sm:$0xf]
  %v28 = vld [vmem:[%s0 + $0x1c] sm:$0xf]
  %v29 = vld [vmem:[%s1] sm:$0xff]
  %v30 = vld [vmem:[%s1 + $0x8] sm:$0xff]
  %v31 = vld [vmem:[%s1 + $0x10] sm:$0xff]
  %v32 = vld [vmem:[%s1 + $0x18] sm:$0xff]
  %v33 = vld [vmem:[%s1 + $0x20] sm:$0xff]
  %v34 = vld [vmem:[%s1 + $0x28] sm:$0xff]
  %v35 = vld [vmem:[%s1 + $0x30] sm:$0xff]
  %v36 = vld [vmem:[%s1 + $0x38] sm:$0xff]
  %v37 = vld [vmem:[%s2] sm:$0xf]
  %v39 = vlaneseq
  %v40 = vshrl.u32 %v39, 7
  %v41 = vsub.s32 0, %v40
  %v42 = vrot.slane %v37, %v41
  %v43 = vlaneseq
  %v44 = vshrl.u32 %v43, 7
  %v45 = vsub.s32 1, %v44
  %v46 = vrot.slane %v37, %v45
  %v47 = vlaneseq
  %v48 = vshrl.u32 %v47, 7
  %v49 = vsub.s32 2, %v48
  %v50 = vrot.slane %v37, %v49
  %v51 = vlaneseq
  %v52 = vshrl.u32 %v51, 7
  %v53 = vsub.s32 3, %v52
  %v54 = vrot.slane %v37, %v53
  %v67 = vunpack.c.l.b16 %v21
  %v68 = vunpack.c.l.b16 %v22
  %v69 = vunpack.c.l.b16 %v23
  %v70 = vunpack.c.l.b16 %v24
  %v71 = vunpack.c.l.b16 %v25
  %v72 = vunpack.c.l.b16 %v26
  %v73 = vunpack.c.l.b16 %v27
  %v74 = vunpack.c.l.b16 %v28
  %v75 = vpack.c.b16 %v68, %v67
  %v76 = vpack.c.b16 %v70, %v69
  %v77 = vpack.c.b16 %v72, %v71
  %v78 = vpack.c.b16 %v74, %v73
  %v87 = vunpack.c.l.b16 %v29
  %v88 = vunpack.c.h.b16 %v29
  %v89 = vunpack.c.l.b16 %v30
  %v90 = vunpack.c.h.b16 %v30
  %v91 = vunpack.c.l.b16 %v31
  %v92 = vunpack.c.h.b16 %v31
  %v93 = vunpack.c.l.b16 %v32
  %v94 = vunpack.c.h.b16 %v32
  %v95 = vunpack.c.l.b16 %v33
  %v96 = vunpack.c.h.b16 %v33
  %v97 = vunpack.c.l.b16 %v34
  %v98 = vunpack.c.h.b16 %v34
  %v99 = vunpack.c.l.b16 %v35
  %v100 = vunpack.c.h.b16 %v35
  %v101 = vunpack.c.l.b16 %v36
  %v102 = vunpack.c.h.b16 %v36
  %v103 = vpack.c.b16 %v91, %v87
  %v104 = vpack.c.b16 %v92, %v88
  %v105 = vpack.c.b16 %v93, %v89
  %v106 = vpack.c.b16 %v94, %v90
  %v107 = vpack.c.b16 %v99, %v95
  %v108 = vpack.c.b16 %v100, %v96
  %v109 = vpack.c.b16 %v101, %v97
  %v110 = vpack.c.b16 %v102, %v98
  %vm119 = vcmask 261120
  %v121 = vsel %vm119, %v75, 0
  %v124 = vsel %vm119, %v76, 0
  %v127 = vsel %vm119, %v77, 0
  %v130 = vsel %vm119, %v78, 0
  %132 = vmatprep.subr.bf16.mxu0 0
  %133 = vmatpush1.bf16.msra.mxu0 0
  %134 = vmatprep.subr.bf16.mxu0 0
  %135 = vmatpush1.bf16.msra.mxu0 0
  %136 = vmatprep.subr.bf16.mxu0 0
  %137 = vmatpush1.bf16.msra.mxu0 0
  %138 = vmatprep.subr.bf16.mxu0 0
  %139 = vmatpush1.bf16.msra.mxu0 0
  %140 = vmatprep.subr.bf16.mxu0 0
  %141 = vmatpush1.bf16.msra.mxu0 0
  %142 = vmatprep.subr.bf16.mxu0 0
  %143 = vmatpush1.bf16.msra.mxu0 0
  %144 = vmatprep.subr.bf16.mxu0 %v108
  %145 = vmatpush1.bf16.msra.mxu0 %v107
  %146 = vmatprep.subr.bf16.mxu0 %v104
  %147 = vmatpush1.bf16.msra.mxu0 %v103
  %148 = vmatprep.subr.bf16.mxu0 0
  %149 = vmatpush2.bf16.msra.mxu0 0
  %150 = vmatprep.subr.bf16.mxu0 0
  %151 = vmatpush2.bf16.msra.mxu0 0
  %152 = vmatprep.subr.bf16.mxu0 0
  %153 = vmatpush2.bf16.msra.mxu0 0
  %154 = vmatprep.subr.bf16.mxu0 0
  %155 = vmatpush2.bf16.msra.mxu0 0
  %156 = vmatprep.subr.bf16.mxu0 0
  %157 = vmatpush2.bf16.msra.mxu0 0
  %158 = vmatprep.subr.bf16.mxu0 0
  %159 = vmatpush2.bf16.msra.mxu0 0
  %160 = vmatprep.subr.bf16.mxu0 0
  %161 = vmatpush2.bf16.msra.mxu0 0
  %162 = vmatprep.subr.bf16.mxu0 0
  %163 = vmatpush2.bf16.msra.mxu0 0
  %164 = vmatprep.mubr.bf16.mxu0 0
  %165 = vmatmul.mubr.bf16.gmra.mxu0 %v121
  %v166 = vpop.f32.mrf.mxu0
  %v167 = vadd.f32 %v42, %v166
  %v168 = vpop.f32.mrf.mxu0
  %v169 = vadd.f32 %v46, %v168
  %v170 = vpop.f32.mrf.mxu0
  %v171 = vadd.f32 %v42, %v170
  %v172 = vpop.f32.mrf.mxu0
  %v173 = vadd.f32 %v46, %v172
  %174 = vmatprep.mubr.bf16.mxu0 0
  %175 = vmatmul.mubr.bf16.gmra.mxu0 %v124
  %v176 = vpop.f32.mrf.mxu0
  %v177 = vadd.f32 %v42, %v176
  %v178 = vpop.f32.mrf.mxu0
  %v179 = vadd.f32 %v46, %v178
  %v180 = vpop.f32.mrf.mxu0
  %v181 = vadd.f32 %v42, %v180
  %v182 = vpop.f32.mrf.mxu0
  %v183 = vadd.f32 %v46, %v182
  %184 = vmatprep.mubr.bf16.mxu0 0
  %185 = vmatmul.mubr.bf16.gmra.mxu0 %v127
  %v186 = vpop.f32.mrf.mxu0
  %v187 = vadd.f32 %v42, %v186
  %v188 = vpop.f32.mrf.mxu0
  %v189 = vadd.f32 %v46, %v188
  %v190 = vpop.f32.mrf.mxu0
  %v191 = vadd.f32 %v42, %v190
  %v192 = vpop.f32.mrf.mxu0
  %v193 = vadd.f32 %v46, %v192
  %194 = vmatprep.mubr.bf16.mxu0 0
  %195 = vmatmul.mubr.bf16.gmra.mxu0 %v130
  %v196 = vpop.f32.mrf.mxu0
  %v197 = vadd.f32 %v42, %v196
  %v198 = vpop.f32.mrf.mxu0
  %v199 = vadd.f32 %v46, %v198
  %v200 = vpop.f32.mrf.mxu0
  %v201 = vadd.f32 %v42, %v200
  %v202 = vpop.f32.mrf.mxu0
  %v203 = vadd.f32 %v46, %v202
  %204 = vdwg.mxu0
  %205 = vmatprep.subr.bf16.mxu0 0
  %206 = vmatpush1.bf16.msra.mxu0 0
  %207 = vmatprep.subr.bf16.mxu0 0
  %208 = vmatpush1.bf16.msra.mxu0 0
  %209 = vmatprep.subr.bf16.mxu0 0
  %210 = vmatpush1.bf16.msra.mxu0 0
  %211 = vmatprep.subr.bf16.mxu0 0
  %212 = vmatpush1.bf16.msra.mxu0 0
  %213 = vmatprep.subr.bf16.mxu0 0
  %214 = vmatpush1.bf16.msra.mxu0 0
  %215 = vmatprep.subr.bf16.mxu0 0
  %216 = vmatpush1.bf16.msra.mxu0 0
  %217 = vmatprep.subr.bf16.mxu0 %v110
  %218 = vmatpush1.bf16.msra.mxu0 %v109
  %219 = vmatprep.subr.bf16.mxu0 %v106
  %220 = vmatpush1.bf16.msra.mxu0 %v105
  %221 = vmatprep.subr.bf16.mxu0 0
  %222 = vmatpush2.bf16.msra.mxu0 0
  %223 = vmatprep.subr.bf16.mxu0 0
  %224 = vmatpush2.bf16.msra.mxu0 0
  %225 = vmatprep.subr.bf16.mxu0 0
  %226 = vmatpush2.bf16.msra.mxu0 0
  %227 = vmatprep.subr.bf16.mxu0 0
  %228 = vmatpush2.bf16.msra.mxu0 0
  %229 = vmatprep.subr.bf16.mxu0 0
  %230 = vmatpush2.bf16.msra.mxu0 0
  %231 = vmatprep.subr.bf16.mxu0 0
  %232 = vmatpush2.bf16.msra.mxu0 0
  %233 = vmatprep.subr.bf16.mxu0 0
  %234 = vmatpush2.bf16.msra.mxu0 0
  %235 = vmatprep.subr.bf16.mxu0 0
  %236 = vmatpush2.bf16.msra.mxu0 0
  %237 = vmatprep.mubr.bf16.mxu0 0
  %238 = vmatmul.mubr.bf16.gmra.mxu0 %v121
  %v239 = vpop.f32.mrf.mxu0
  %v240 = vadd.f32 %v50, %v239
  %v241 = vpop.f32.mrf.mxu0
  %v242 = vadd.f32 %v54, %v241
  %v243 = vpop.f32.mrf.mxu0
  %v244 = vadd.f32 %v50, %v243
  %v245 = vpop.f32.mrf.mxu0
  %v246 = vadd.f32 %v54, %v245
  %247 = vmatprep.mubr.bf16.mxu0 0
  %248 = vmatmul.mubr.bf16.gmra.mxu0 %v124
  %v249 = vpop.f32.mrf.mxu0
  %v250 = vadd.f32 %v50, %v249
  %v251 = vpop.f32.mrf.mxu0
  %v252 = vadd.f32 %v54, %v251
  %v253 = vpop.f32.mrf.mxu0
  %v254 = vadd.f32 %v50, %v253
  %v255 = vpop.f32.mrf.mxu0
  %v256 = vadd.f32 %v54, %v255
  %257 = vmatprep.mubr.bf16.mxu0 0
  %258 = vmatmul.mubr.bf16.gmra.mxu0 %v127
  %v259 = vpop.f32.mrf.mxu0
  %v260 = vadd.f32 %v50, %v259
  %v261 = vpop.f32.mrf.mxu0
  %v262 = vadd.f32 %v54, %v261
  %v263 = vpop.f32.mrf.mxu0
  %v264 = vadd.f32 %v50, %v263
  %v265 = vpop.f32.mrf.mxu0
  %v266 = vadd.f32 %v54, %v265
  %267 = vmatprep.mubr.bf16.mxu0 0
  %268 = vmatmul.mubr.bf16.gmra.mxu0 %v130
  %v269 = vpop.f32.mrf.mxu0
  %v270 = vadd.f32 %v50, %v269
  %v271 = vpop.f32.mrf.mxu0
  %v272 = vadd.f32 %v54, %v271
  %v273 = vpop.f32.mrf.mxu0
  %v274 = vadd.f32 %v50, %v273
  %v275 = vpop.f32.mrf.mxu0
  %v276 = vadd.f32 %v54, %v275
  %277 = vdwg.mxu0
  %v278 = vmax.f32 %v167, 0.0
  %v279 = vmax.f32 %v169, 0.0
  %v280 = vmax.f32 %v240, 0.0
  %v281 = vmax.f32 %v242, 0.0
  %v282 = vmax.f32 %v171, 0.0
  %v283 = vmax.f32 %v173, 0.0
  %v284 = vmax.f32 %v244, 0.0
  %v285 = vmax.f32 %v246, 0.0
  %v286 = vmax.f32 %v177, 0.0
  %v287 = vmax.f32 %v179, 0.0
  %v288 = vmax.f32 %v250, 0.0
  %v289 = vmax.f32 %v252, 0.0
  %v290 = vmax.f32 %v181, 0.0
  %v291 = vmax.f32 %v183, 0.0
  %v292 = vmax.f32 %v254, 0.0
  %v293 = vmax.f32 %v256, 0.0
  %v294 = vmax.f32 %v187, 0.0
  %v295 = vmax.f32 %v189, 0.0
  %v296 = vmax.f32 %v260, 0.0
  %v297 = vmax.f32 %v262, 0.0
  %v298 = vmax.f32 %v191, 0.0
  %v299 = vmax.f32 %v193, 0.0
  %v300 = vmax.f32 %v264, 0.0
  %v301 = vmax.f32 %v266, 0.0
  %v302 = vmax.f32 %v197, 0.0
  %v303 = vmax.f32 %v199, 0.0
  %v304 = vmax.f32 %v270, 0.0
  %v305 = vmax.f32 %v272, 0.0
  %v306 = vmax.f32 %v201, 0.0
  %v307 = vmax.f32 %v203, 0.0
  %v308 = vmax.f32 %v274, 0.0
  %v309 = vmax.f32 %v276, 0.0
  %v310 = vpack.c.bf16 %v282, %v278
  %v311 = vpack.c.bf16 %v283, %v279
  %v312 = vpack.c.bf16 %v284, %v280
  %v313 = vpack.c.bf16 %v285, %v281
  %v314 = vpack.c.bf16 %v290, %v286
  %v315 = vpack.c.bf16 %v291, %v287
  %v316 = vpack.c.bf16 %v292, %v288
  %v317 = vpack.c.bf16 %v293, %v289
  %v318 = vpack.c.bf16 %v298, %v294
  %v319 = vpack.c.bf16 %v299, %v295
  %v320 = vpack.c.bf16 %v300, %v296
  %v321 = vpack.c.bf16 %v301, %v297
  %v322 = vpack.c.bf16 %v306, %v302
  %v323 = vpack.c.bf16 %v307, %v303
  %v324 = vpack.c.bf16 %v308, %v304
  %v325 = vpack.c.bf16 %v309, %v305
  %v342 = vunpack.c.l.b16 %v310
  %v343 = vunpack.c.l.b16 %v311
  %v344 = vunpack.c.l.b16 %v312
  %v345 = vunpack.c.l.b16 %v313
  %v346 = vunpack.c.h.b16 %v310
  %v347 = vunpack.c.h.b16 %v311
  %v348 = vunpack.c.h.b16 %v312
  %v349 = vunpack.c.h.b16 %v313
  %v350 = vunpack.c.l.b16 %v314
  %v351 = vunpack.c.l.b16 %v315
  %v352 = vunpack.c.l.b16 %v316
  %v353 = vunpack.c.l.b16 %v317
  %v354 = vunpack.c.h.b16 %v314
  %v355 = vunpack.c.h.b16 %v315
  %v356 = vunpack.c.h.b16 %v316
  %v357 = vunpack.c.h.b16 %v317
  %v358 = vunpack.c.l.b16 %v318
  %v359 = vunpack.c.l.b16 %v319
  %v360 = vunpack.c.l.b16 %v320
  %v361 = vunpack.c.l.b16 %v321
  %v362 = vunpack.c.h.b16 %v318
  %v363 = vunpack.c.h.b16 %v319
  %v364 = vunpack.c.h.b16 %v320
  %v365 = vunpack.c.h.b16 %v321
  %v366 = vunpack.c.l.b16 %v322
  %v367 = vunpack.c.l.b16 %v323
  %v368 = vunpack.c.l.b16 %v324
  %v369 = vunpack.c.l.b16 %v325
  %v370 = vunpack.c.h.b16 %v322
  %v371 = vunpack.c.h.b16 %v323
  %v372 = vunpack.c.h.b16 %v324
  %v373 = vunpack.c.h.b16 %v325
  %v374 = vpack.c.b16 %v343, %v342
  %v375 = vpack.c.b16 %v345, %v344
  %v376 = vpack.c.b16 %v347, %v346
  %v377 = vpack.c.b16 %v349, %v348
  %v378 = vpack.c.b16 %v351, %v350
  %v379 = vpack.c.b16 %v353, %v352
  %v380 = vpack.c.b16 %v355, %v354
  %v381 = vpack.c.b16 %v357, %v356
  %v382 = vpack.c.b16 %v359, %v358
  %v383 = vpack.c.b16 %v361, %v360
  %v384 = vpack.c.b16 %v363, %v362
  %v385 = vpack.c.b16 %v365, %v364
  %v386 = vpack.c.b16 %v367, %v366
  %v387 = vpack.c.b16 %v369, %v368
  %v388 = vpack.c.b16 %v371, %v370
  %v389 = vpack.c.b16 %v373, %v372
  %406 = vst [vmem:[#allocation2] sm:$0xff] %v374
  %407 = vst [vmem:[#allocation2 + $0x8] sm:$0xff] %v375
  %408 = vst [vmem:[#allocation2 + $0x10] sm:$0xff] %v376
  %409 = vst [vmem:[#allocation2 + $0x18] sm:$0xff] %v377
  %410 = vst [vmem:[#allocation2 + $0x20] sm:$0xff] %v378
  %411 = vst [vmem:[#allocation2 + $0x28] sm:$0xff] %v379
  %412 = vst [vmem:[#allocation2 + $0x30] sm:$0xff] %v380
  %413 = vst [vmem:[#allocation2 + $0x38] sm:$0xff] %v381
  %414 = vst [vmem:[#allocation2 + $0x40] sm:$0xff] %v382
  %415 = vst [vmem:[#allocation2 + $0x48] sm:$0xff] %v383
  %416 = vst [vmem:[#allocation2 + $0x50] sm:$0xff] %v384
  %417 = vst [vmem:[#allocation2 + $0x58] sm:$0xff] %v385
  %418 = vst [vmem:[#allocation2 + $0x60] sm:$0xff] %v386
  %419 = vst [vmem:[#allocation2 + $0x68] sm:$0xff] %v387
  %420 = vst [vmem:[#allocation2 + $0x70] sm:$0xff] %v388
  %421 = vst [vmem:[#allocation2 + $0x78] sm:$0xff] %v389
  %v422 = vld [vmem:[#allocation2] sm:$0xff]
  %v423 = vld [vmem:[#allocation2 + $0x8] sm:$0xff]
  %v424 = vld [vmem:[#allocation2 + $0x10] sm:$0xff]
  %v425 = vld [vmem:[#allocation2 + $0x18] sm:$0xff]
  %v426 = vld [vmem:[#allocation2 + $0x20] sm:$0xff]
  %v427 = vld [vmem:[#allocation2 + $0x28] sm:$0xff]
  %v428 = vld [vmem:[#allocation2 + $0x30] sm:$0xff]
  %v429 = vld [vmem:[#allocation2 + $0x38] sm:$0xff]
  %v430 = vld [vmem:[#allocation2 + $0x40] sm:$0xff]
  %v431 = vld [vmem:[#allocation2 + $0x48] sm:$0xff]
  %v432 = vld [vmem:[#allocation2 + $0x50] sm:$0xff]
  %v433 = vld [vmem:[#allocation2 + $0x58] sm:$0xff]
  %v434 = vld [vmem:[#allocation2 + $0x60] sm:$0xff]
  %v435 = vld [vmem:[#allocation2 + $0x68] sm:$0xff]
  %v436 = vld [vmem:[#allocation2 + $0x70] sm:$0xff]
  %v437 = vld [vmem:[#allocation2 + $0x78] sm:$0xff]
  %v438 = vld [vmem:[%s3] sm:$0xff]
  %v439 = vld [vmem:[%s3 + $0x8] sm:$0xff]
  %v440 = vld [vmem:[%s3 + $0x10] sm:$0xff]
  %v441 = vld [vmem:[%s3 + $0x18] sm:$0xff]
  %v442 = vld [vmem:[%s3 + $0x20] sm:$0xff]
  %v443 = vld [vmem:[%s3 + $0x28] sm:$0xff]
  %v444 = vld [vmem:[%s3 + $0x30] sm:$0xff]
  %v445 = vld [vmem:[%s3 + $0x38] sm:$0xff]
  %v446 = vld [vmem:[%s3 + $0x40] sm:$0xff]
  %v447 = vld [vmem:[%s3 + $0x48] sm:$0xf]
  %v448 = vld [vmem:[%s3 + $0x4c] sm:$0xff]
  %v449 = vld [vmem:[%s3 + $0x54] sm:$0xff]
  %v450 = vld [vmem:[%s3 + $0x5c] sm:$0xff]
  %v451 = vld [vmem:[%s3 + $0x64] sm:$0xff]
  %v452 = vld [vmem:[%s3 + $0x6c] sm:$0xff]
  %v453 = vld [vmem:[%s3 + $0x74] sm:$0xff]
  %v454 = vld [vmem:[%s3 + $0x7c] sm:$0xff]
  %v455 = vld [vmem:[%s3 + $0x84] sm:$0xff]
  %v456 = vld [vmem:[%s3 + $0x8c] sm:$0xff]
  %v457 = vld [vmem:[%s3 + $0x94] sm:$0xf]
  %v458 = vld [vmem:[%s3 + $0x98] sm:$0xff]
  %v459 = vld [vmem:[%s3 + $0xa0] sm:$0xff]
  %v460 = vld [vmem:[%s3 + $0xa8] sm:$0xff]
  %v461 = vld [vmem:[%s3 + $0xb0] sm:$0xff]
  %v462 = vld [vmem:[%s3 + $0xb8] sm:$0xff]
  %v463 = vld [vmem:[%s3 + $0xc0] sm:$0xff]
  %v464 = vld [vmem:[%s3 + $0xc8] sm:$0xff]
  %v465 = vld [vmem:[%s3 + $0xd0] sm:$0xff]
  %v466 = vld [vmem:[%s3 + $0xd8] sm:$0xff]
  %v467 = vld [vmem:[%s3 + $0xe0] sm:$0xf]
  %v468 = vld [vmem:[%s3 + $0xe4] sm:$0xff]
  %v469 = vld [vmem:[%s3 + $0xec] sm:$0xff]
  %v470 = vld [vmem:[%s3 + $0xf4] sm:$0xff]
  %v471 = vld [vmem:[%s3 + $0xfc] sm:$0xff]
  %v472 = vld [vmem:[%s3 + $0x104] sm:$0xff]
  %v473 = vld [vmem:[%s3 + $0x10c] sm:$0xff]
  %v474 = vld [vmem:[%s3 + $0x114] sm:$0xff]
  %v475 = vld [vmem:[%s3 + $0x11c] sm:$0xff]
  %v476 = vld [vmem:[%s3 + $0x124] sm:$0xff]
  %v477 = vld [vmem:[%s3 + $0x12c] sm:$0xf]
  %v478 = vld [vmem:[%s3 + $0x130] sm:$0xff]
  %v479 = vld [vmem:[%s3 + $0x138] sm:$0xff]
  %v480 = vld [vmem:[%s3 + $0x140] sm:$0xff]
  %v481 = vld [vmem:[%s3 + $0x148] sm:$0xff]
  %v482 = vld [vmem:[%s3 + $0x150] sm:$0xff]
  %v483 = vld [vmem:[%s3 + $0x158] sm:$0xff]
  %v484 = vld [vmem:[%s3 + $0x160] sm:$0xff]
  %v485 = vld [vmem:[%s3 + $0x168] sm:$0xff]
  %v486 = vld [vmem:[%s3 + $0x170] sm:$0xff]
  %v487 = vld [vmem:[%s3 + $0x178] sm:$0xf]
  %v488 = vld [vmem:[%s3 + $0x17c] sm:$0xff]
  %v489 = vld [vmem:[%s3 + $0x184] sm:$0xff]
  %v490 = vld [vmem:[%s3 + $0x18c] sm:$0xff]
  %v491 = vld [vmem:[%s3 + $0x194] sm:$0xff]
  %v492 = vld [vmem:[%s3 + $0x19c] sm:$0xff]
  %v493 = vld [vmem:[%s3 + $0x1a4] sm:$0xff]
  %v494 = vld [vmem:[%s3 + $0x1ac] sm:$0xff]
  %v495 = vld [vmem:[%s3 + $0x1b4] sm:$0xff]
  %v496 = vld [vmem:[%s3 + $0x1bc] sm:$0xff]
  %v497 = vld [vmem:[%s3 + $0x1c4] sm:$0xf]
  %v498 = vld [vmem:[%s3 + $0x1c8] sm:$0xff]
  %v499 = vld [vmem:[%s3 + $0x1d0] sm:$0xff]
  %v500 = vld [vmem:[%s3 + $0x1d8] sm:$0xff]
  %v501 = vld [vmem:[%s3 + $0x1e0] sm:$0xff]
  %v502 = vld [vmem:[%s3 + $0x1e8] sm:$0xff]
  %v503 = vld [vmem:[%s3 + $0x1f0] sm:$0xff]
  %v504 = vld [vmem:[%s3 + $0x1f8] sm:$0xff]
  %v505 = vld [vmem:[%s3 + $0x200] sm:$0xff]
  %v506 = vld [vmem:[%s3 + $0x208] sm:$0xff]
  %v507 = vld [vmem:[%s3 + $0x210] sm:$0xf]
  %v508 = vld [vmem:[%s3 + $0x214] sm:$0xff]
  %v509 = vld [vmem:[%s3 + $0x21c] sm:$0xff]
  %v510 = vld [vmem:[%s3 + $0x224] sm:$0xff]
  %v511 = vld [vmem:[%s3 + $0x22c] sm:$0xff]
  %v512 = vld [vmem:[%s3 + $0x234] sm:$0xff]
  %v513 = vld [vmem:[%s3 + $0x23c] sm:$0xff]
  %v514 = vld [vmem:[%s3 + $0x244] sm:$0xff]
  %v515 = vld [vmem:[%s3 + $0x24c] sm:$0xff]
  %v516 = vld [vmem:[%s3 + $0x254] sm:$0xff]
  %v517 = vld [vmem:[%s3 + $0x25c] sm:$0xf]
  %v518 = vld [vmem:[%s3 + $0x260] sm:$0xff]
  %v519 = vld [vmem:[%s3 + $0x268] sm:$0xff]
  %v520 = vld [vmem:[%s3 + $0x270] sm:$0xff]
  %v521 = vld [vmem:[%s3 + $0x278] sm:$0xff]
  %v522 = vld [vmem:[%s3 + $0x280] sm:$0xff]
  %v523 = vld [vmem:[%s3 + $0x288] sm:$0xff]
  %v524 = vld [vmem:[%s3 + $0x290] sm:$0xff]
  %v525 = vld [vmem:[%s3 + $0x298] sm:$0xff]
  %v526 = vld [vmem:[%s3 + $0x2a0] sm:$0xff]
  %v527 = vld [vmem:[%s3 + $0x2a8] sm:$0xf]
  %v528 = vld [vmem:[%s3 + $0x2ac] sm:$0xff]
  %v529 = vld [vmem:[%s3 + $0x2b4] sm:$0xff]
  %v530 = vld [vmem:[%s3 + $0x2bc] sm:$0xff]
  %v531 = vld [vmem:[%s3 + $0x2c4] sm:$0xff]
  %v532 = vld [vmem:[%s3 + $0x2cc] sm:$0xff]
  %v533 = vld [vmem:[%s3 + $0x2d4] sm:$0xff]
  %v534 = vld [vmem:[%s3 + $0x2dc] sm:$0xff]
  %v535 = vld [vmem:[%s3 + $0x2e4] sm:$0xff]
  %v536 = vld [vmem:[%s3 + $0x2ec] sm:$0xff]
  %v537 = vld [vmem:[%s3 + $0x2f4] sm:$0xf]
  %v538 = vld [vmem:[%s3 + $0x2f8] sm:$0xff]
  %v539 = vld [vmem:[%s3 + $0x300] sm:$0xff]
  %v540 = vld [vmem:[%s3 + $0x308] sm:$0xff]
  %v541 = vld [vmem:[%s3 + $0x310] sm:$0xff]
  %v542 = vld [vmem:[%s3 + $0x318] sm:$0xff]
  %v543 = vld [vmem:[%s3 + $0x320] sm:$0xff]
  %v544 = vld [vmem:[%s3 + $0x328] sm:$0xff]
  %v545 = vld [vmem:[%s3 + $0x330] sm:$0xff]
  %v546 = vld [vmem:[%s3 + $0x338] sm:$0xff]
  %v547 = vld [vmem:[%s3 + $0x340] sm:$0xf]
  %v548 = vld [vmem:[%s3 + $0x344] sm:$0xff]
  %v549 = vld [vmem:[%s3 + $0x34c] sm:$0xff]
  %v550 = vld [vmem:[%s3 + $0x354] sm:$0xff]
  %v551 = vld [vmem:[%s3 + $0x35c] sm:$0xff]
  %v552 = vld [vmem:[%s3 + $0x364] sm:$0xff]
  %v553 = vld [vmem:[%s3 + $0x36c] sm:$0xff]
  %v554 = vld [vmem:[%s3 + $0x374] sm:$0xff]
  %v555 = vld [vmem:[%s3 + $0x37c] sm:$0xff]
  %v556 = vld [vmem:[%s3 + $0x384] sm:$0xff]
  %v557 = vld [vmem:[%s3 + $0x38c] sm:$0xf]
  %v558 = vld [vmem:[%s3 + $0x390] sm:$0xff]
  %v559 = vld [vmem:[%s3 + $0x398] sm:$0xff]
  %v560 = vld [vmem:[%s3 + $0x3a0] sm:$0xff]
  %v561 = vld [vmem:[%s3 + $0x3a8] sm:$0xff]
  %v562 = vld [vmem:[%s3 + $0x3b0] sm:$0xff]
  %v563 = vld [vmem:[%s3 + $0x3b8] sm:$0xff]
  %v564 = vld [vmem:[%s3 + $0x3c0] sm:$0xff]
  %v565 = vld [vmem:[%s3 + $0x3c8] sm:$0xff]
  %v566 = vld [vmem:[%s3 + $0x3d0] sm:$0xff]
  %v567 = vld [vmem:[%s3 + $0x3d8] sm:$0xf]
  %v568 = vld [vmem:[%s3 + $0x3dc] sm:$0xff]
  %v569 = vld [vmem:[%s3 + $0x3e4] sm:$0xff]
  %v570 = vld [vmem:[%s3 + $0x3ec] sm:$0xff]
  %v571 = vld [vmem:[%s3 + $0x3f4] sm:$0xff]
  %v572 = vld [vmem:[%s3 + $0x3fc] sm:$0xff]
  %v573 = vld [vmem:[%s3 + $0x404] sm:$0xff]
  %v574 = vld [vmem:[%s3 + $0x40c] sm:$0xff]
  %v575 = vld [vmem:[%s3 + $0x414] sm:$0xff]
  %v576 = vld [vmem:[%s3 + $0x41c] sm:$0xff]
  %v577 = vld [vmem:[%s3 + $0x424] sm:$0xf]
  %v578 = vld [vmem:[%s3 + $0x428] sm:$0xff]
  %v579 = vld [vmem:[%s3 + $0x430] sm:$0xff]
  %v580 = vld [vmem:[%s3 + $0x438] sm:$0xff]
  %v581 = vld [vmem:[%s3 + $0x440] sm:$0xff]
  %v582 = vld [vmem:[%s3 + $0x448] sm:$0xff]
  %v583 = vld [vmem:[%s3 + $0x450] sm:$0xff]
  %v584 = vld [vmem:[%s3 + $0x458] sm:$0xff]
  %v585 = vld [vmem:[%s3 + $0x460] sm:$0xff]
  %v586 = vld [vmem:[%s3 + $0x468] sm:$0xff]
  %v587 = vld [vmem:[%s3 + $0x470] sm:$0xf]
  %v588 = vld [vmem:[%s3 + $0x474] sm:$0xff]
  %v589 = vld [vmem:[%s3 + $0x47c] sm:$0xff]
  %v590 = vld [vmem:[%s3 + $0x484] sm:$0xff]
  %v591 = vld [vmem:[%s3 + $0x48c] sm:$0xff]
  %v592 = vld [vmem:[%s3 + $0x494] sm:$0xff]
  %v593 = vld [vmem:[%s3 + $0x49c] sm:$0xff]
  %v594 = vld [vmem:[%s3 + $0x4a4] sm:$0xff]
  %v595 = vld [vmem:[%s3 + $0x4ac] sm:$0xff]
  %v596 = vld [vmem:[%s3 + $0x4b4] sm:$0xff]
  %v597 = vld [vmem:[%s3 + $0x4bc] sm:$0xf]
  %v598 = vld [vmem:[%s3 + $0x4c0] sm:$0xff]
  %v599 = vld [vmem:[%s3 + $0x4c8] sm:$0xff]
  %v600 = vld [vmem:[%s3 + $0x4d0] sm:$0xff]
  %v601 = vld [vmem:[%s3 + $0x4d8] sm:$0xff]
  %v602 = vld [vmem:[%s3 + $0x4e0] sm:$0xff]
  %v603 = vld [vmem:[%s3 + $0x4e8] sm:$0xff]
  %v604 = vld [vmem:[%s3 + $0x4f0] sm:$0xff]
  %v605 = vld [vmem:[%s3 + $0x4f8] sm:$0xff]
  %v606 = vld [vmem:[%s3 + $0x500] sm:$0xff]
  %v607 = vld [vmem:[%s3 + $0x508] sm:$0xf]
  %v608 = vld [vmem:[%s3 + $0x50c] sm:$0xff]
  %v609 = vld [vmem:[%s3 + $0x514] sm:$0xff]
  %v610 = vld [vmem:[%s3 + $0x51c] sm:$0xff]
  %v611 = vld [vmem:[%s3 + $0x524] sm:$0xff]
  %v612 = vld [vmem:[%s3 + $0x52c] sm:$0xff]
  %v613 = vld [vmem:[%s3 + $0x534] sm:$0xff]
  %v614 = vld [vmem:[%s3 + $0x53c] sm:$0xff]
  %v615 = vld [vmem:[%s3 + $0x544] sm:$0xff]
  %v616 = vld [vmem:[%s3 + $0x54c] sm:$0xff]
  %v617 = vld [vmem:[%s3 + $0x554] sm:$0xf]
  %v618 = vld [vmem:[%s3 + $0x558] sm:$0xff]
  %v619 = vld [vmem:[%s3 + $0x560] sm:$0xff]
  %v620 = vld [vmem:[%s3 + $0x568] sm:$0xff]
  %v621 = vld [vmem:[%s3 + $0x570] sm:$0xff]
  %v622 = vld [vmem:[%s3 + $0x578] sm:$0xff]
  %v623 = vld [vmem:[%s3 + $0x580] sm:$0xff]
  %v624 = vld [vmem:[%s3 + $0x588] sm:$0xff]
  %v625 = vld [vmem:[%s3 + $0x590] sm:$0xff]
  %v626 = vld [vmem:[%s3 + $0x598] sm:$0xff]
  %v627 = vld [vmem:[%s3 + $0x5a0] sm:$0xf]
  %v628 = vld [vmem:[%s3 + $0x5a4] sm:$0xff]
  %v629 = vld [vmem:[%s3 + $0x5ac] sm:$0xff]
  %v630 = vld [vmem:[%s3 + $0x5b4] sm:$0xff]
  %v631 = vld [vmem:[%s3 + $0x5bc] sm:$0xff]
  %v632 = vld [vmem:[%s3 + $0x5c4] sm:$0xff]
  %v633 = vld [vmem:[%s3 + $0x5cc] sm:$0xff]
  %v634 = vld [vmem:[%s3 + $0x5d4] sm:$0xff]
  %v635 = vld [vmem:[%s3 + $0x5dc] sm:$0xff]
  %v636 = vld [vmem:[%s3 + $0x5e4] sm:$0xff]
  %v637 = vld [vmem:[%s3 + $0x5ec] sm:$0xf]
  %v638 = vld [vmem:[%s3 + $0x5f0] sm:$0xff]
  %v639 = vld [vmem:[%s3 + $0x5f8] sm:$0xff]
  %v640 = vld [vmem:[%s3 + $0x600] sm:$0xff]
  %v641 = vld [vmem:[%s3 + $0x608] sm:$0xff]
  %v642 = vld [vmem:[%s3 + $0x610] sm:$0xff]
  %v643 = vld [vmem:[%s3 + $0x618] sm:$0xff]
  %v644 = vld [vmem:[%s3 + $0x620] sm:$0xff]
  %v645 = vld [vmem:[%s3 + $0x628] sm:$0xff]
  %v646 = vld [vmem:[%s3 + $0x630] sm:$0xff]
  %v647 = vld [vmem:[%s3 + $0x638] sm:$0xf]
  %v648 = vld [vmem:[%s3 + $0x63c] sm:$0xff]
  %v649 = vld [vmem:[%s3 + $0x644] sm:$0xff]
  %v650 = vld [vmem:[%s3 + $0x64c] sm:$0xff]
  %v651 = vld [vmem:[%s3 + $0x654] sm:$0xff]
  %v652 = vld [vmem:[%s3 + $0x65c] sm:$0xff]
  %v653 = vld [vmem:[%s3 + $0x664] sm:$0xff]
  %v654 = vld [vmem:[%s3 + $0x66c] sm:$0xff]
  %v655 = vld [vmem:[%s3 + $0x674] sm:$0xff]
  %v656 = vld [vmem:[%s3 + $0x67c] sm:$0xff]
  %v657 = vld [vmem:[%s3 + $0x684] sm:$0xf]
  %v658 = vld [vmem:[%s3 + $0x688] sm:$0xff]
  %v659 = vld [vmem:[%s3 + $0x690] sm:$0xff]
  %v660 = vld [vmem:[%s3 + $0x698] sm:$0xff]
  %v661 = vld [vmem:[%s3 + $0x6a0] sm:$0xff]
  %v662 = vld [vmem:[%s3 + $0x6a8] sm:$0xff]
  %v663 = vld [vmem:[%s3 + $0x6b0] sm:$0xff]
  %v664 = vld [vmem:[%s3 + $0x6b8] sm:$0xff]
  %v665 = vld [vmem:[%s3 + $0x6c0] sm:$0xff]
  %v666 = vld [vmem:[%s3 + $0x6c8] sm:$0xff]
  %v667 = vld [vmem:[%s3 + $0x6d0] sm:$0xf]
  %v668 = vld [vmem:[%s3 + $0x6d4] sm:$0xff]
  %v669 = vld [vmem:[%s3 + $0x6dc] sm:$0xff]
  %v670 = vld [vmem:[%s3 + $0x6e4] sm:$0xff]
  %v671 = vld [vmem:[%s3 + $0x6ec] sm:$0xff]
  %v672 = vld [vmem:[%s3 + $0x6f4] sm:$0xff]
  %v673 = vld [vmem:[%s3 + $0x6fc] sm:$0xff]
  %v674 = vld [vmem:[%s3 + $0x704] sm:$0xff]
  %v675 = vld [vmem:[%s3 + $0x70c] sm:$0xff]
  %v676 = vld [vmem:[%s3 + $0x714] sm:$0xff]
  %v677 = vld [vmem:[%s3 + $0x71c] sm:$0xf]
  %v678 = vld [vmem:[%s3 + $0x720] sm:$0xff]
  %v679 = vld [vmem:[%s3 + $0x728] sm:$0xff]
  %v680 = vld [vmem:[%s3 + $0x730] sm:$0xff]
  %v681 = vld [vmem:[%s3 + $0x738] sm:$0xff]
  %v682 = vld [vmem:[%s3 + $0x740] sm:$0xff]
  %v683 = vld [vmem:[%s3 + $0x748] sm:$0xff]
  %v684 = vld [vmem:[%s3 + $0x750] sm:$0xff]
  %v685 = vld [vmem:[%s3 + $0x758] sm:$0xff]
  %v686 = vld [vmem:[%s3 + $0x760] sm:$0xff]
  %v687 = vld [vmem:[%s3 + $0x768] sm:$0xf]
  %v688 = vld [vmem:[%s3 + $0x76c] sm:$0xff]
  %v689 = vld [vmem:[%s3 + $0x774] sm:$0xff]
  %v690 = vld [vmem:[%s3 + $0x77c] sm:$0xff]
  %v691 = vld [vmem:[%s3 + $0x784] sm:$0xff]
  %v692 = vld [vmem:[%s3 + $0x78c] sm:$0xff]
  %v693 = vld [vmem:[%s3 + $0x794] sm:$0xff]
  %v694 = vld [vmem:[%s3 + $0x79c] sm:$0xff]
  %v695 = vld [vmem:[%s3 + $0x7a4] sm:$0xff]
  %v696 = vld [vmem:[%s3 + $0x7ac] sm:$0xff]
  %v697 = vld [vmem:[%s3 + $0x7b4] sm:$0xf]
  %v698 = vld [vmem:[%s3 + $0x7b8] sm:$0xff]
  %v699 = vld [vmem:[%s3 + $0x7c0] sm:$0xff]
  %v700 = vld [vmem:[%s3 + $0x7c8] sm:$0xff]
  %v701 = vld [vmem:[%s3 + $0x7d0] sm:$0xff]
  %v702 = vld [vmem:[%s3 + $0x7d8] sm:$0xff]
  %v703 = vld [vmem:[%s3 + $0x7e0] sm:$0xff]
  %v704 = vld [vmem:[%s3 + $0x7e8] sm:$0xff]
  %v705 = vld [vmem:[%s3 + $0x7f0] sm:$0xff]
  %v706 = vld [vmem:[%s3 + $0x7f8] sm:$0xff]
  %v707 = vld [vmem:[%s3 + $0x800] sm:$0xf]
  %v708 = vld [vmem:[%s3 + $0x804] sm:$0xff]
  %v709 = vld [vmem:[%s3 + $0x80c] sm:$0xff]
  %v710 = vld [vmem:[%s3 + $0x814] sm:$0xff]
  %v711 = vld [vmem:[%s3 + $0x81c] sm:$0xff]
  %v712 = vld [vmem:[%s3 + $0x824] sm:$0xff]
  %v713 = vld [vmem:[%s3 + $0x82c] sm:$0xff]
  %v714 = vld [vmem:[%s3 + $0x834] sm:$0xff]
  %v715 = vld [vmem:[%s3 + $0x83c] sm:$0xff]
  %v716 = vld [vmem:[%s3 + $0x844] sm:$0xff]
  %v717 = vld [vmem:[%s3 + $0x84c] sm:$0xf]
  %v718 = vld [vmem:[%s3 + $0x850] sm:$0xff]
  %v719 = vld [vmem:[%s3 + $0x858] sm:$0xff]
  %v720 = vld [vmem:[%s3 + $0x860] sm:$0xff]
  %v721 = vld [vmem:[%s3 + $0x868] sm:$0xff]
  %v722 = vld [vmem:[%s3 + $0x870] sm:$0xff]
  %v723 = vld [vmem:[%s3 + $0x878] sm:$0xff]
  %v724 = vld [vmem:[%s3 + $0x880] sm:$0xff]
  %v725 = vld [vmem:[%s3 + $0x888] sm:$0xff]
  %v726 = vld [vmem:[%s3 + $0x890] sm:$0xff]
  %v727 = vld [vmem:[%s3 + $0x898] sm:$0xf]
  %v728 = vld [vmem:[%s3 + $0x89c] sm:$0xff]
  %v729 = vld [vmem:[%s3 + $0x8a4] sm:$0xff]
  %v730 = vld [vmem:[%s3 + $0x8ac] sm:$0xff]
  %v731 = vld [vmem:[%s3 + $0x8b4] sm:$0xff]
  %v732 = vld [vmem:[%s3 + $0x8bc] sm:$0xff]
  %v733 = vld [vmem:[%s3 + $0x8c4] sm:$0xff]
  %v734 = vld [vmem:[%s3 + $0x8cc] sm:$0xff]
  %v735 = vld [vmem:[%s3 + $0x8d4] sm:$0xff]
  %v736 = vld [vmem:[%s3 + $0x8dc] sm:$0xff]
  %v737 = vld [vmem:[%s3 + $0x8e4] sm:$0xf]
  %v738 = vld [vmem:[%s3 + $0x8e8] sm:$0xff]
  %v739 = vld [vmem:[%s3 + $0x8f0] sm:$0xff]
  %v740 = vld [vmem:[%s3 + $0x8f8] sm:$0xff]
  %v741 = vld [vmem:[%s3 + $0x900] sm:$0xff]
  %v742 = vld [vmem:[%s3 + $0x908] sm:$0xff]
  %v743 = vld [vmem:[%s3 + $0x910] sm:$0xff]
  %v744 = vld [vmem:[%s3 + $0x918] sm:$0xff]
  %v745 = vld [vmem:[%s3 + $0x920] sm:$0xff]
  %v746 = vld [vmem:[%s3 + $0x928] sm:$0xff]
  %v747 = vld [vmem:[%s3 + $0x930] sm:$0xf]
  %v748 = vld [vmem:[%s3 + $0x934] sm:$0xff]
  %v749 = vld [vmem:[%s3 + $0x93c] sm:$0xff]
  %v750 = vld [vmem:[%s3 + $0x944] sm:$0xff]
  %v751 = vld [vmem:[%s3 + $0x94c] sm:$0xff]
  %v752 = vld [vmem:[%s3 + $0x954] sm:$0xff]
  %v753 = vld [vmem:[%s3 + $0x95c] sm:$0xff]
  %v754 = vld [vmem:[%s3 + $0x964] sm:$0xff]
  %v755 = vld [vmem:[%s3 + $0x96c] sm:$0xff]
  %v756 = vld [vmem:[%s3 + $0x974] sm:$0xff]
  %v757 = vld [vmem:[%s3 + $0x97c] sm:$0xf]
  %v758 = vld [vmem:[%s3 + $0x980] sm:$0xff]
  %v759 = vld [vmem:[%s3 + $0x988] sm:$0xff]
  %v760 = vld [vmem:[%s3 + $0x990] sm:$0xff]
  %v761 = vld [vmem:[%s3 + $0x998] sm:$0xff]
  %v762 = vld [vmem:[%s3 + $0x9a0] sm:$0xff]
  %v763 = vld [vmem:[%s3 + $0x9a8] sm:$0xff]
  %v764 = vld [vmem:[%s3 + $0x9b0] sm:$0xff]
  %v765 = vld [vmem:[%s3 + $0x9b8] sm:$0xff]
  %v766 = vld [vmem:[%s3 + $0x9c0] sm:$0xff]
  %v767 = vld [vmem:[%s3 + $0x9c8] sm:$0xf]
  %v768 = vld [vmem:[%s3 + $0x9cc] sm:$0xff]
  %v769 = vld [vmem:[%s3 + $0x9d4] sm:$0xff]
  %v770 = vld [vmem:[%s3 + $0x9dc] sm:$0xff]
  %v771 = vld [vmem:[%s3 + $0x9e4] sm:$0xff]
  %v772 = vld [vmem:[%s3 + $0x9ec] sm:$0xff]
  %v773 = vld [vmem:[%s3 + $0x9f4] sm:$0xff]
  %v774 = vld [vmem:[%s3 + $0x9fc] sm:$0xff]
  %v775 = vld [vmem:[%s3 + $0xa04] sm:$0xff]
  %v776 = vld [vmem:[%s3 + $0xa0c] sm:$0xff]
  %v777 = vld [vmem:[%s3 + $0xa14] sm:$0xf]
  %v778 = vld [vmem:[%s3 + $0xa18] sm:$0xff]
  %v779 = vld [vmem:[%s3 + $0xa20] sm:$0xff]
  %v780 = vld [vmem:[%s3 + $0xa28] sm:$0xff]
  %v781 = vld [vmem:[%s3 + $0xa30] sm:$0xff]
  %v782 = vld [vmem:[%s3 + $0xa38] sm:$0xff]
  %v783 = vld [vmem:[%s3 + $0xa40] sm:$0xff]
  %v784 = vld [vmem:[%s3 + $0xa48] sm:$0xff]
  %v785 = vld [vmem:[%s3 + $0xa50] sm:$0xff]
  %v786 = vld [vmem:[%s3 + $0xa58] sm:$0xff]
  %v787 = vld [vmem:[%s3 + $0xa60] sm:$0xf]
  %v788 = vld [vmem:[%s3 + $0xa64] sm:$0xff]
  %v789 = vld [vmem:[%s3 + $0xa6c] sm:$0xff]
  %v790 = vld [vmem:[%s3 + $0xa74] sm:$0xff]
  %v791 = vld [vmem:[%s3 + $0xa7c] sm:$0xff]
  %v792 = vld [vmem:[%s3 + $0xa84] sm:$0xff]
  %v793 = vld [vmem:[%s3 + $0xa8c] sm:$0xff]
  %v794 = vld [vmem:[%s3 + $0xa94] sm:$0xff]
  %v795 = vld [vmem:[%s3 + $0xa9c] sm:$0xff]
  %v796 = vld [vmem:[%s3 + $0xaa4] sm:$0xff]
  %v797 = vld [vmem:[%s3 + $0xaac] sm:$0xf]
  %v798 = vld [vmem:[%s3 + $0xab0] sm:$0xff]
  %v799 = vld [vmem:[%s3 + $0xab8] sm:$0xff]
  %v800 = vld [vmem:[%s3 + $0xac0] sm:$0xff]
  %v801 = vld [vmem:[%s3 + $0xac8] sm:$0xff]
  %v802 = vld [vmem:[%s3 + $0xad0] sm:$0xff]
  %v803 = vld [vmem:[%s3 + $0xad8] sm:$0xff]
  %v804 = vld [vmem:[%s3 + $0xae0] sm:$0xff]
  %v805 = vld [vmem:[%s3 + $0xae8] sm:$0xff]
  %v806 = vld [vmem:[%s3 + $0xaf0] sm:$0xff]
  %v807 = vld [vmem:[%s3 + $0xaf8] sm:$0xf]
  %v808 = vld [vmem:[%s3 + $0xafc] sm:$0xff]
  %v809 = vld [vmem:[%s3 + $0xb04] sm:$0xff]
  %v810 = vld [vmem:[%s3 + $0xb0c] sm:$0xff]
  %v811 = vld [vmem:[%s3 + $0xb14] sm:$0xff]
  %v812 = vld [vmem:[%s3 + $0xb1c] sm:$0xff]
  %v813 = vld [vmem:[%s3 + $0xb24] sm:$0xff]
  %v814 = vld [vmem:[%s3 + $0xb2c] sm:$0xff]
  %v815 = vld [vmem:[%s3 + $0xb34] sm:$0xff]
  %v816 = vld [vmem:[%s3 + $0xb3c] sm:$0xff]
  %v817 = vld [vmem:[%s3 + $0xb44] sm:$0xf]
  %v818 = vld [vmem:[%s3 + $0xb48] sm:$0xff]
  %v819 = vld [vmem:[%s3 + $0xb50] sm:$0xff]
  %v820 = vld [vmem:[%s3 + $0xb58] sm:$0xff]
  %v821 = vld [vmem:[%s3 + $0xb60] sm:$0xff]
  %v822 = vld [vmem:[%s3 + $0xb68] sm:$0xff]
  %v823 = vld [vmem:[%s3 + $0xb70] sm:$0xff]
  %v824 = vld [vmem:[%s3 + $0xb78] sm:$0xff]
  %v825 = vld [vmem:[%s3 + $0xb80] sm:$0xff]
  %v826 = vld [vmem:[%s3 + $0xb88] sm:$0xff]
  %v827 = vld [vmem:[%s3 + $0xb90] sm:$0xf]
  %v828 = vld [vmem:[%s3 + $0xb94] sm:$0xff]
  %v829 = vld [vmem:[%s3 + $0xb9c] sm:$0xff]
  %v830 = vld [vmem:[%s3 + $0xba4] sm:$0xff]
  %v831 = vld [vmem:[%s3 + $0xbac] sm:$0xff]
  %v832 = vld [vmem:[%s3 + $0xbb4] sm:$0xff]
  %v833 = vld [vmem:[%s3 + $0xbbc] sm:$0xff]
  %v834 = vld [vmem:[%s3 + $0xbc4] sm:$0xff]
  %v835 = vld [vmem:[%s3 + $0xbcc] sm:$0xff]
  %v836 = vld [vmem:[%s3 + $0xbd4] sm:$0xff]
  %v837 = vld [vmem:[%s3 + $0xbdc] sm:$0xf]
  %v838 = vld [vmem:[%s3 + $0xbe0] sm:$0xff]
  %v839 = vld [vmem:[%s3 + $0xbe8] sm:$0xff]
  %v840 = vld [vmem:[%s3 + $0xbf0] sm:$0xff]
  %v841 = vld [vmem:[%s3 + $0xbf8] sm:$0xff]
  %v842 = vld [vmem:[%s3 + $0xc00] sm:$0xff]
  %v843 = vld [vmem:[%s3 + $0xc08] sm:$0xff]
  %v844 = vld [vmem:[%s3 + $0xc10] sm:$0xff]
  %v845 = vld [vmem:[%s3 + $0xc18] sm:$0xff]
  %v846 = vld [vmem:[%s3 + $0xc20] sm:$0xff]
  %v847 = vld [vmem:[%s3 + $0xc28] sm:$0xf]
  %v848 = vld [vmem:[%s3 + $0xc2c] sm:$0xff]
  %v849 = vld [vmem:[%s3 + $0xc34] sm:$0xff]
  %v850 = vld [vmem:[%s3 + $0xc3c] sm:$0xff]
  %v851 = vld [vmem:[%s3 + $0xc44] sm:$0xff]
  %v852 = vld [vmem:[%s3 + $0xc4c] sm:$0xff]
  %v853 = vld [vmem:[%s3 + $0xc54] sm:$0xff]
  %v854 = vld [vmem:[%s3 + $0xc5c] sm:$0xff]
  %v855 = vld [vmem:[%s3 + $0xc64] sm:$0xff]
  %v856 = vld [vmem:[%s3 + $0xc6c] sm:$0xff]
  %v857 = vld [vmem:[%s3 + $0xc74] sm:$0xf]
  %v858 = vld [vmem:[%s3 + $0xc78] sm:$0xff]
  %v859 = vld [vmem:[%s3 + $0xc80] sm:$0xff]
  %v860 = vld [vmem:[%s3 + $0xc88] sm:$0xff]
  %v861 = vld [vmem:[%s3 + $0xc90] sm:$0xff]
  %v862 = vld [vmem:[%s3 + $0xc98] sm:$0xff]
  %v863 = vld [vmem:[%s3 + $0xca0] sm:$0xff]
  %v864 = vld [vmem:[%s3 + $0xca8] sm:$0xff]
  %v865 = vld [vmem:[%s3 + $0xcb0] sm:$0xff]
  %v866 = vld [vmem:[%s3 + $0xcb8] sm:$0xff]
  %v867 = vld [vmem:[%s3 + $0xcc0] sm:$0xf]
  %v868 = vld [vmem:[%s3 + $0xcc4] sm:$0xff]
  %v869 = vld [vmem:[%s3 + $0xccc] sm:$0xff]
  %v870 = vld [vmem:[%s3 + $0xcd4] sm:$0xff]
  %v871 = vld [vmem:[%s3 + $0xcdc] sm:$0xff]
  %v872 = vld [vmem:[%s3 + $0xce4] sm:$0xff]
  %v873 = vld [vmem:[%s3 + $0xcec] sm:$0xff]
  %v874 = vld [vmem:[%s3 + $0xcf4] sm:$0xff]
  %v875 = vld [vmem:[%s3 + $0xcfc] sm:$0xff]
  %v876 = vld [vmem:[%s3 + $0xd04] sm:$0xff]
  %v877 = vld [vmem:[%s3 + $0xd0c] sm:$0xf]
  %v878 = vld [vmem:[%s3 + $0xd10] sm:$0xff]
  %v879 = vld [vmem:[%s3 + $0xd18] sm:$0xff]
  %v880 = vld [vmem:[%s3 + $0xd20] sm:$0xff]
  %v881 = vld [vmem:[%s3 + $0xd28] sm:$0xff]
  %v882 = vld [vmem:[%s3 + $0xd30] sm:$0xff]
  %v883 = vld [vmem:[%s3 + $0xd38] sm:$0xff]
  %v884 = vld [vmem:[%s3 + $0xd40] sm:$0xff]
  %v885 = vld [vmem:[%s3 + $0xd48] sm:$0xff]
  %v886 = vld [vmem:[%s3 + $0xd50] sm:$0xff]
  %v887 = vld [vmem:[%s3 + $0xd58] sm:$0xf]
  %v888 = vld [vmem:[%s3 + $0xd5c] sm:$0xff]
  %v889 = vld [vmem:[%s3 + $0xd64] sm:$0xff]
  %v890 = vld [vmem:[%s3 + $0xd6c] sm:$0xff]
  %v891 = vld [vmem:[%s3 + $0xd74] sm:$0xff]
  %v892 = vld [vmem:[%s3 + $0xd7c] sm:$0xff]
  %v893 = vld [vmem:[%s3 + $0xd84] sm:$0xff]
  %v894 = vld [vmem:[%s3 + $0xd8c] sm:$0xff]
  %v895 = vld [vmem:[%s3 + $0xd94] sm:$0xff]
  %v896 = vld [vmem:[%s3 + $0xd9c] sm:$0xff]
  %v897 = vld [vmem:[%s3 + $0xda4] sm:$0xf]
  %v898 = vld [vmem:[%s3 + $0xda8] sm:$0xff]
  %v899 = vld [vmem:[%s3 + $0xdb0] sm:$0xff]
  %v900 = vld [vmem:[%s3 + $0xdb8] sm:$0xff]
  %v901 = vld [vmem:[%s3 + $0xdc0] sm:$0xff]
  %v902 = vld [vmem:[%s3 + $0xdc8] sm:$0xff]
  %v903 = vld [vmem:[%s3 + $0xdd0] sm:$0xff]
  %v904 = vld [vmem:[%s3 + $0xdd8] sm:$0xff]
  %v905 = vld [vmem:[%s3 + $0xde0] sm:$0xff]
  %v906 = vld [vmem:[%s3 + $0xde8] sm:$0xff]
  %v907 = vld [vmem:[%s3 + $0xdf0] sm:$0xf]
  %v908 = vld [vmem:[%s3 + $0xdf4] sm:$0xff]
  %v909 = vld [vmem:[%s3 + $0xdfc] sm:$0xff]
  %v910 = vld [vmem:[%s3 + $0xe04] sm:$0xff]
  %v911 = vld [vmem:[%s3 + $0xe0c] sm:$0xff]
  %v912 = vld [vmem:[%s3 + $0xe14] sm:$0xff]
  %v913 = vld [vmem:[%s3 + $0xe1c] sm:$0xff]
  %v914 = vld [vmem:[%s3 + $0xe24] sm:$0xff]
  %v915 = vld [vmem:[%s3 + $0xe2c] sm:$0xff]
  %v916 = vld [vmem:[%s3 + $0xe34] sm:$0xff]
  %v917 = vld [vmem:[%s3 + $0xe3c] sm:$0xf]
  %v918 = vld [vmem:[%s3 + $0xe40] sm:$0xff]
  %v919 = vld [vmem:[%s3 + $0xe48] sm:$0xff]
  %v920 = vld [vmem:[%s3 + $0xe50] sm:$0xff]
  %v921 = vld [vmem:[%s3 + $0xe58] sm:$0xff]
  %v922 = vld [vmem:[%s3 + $0xe60] sm:$0xff]
  %v923 = vld [vmem:[%s3 + $0xe68] sm:$0xff]
  %v924 = vld [vmem:[%s3 + $0xe70] sm:$0xff]
  %v925 = vld [vmem:[%s3 + $0xe78] sm:$0xff]
  %v926 = vld [vmem:[%s3 + $0xe80] sm:$0xff]
  %v927 = vld [vmem:[%s3 + $0xe88] sm:$0xf]
  %v928 = vld [vmem:[%s3 + $0xe8c] sm:$0xff]
  %v929 = vld [vmem:[%s3 + $0xe94] sm:$0xff]
  %v930 = vld [vmem:[%s3 + $0xe9c] sm:$0xff]
  %v931 = vld [vmem:[%s3 + $0xea4] sm:$0xff]
  %v932 = vld [vmem:[%s3 + $0xeac] sm:$0xff]
  %v933 = vld [vmem:[%s3 + $0xeb4] sm:$0xff]
  %v934 = vld [vmem:[%s3 + $0xebc] sm:$0xff]
  %v935 = vld [vmem:[%s3 + $0xec4] sm:$0xff]
  %v936 = vld [vmem:[%s3 + $0xecc] sm:$0xff]
  %v937 = vld [vmem:[%s3 + $0xed4] sm:$0xf]
  %v938 = vld [vmem:[%s3 + $0xed8] sm:$0xff]
  %v939 = vld [vmem:[%s3 + $0xee0] sm:$0xff]
  %v940 = vld [vmem:[%s3 + $0xee8] sm:$0xff]
  %v941 = vld [vmem:[%s3 + $0xef0] sm:$0xff]
  %v942 = vld [vmem:[%s3 + $0xef8] sm:$0xff]
  %v943 = vld [vmem:[%s3 + $0xf00] sm:$0xff]
  %v944 = vld [vmem:[%s3 + $0xf08] sm:$0xff]
  %v945 = vld [vmem:[%s3 + $0xf10] sm:$0xff]
  %v946 = vld [vmem:[%s3 + $0xf18] sm:$0xff]
  %v947 = vld [vmem:[%s3 + $0xf20] sm:$0xf]
  %v948 = vld [vmem:[%s3 + $0xf24] sm:$0xff]
  %v949 = vld [vmem:[%s3 + $0xf2c] sm:$0xff]
  %v950 = vld [vmem:[%s3 + $0xf34] sm:$0xff]
  %v951 = vld [vmem:[%s3 + $0xf3c] sm:$0xff]
  %v952 = vld [vmem:[%s3 + $0xf44] sm:$0xff]
  %v953 = vld [vmem:[%s3 + $0xf4c] sm:$0xff]
  %v954 = vld [vmem:[%s3 + $0xf54] sm:$0xff]
  %v955 = vld [vmem:[%s3 + $0xf5c] sm:$0xff]
  %v956 = vld [vmem:[%s3 + $0xf64] sm:$0xff]
  %v957 = vld [vmem:[%s3 + $0xf6c] sm:$0xf]
  %v958 = vld [vmem:[%s3 + $0xf70] sm:$0xff]
  %v959 = vld [vmem:[%s3 + $0xf78] sm:$0xff]
  %v960 = vld [vmem:[%s3 + $0xf80] sm:$0xff]
  %v961 = vld [vmem:[%s3 + $0xf88] sm:$0xff]
  %v962 = vld [vmem:[%s3 + $0xf90] sm:$0xff]
  %v963 = vld [vmem:[%s3 + $0xf98] sm:$0xff]
  %v964 = vld [vmem:[%s3 + $0xfa0] sm:$0xff]
  %v965 = vld [vmem:[%s3 + $0xfa8] sm:$0xff]
  %v966 = vld [vmem:[%s3 + $0xfb0] sm:$0xff]
  %v967 = vld [vmem:[%s3 + $0xfb8] sm:$0xf]
  %v968 = vld [vmem:[%s3 + $0xfbc] sm:$0xff]
  %v969 = vld [vmem:[%s3 + $0xfc4] sm:$0xff]
  %v970 = vld [vmem:[%s3 + $0xfcc] sm:$0xff]
  %v971 = vld [vmem:[%s3 + $0xfd4] sm:$0xff]
  %v972 = vld [vmem:[%s3 + $0xfdc] sm:$0xff]
  %v973 = vld [vmem:[%s3 + $0xfe4] sm:$0xff]
  %v974 = vld [vmem:[%s3 + $0xfec] sm:$0xff]
  %v975 = vld [vmem:[%s3 + $0xff4] sm:$0xff]
  %v976 = vld [vmem:[%s3 + $0xffc] sm:$0xff]
  %v977 = vld [vmem:[%s3 + $0x1004] sm:$0xf]
  %v978 = vld [vmem:[%s3 + $0x1008] sm:$0xff]
  %v979 = vld [vmem:[%s3 + $0x1010] sm:$0xff]
  %v980 = vld [vmem:[%s3 + $0x1018] sm:$0xff]
  %v981 = vld [vmem:[%s3 + $0x1020] sm:$0xff]
  %v982 = vld [vmem:[%s3 + $0x1028] sm:$0xff]
  %v983 = vld [vmem:[%s3 + $0x1030] sm:$0xff]
  %v984 = vld [vmem:[%s3 + $0x1038] sm:$0xff]
  %v985 = vld [vmem:[%s3 + $0x1040] sm:$0xff]
  %v986 = vld [vmem:[%s3 + $0x1048] sm:$0xff]
  %v987 = vld [vmem:[%s3 + $0x1050] sm:$0xf]
  %v988 = vld [vmem:[%s3 + $0x1054] sm:$0xff]
  %v989 = vld [vmem:[%s3 + $0x105c] sm:$0xff]
  %v990 = vld [vmem:[%s3 + $0x1064] sm:$0xff]
  %v991 = vld [vmem:[%s3 + $0x106c] sm:$0xff]
  %v992 = vld [vmem:[%s3 + $0x1074] sm:$0xff]
  %v993 = vld [vmem:[%s3 + $0x107c] sm:$0xff]
  %v994 = vld [vmem:[%s3 + $0x1084] sm:$0xff]
  %v995 = vld [vmem:[%s3 + $0x108c] sm:$0xff]
  %v996 = vld [vmem:[%s3 + $0x1094] sm:$0xff]
  %v997 = vld [vmem:[%s3 + $0x109c] sm:$0xf]
  %v998 = vld [vmem:[%s3 + $0x10a0] sm:$0xff]
  %v999 = vld [vmem:[%s3 + $0x10a8] sm:$0xff]
  %v1000 = vld [vmem:[%s3 + $0x10b0] sm:$0xff]
  %v1001 = vld [vmem:[%s3 + $0x10b8] sm:$0xff]
  %v1002 = vld [vmem:[%s3 + $0x10c0] sm:$0xff]
  %v1003 = vld [vmem:[%s3 + $0x10c8] sm:$0xff]
  %v1004 = vld [vmem:[%s3 + $0x10d0] sm:$0xff]
  %v1005 = vld [vmem:[%s3 + $0x10d8] sm:$0xff]
  %v1006 = vld [vmem:[%s3 + $0x10e0] sm:$0xff]
  %v1007 = vld [vmem:[%s3 + $0x10e8] sm:$0xf]
  %v1008 = vld [vmem:[%s3 + $0x10ec] sm:$0xff]
  %v1009 = vld [vmem:[%s3 + $0x10f4] sm:$0xff]
  %v1010 = vld [vmem:[%s3 + $0x10fc] sm:$0xff]
  %v1011 = vld [vmem:[%s3 + $0x1104] sm:$0xff]
  %v1012 = vld [vmem:[%s3 + $0x110c] sm:$0xff]
  %v1013 = vld [vmem:[%s3 + $0x1114] sm:$0xff]
  %v1014 = vld [vmem:[%s3 + $0x111c] sm:$0xff]
  %v1015 = vld [vmem:[%s3 + $0x1124] sm:$0xff]
  %v1016 = vld [vmem:[%s3 + $0x112c] sm:$0xff]
  %v1017 = vld [vmem:[%s3 + $0x1134] sm:$0xf]
  %v1018 = vld [vmem:[%s3 + $0x1138] sm:$0xff]
  %v1019 = vld [vmem:[%s3 + $0x1140] sm:$0xff]
  %v1020 = vld [vmem:[%s3 + $0x1148] sm:$0xff]
  %v1021 = vld [vmem:[%s3 + $0x1150] sm:$0xff]
  %v1022 = vld [vmem:[%s3 + $0x1158] sm:$0xff]
  %v1023 = vld [vmem:[%s3 + $0x1160] sm:$0xff]
  %v1024 = vld [vmem:[%s3 + $0x1168] sm:$0xff]
  %v1025 = vld [vmem:[%s3 + $0x1170] sm:$0xff]
  %v1026 = vld [vmem:[%s3 + $0x1178] sm:$0xff]
  %v1027 = vld [vmem:[%s3 + $0x1180] sm:$0xf]
  %v1028 = vld [vmem:[%s3 + $0x1184] sm:$0xff]
  %v1029 = vld [vmem:[%s3 + $0x118c] sm:$0xff]
  %v1030 = vld [vmem:[%s3 + $0x1194] sm:$0xff]
  %v1031 = vld [vmem:[%s3 + $0x119c] sm:$0xff]
  %v1032 = vld [vmem:[%s3 + $0x11a4] sm:$0xff]
  %v1033 = vld [vmem:[%s3 + $0x11ac] sm:$0xff]
  %v1034 = vld [vmem:[%s3 + $0x11b4] sm:$0xff]
  %v1035 = vld [vmem:[%s3 + $0x11bc] sm:$0xff]
  %v1036 = vld [vmem:[%s3 + $0x11c4] sm:$0xff]
  %v1037 = vld [vmem:[%s3 + $0x11cc] sm:$0xf]
  %v1038 = vld [vmem:[%s3 + $0x11d0] sm:$0xff]
  %v1039 = vld [vmem:[%s3 + $0x11d8] sm:$0xff]
  %v1040 = vld [vmem:[%s3 + $0x11e0] sm:$0xff]
  %v1041 = vld [vmem:[%s3 + $0x11e8] sm:$0xff]
  %v1042 = vld [vmem:[%s3 + $0x11f0] sm:$0xff]
  %v1043 = vld [vmem:[%s3 + $0x11f8] sm:$0xff]
  %v1044 = vld [vmem:[%s3 + $0x1200] sm:$0xff]
  %v1045 = vld [vmem:[%s3 + $0x1208] sm:$0xff]
  %v1046 = vld [vmem:[%s3 + $0x1210] sm:$0xff]
  %v1047 = vld [vmem:[%s3 + $0x1218] sm:$0xf]
  %v1048 = vld [vmem:[%s3 + $0x121c] sm:$0xff]
  %v1049 = vld [vmem:[%s3 + $0x1224] sm:$0xff]
  %v1050 = vld [vmem:[%s3 + $0x122c] sm:$0xff]
  %v1051 = vld [vmem:[%s3 + $0x1234] sm:$0xff]
  %v1052 = vld [vmem:[%s3 + $0x123c] sm:$0xff]
  %v1053 = vld [vmem:[%s3 + $0x1244] sm:$0xff]
  %v1054 = vld [vmem:[%s3 + $0x124c] sm:$0xff]
  %v1055 = vld [vmem:[%s3 + $0x1254] sm:$0xff]
  %v1056 = vld [vmem:[%s3 + $0x125c] sm:$0xff]
  %v1057 = vld [vmem:[%s3 + $0x1264] sm:$0xf]
  %v1058 = vld [vmem:[%s3 + $0x1268] sm:$0xff]
  %v1059 = vld [vmem:[%s3 + $0x1270] sm:$0xff]
  %v1060 = vld [vmem:[%s3 + $0x1278] sm:$0xff]
  %v1061 = vld [vmem:[%s3 + $0x1280] sm:$0xff]
  %v1062 = vld [vmem:[%s3 + $0x1288] sm:$0xff]
  %v1063 = vld [vmem:[%s3 + $0x1290] sm:$0xff]
  %v1064 = vld [vmem:[%s3 + $0x1298] sm:$0xff]
  %v1065 = vld [vmem:[%s3 + $0x12a0] sm:$0xff]
  %v1066 = vld [vmem:[%s3 + $0x12a8] sm:$0xff]
  %v1067 = vld [vmem:[%s3 + $0x12b0] sm:$0xf]
  %v1068 = vld [vmem:[%s3 + $0x12b4] sm:$0xff]
  %v1069 = vld [vmem:[%s3 + $0x12bc] sm:$0xff]
  %v1070 = vld [vmem:[%s3 + $0x12c4] sm:$0xff]
  %v1071 = vld [vmem:[%s3 + $0x12cc] sm:$0xff]
  %v1072 = vld [vmem:[%s3 + $0x12d4] sm:$0xff]
  %v1073 = vld [vmem:[%s3 + $0x12dc] sm:$0xff]
  %v1074 = vld [vmem:[%s3 + $0x12e4] sm:$0xff]
  %v1075 = vld [vmem:[%s3 + $0x12ec] sm:$0xff]
  %v1076 = vld [vmem:[%s3 + $0x12f4] sm:$0xff]
  %v1077 = vld [vmem:[%s3 + $0x12fc] sm:$0xf]
  %v1078 = vld [vmem:[%s4] sm:$0xff]
  %v1079 = vld [vmem:[%s4 + $0x8] sm:$0xff]
  %v1080 = vld [vmem:[%s4 + $0x10] sm:$0x7]
  %v1084 = vlaneseq
  %v1085 = vshrl.u32 %v1084, 7
  %v1086 = vsub.s32 0, %v1085
  %v1087 = vrot.slane %v1078, %v1086
  %v1088 = vlaneseq
  %v1089 = vshrl.u32 %v1088, 7
  %v1090 = vsub.s32 1, %v1089
  %v1091 = vrot.slane %v1078, %v1090
  %v1092 = vlaneseq
  %v1093 = vshrl.u32 %v1092, 7
  %v1094 = vsub.s32 2, %v1093
  %v1095 = vrot.slane %v1078, %v1094
  %v1096 = vlaneseq
  %v1097 = vshrl.u32 %v1096, 7
  %v1098 = vsub.s32 3, %v1097
  %v1099 = vrot.slane %v1078, %v1098
  %v1100 = vlaneseq
  %v1101 = vshrl.u32 %v1100, 7
  %v1102 = vsub.s32 4, %v1101
  %v1103 = vrot.slane %v1078, %v1102
  %v1104 = vlaneseq
  %v1105 = vshrl.u32 %v1104, 7
  %v1106 = vsub.s32 5, %v1105
  %v1107 = vrot.slane %v1078, %v1106
  %v1108 = vlaneseq
  %v1109 = vshrl.u32 %v1108, 7
  %v1110 = vsub.s32 6, %v1109
  %v1111 = vrot.slane %v1078, %v1110
  %v1112 = vlaneseq
  %v1113 = vshrl.u32 %v1112, 7
  %v1114 = vsub.s32 7, %v1113
  %v1115 = vrot.slane %v1078, %v1114
  %v1116 = vlaneseq
  %v1117 = vshrl.u32 %v1116, 7
  %v1118 = vsub.s32 0, %v1117
  %v1119 = vrot.slane %v1079, %v1118
  %v1120 = vlaneseq
  %v1121 = vshrl.u32 %v1120, 7
  %v1122 = vsub.s32 1, %v1121
  %v1123 = vrot.slane %v1079, %v1122
  %v1124 = vlaneseq
  %v1125 = vshrl.u32 %v1124, 7
  %v1126 = vsub.s32 2, %v1125
  %v1127 = vrot.slane %v1079, %v1126
  %v1128 = vlaneseq
  %v1129 = vshrl.u32 %v1128, 7
  %v1130 = vsub.s32 3, %v1129
  %v1131 = vrot.slane %v1079, %v1130
  %v1132 = vlaneseq
  %v1133 = vshrl.u32 %v1132, 7
  %v1134 = vsub.s32 4, %v1133
  %v1135 = vrot.slane %v1079, %v1134
  %v1136 = vlaneseq
  %v1137 = vshrl.u32 %v1136, 7
  %v1138 = vsub.s32 5, %v1137
  %v1139 = vrot.slane %v1079, %v1138
  %v1140 = vlaneseq
  %v1141 = vshrl.u32 %v1140, 7
  %v1142 = vsub.s32 6, %v1141
  %v1143 = vrot.slane %v1079, %v1142
  %v1144 = vlaneseq
  %v1145 = vshrl.u32 %v1144, 7
  %v1146 = vsub.s32 7, %v1145
  %v1147 = vrot.slane %v1079, %v1146
  %v1148 = vlaneseq
  %v1149 = vshrl.u32 %v1148, 7
  %v1150 = vsub.s32 0, %v1149
  %v1151 = vrot.slane %v1080, %v1150
  %v1152 = vlaneseq
  %v1153 = vshrl.u32 %v1152, 7
  %v1154 = vsub.s32 1, %v1153
  %v1155 = vrot.slane %v1080, %v1154
  %v1156 = vlaneseq
  %v1157 = vshrl.u32 %v1156, 7
  %v1158 = vsub.s32 2, %v1157
  %v1159 = vrot.slane %v1080, %v1158
  %v1195 = vunpack.c.l.b16 %v422
  %v1196 = vunpack.c.h.b16 %v422
  %v1197 = vunpack.c.l.b16 %v423
  %v1198 = vunpack.c.h.b16 %v423
  %v1199 = vunpack.c.l.b16 %v424
  %v1200 = vunpack.c.h.b16 %v424
  %v1201 = vunpack.c.l.b16 %v425
  %v1202 = vunpack.c.h.b16 %v425
  %v1203 = vunpack.c.l.b16 %v426
  %v1204 = vunpack.c.h.b16 %v426
  %v1205 = vunpack.c.l.b16 %v427
  %v1206 = vunpack.c.h.b16 %v427
  %v1207 = vunpack.c.l.b16 %v428
  %v1208 = vunpack.c.h.b16 %v428
  %v1209 = vunpack.c.l.b16 %v429
  %v1210 = vunpack.c.h.b16 %v429
  %v1211 = vunpack.c.l.b16 %v430
  %v1212 = vunpack.c.h.b16 %v430
  %v1213 = vunpack.c.l.b16 %v431
  %v1214 = vunpack.c.h.b16 %v431
  %v1215 = vunpack.c.l.b16 %v432
  %v1216 = vunpack.c.h.b16 %v432
  %v1217 = vunpack.c.l.b16 %v433
  %v1218 = vunpack.c.h.b16 %v433
  %v1219 = vunpack.c.l.b16 %v434
  %v1220 = vunpack.c.h.b16 %v434
  %v1221 = vunpack.c.l.b16 %v435
  %v1222 = vunpack.c.h.b16 %v435
  %v1223 = vunpack.c.l.b16 %v436
  %v1224 = vunpack.c.h.b16 %v436
  %v1225 = vunpack.c.l.b16 %v437
  %v1226 = vunpack.c.h.b16 %v437
  %v1227 = vpack.c.b16 %v1199, %v1195
  %v1228 = vpack.c.b16 %v1200, %v1196
  %v1229 = vpack.c.b16 %v1201, %v1197
  %v1230 = vpack.c.b16 %v1202, %v1198
  %v1231 = vpack.c.b16 %v1207, %v1203
  %v1232 = vpack.c.b16 %v1208, %v1204
  %v1233 = vpack.c.b16 %v1209, %v1205
  %v1234 = vpack.c.b16 %v1210, %v1206
  %v1235 = vpack.c.b16 %v1215, %v1211
  %v1236 = vpack.c.b16 %v1216, %v1212
  %v1237 = vpack.c.b16 %v1217, %v1213
  %v1238 = vpack.c.b16 %v1218, %v1214
  %v1239 = vpack.c.b16 %v1223, %v1219
  %v1240 = vpack.c.b16 %v1224, %v1220
  %v1241 = vpack.c.b16 %v1225, %v1221
  %v1242 = vpack.c.b16 %v1226, %v1222
  %v1899 = vunpack.c.l.b16 %v438
  %v1900 = vunpack.c.h.b16 %v438
  %v1901 = vunpack.c.l.b16 %v439
  %v1902 = vunpack.c.h.b16 %v439
  %v1903 = vunpack.c.l.b16 %v440
  %v1904 = vunpack.c.h.b16 %v440
  %v1905 = vunpack.c.l.b16 %v441
  %v1906 = vunpack.c.h.b16 %v441
  %v1907 = vunpack.c.l.b16 %v442
  %v1908 = vunpack.c.h.b16 %v442
  %v1909 = vunpack.c.l.b16 %v443
  %v1910 = vunpack.c.h.b16 %v443
  %v1911 = vunpack.c.l.b16 %v444
  %v1912 = vunpack.c.h.b16 %v444
  %v1913 = vunpack.c.l.b16 %v445
  %v1914 = vunpack.c.h.b16 %v445
  %v1915 = vunpack.c.l.b16 %v446
  %v1916 = vunpack.c.h.b16 %v446
  %v1917 = vunpack.c.l.b16 %v447
  %v1918 = vunpack.c.l.b16 %v448
  %v1919 = vunpack.c.h.b16 %v448
  %v1920 = vunpack.c.l.b16 %v449
  %v1921 = vunpack.c.h.b16 %v449
  %v1922 = vunpack.c.l.b16 %v450
  %v1923 = vunpack.c.h.b16 %v450
  %v1924 = vunpack.c.l.b16 %v451
  %v1925 = vunpack.c.h.b16 %v451
  %v1926 = vunpack.c.l.b16 %v452
  %v1927 = vunpack.c.h.b16 %v452
  %v1928 = vunpack.c.l.b16 %v453
  %v1929 = vunpack.c.h.b16 %v453
  %v1930 = vunpack.c.l.b16 %v454
  %v1931 = vunpack.c.h.b16 %v454
  %v1932 = vunpack.c.l.b16 %v455
  %v1933 = vunpack.c.h.b16 %v455
  %v1934 = vunpack.c.l.b16 %v456
  %v1935 = vunpack.c.h.b16 %v456
  %v1936 = vunpack.c.l.b16 %v457
  %v1937 = vunpack.c.l.b16 %v458
  %v1938 = vunpack.c.h.b16 %v458
  %v1939 = vunpack.c.l.b16 %v459
  %v1940 = vunpack.c.h.b16 %v459
  %v1941 = vunpack.c.l.b16 %v460
  %v1942 = vunpack.c.h.b16 %v460
  %v1943 = vunpack.c.l.b16 %v461
  %v1944 = vunpack.c.h.b16 %v461
  %v1945 = vunpack.c.l.b16 %v462
  %v1946 = vunpack.c.h.b16 %v462
  %v1947 = vunpack.c.l.b16 %v463
  %v1948 = vunpack.c.h.b16 %v463
  %v1949 = vunpack.c.l.b16 %v464
  %v1950 = vunpack.c.h.b16 %v464
  %v1951 = vunpack.c.l.b16 %v465
  %v1952 = vunpack.c.h.b16 %v465
  %v1953 = vunpack.c.l.b16 %v466
  %v1954 = vunpack.c.h.b16 %v466
  %v1955 = vunpack.c.l.b16 %v467
  %v1956 = vunpack.c.l.b16 %v468
  %v1957 = vunpack.c.h.b16 %v468
  %v1958 = vunpack.c.l.b16 %v469
  %v1959 = vunpack.c.h.b16 %v469
  %v1960 = vunpack.c.l.b16 %v470
  %v1961 = vunpack.c.h.b16 %v470
  %v1962 = vunpack.c.l.b16 %v471
  %v1963 = vunpack.c.h.b16 %v471
  %v1964 = vunpack.c.l.b16 %v472
  %v1965 = vunpack.c.h.b16 %v472
  %v1966 = vunpack.c.l.b16 %v473
  %v1967 = vunpack.c.h.b16 %v473
  %v1968 = vunpack.c.l.b16 %v474
  %v1969 = vunpack.c.h.b16 %v474
  %v1970 = vunpack.c.l.b16 %v475
  %v1971 = vunpack.c.h.b16 %v475
  %v1972 = vunpack.c.l.b16 %v476
  %v1973 = vunpack.c.h.b16 %v476
  %v1974 = vunpack.c.l.b16 %v477
  %v1975 = vunpack.c.l.b16 %v478
  %v1976 = vunpack.c.h.b16 %v478
  %v1977 = vunpack.c.l.b16 %v479
  %v1978 = vunpack.c.h.b16 %v479
  %v1979 = vunpack.c.l.b16 %v480
  %v1980 = vunpack.c.h.b16 %v480
  %v1981 = vunpack.c.l.b16 %v481
  %v1982 = vunpack.c.h.b16 %v481
  %v1983 = vunpack.c.l.b16 %v482
  %v1984 = vunpack.c.h.b16 %v482
  %v1985 = vunpack.c.l.b16 %v483
  %v1986 = vunpack.c.h.b16 %v483
  %v1987 = vunpack.c.l.b16 %v484
  %v1988 = vunpack.c.h.b16 %v484
  %v1989 = vunpack.c.l.b16 %v485
  %v1990 = vunpack.c.h.b16 %v485
  %v1991 = vunpack.c.l.b16 %v486
  %v1992 = vunpack.c.h.b16 %v486
  %v1993 = vunpack.c.l.b16 %v487
  %v1994 = vunpack.c.l.b16 %v488
  %v1995 = vunpack.c.h.b16 %v488
  %v1996 = vunpack.c.l.b16 %v489
  %v1997 = vunpack.c.h.b16 %v489
  %v1998 = vunpack.c.l.b16 %v490
  %v1999 = vunpack.c.h.b16 %v490
  %v2000 = vunpack.c.l.b16 %v491
  %v2001 = vunpack.c.h.b16 %v491
  %v2002 = vunpack.c.l.b16 %v492
  %v2003 = vunpack.c.h.b16 %v492
  %v2004 = vunpack.c.l.b16 %v493
  %v2005 = vunpack.c.h.b16 %v493
  %v2006 = vunpack.c.l.b16 %v494
  %v2007 = vunpack.c.h.b16 %v494
  %v2008 = vunpack.c.l.b16 %v495
  %v2009 = vunpack.c.h.b16 %v495
  %v2010 = vunpack.c.l.b16 %v496
  %v2011 = vunpack.c.h.b16 %v496
  %v2012 = vunpack.c.l.b16 %v497
  %v2013 = vunpack.c.l.b16 %v498
  %v2014 = vunpack.c.h.b16 %v498
  %v2015 = vunpack.c.l.b16 %v499
  %v2016 = vunpack.c.h.b16 %v499
  %v2017 = vunpack.c.l.b16 %v500
  %v2018 = vunpack.c.h.b16 %v500
  %v2019 = vunpack.c.l.b16 %v501
  %v2020 = vunpack.c.h.b16 %v501
  %v2021 = vunpack.c.l.b16 %v502
  %v2022 = vunpack.c.h.b16 %v502
  %v2023 = vunpack.c.l.b16 %v503
  %v2024 = vunpack.c.h.b16 %v503
  %v2025 = vunpack.c.l.b16 %v504
  %v2026 = vunpack.c.h.b16 %v504
  %v2027 = vunpack.c.l.b16 %v505
  %v2028 = vunpack.c.h.b16 %v505
  %v2029 = vunpack.c.l.b16 %v506
  %v2030 = vunpack.c.h.b16 %v506
  %v2031 = vunpack.c.l.b16 %v507
  %v2032 = vunpack.c.l.b16 %v508
  %v2033 = vunpack.c.h.b16 %v508
  %v2034 = vunpack.c.l.b16 %v509
  %v2035 = vunpack.c.h.b16 %v509
  %v2036 = vunpack.c.l.b16 %v510
  %v2037 = vunpack.c.h.b16 %v510
  %v2038 = vunpack.c.l.b16 %v511
  %v2039 = vunpack.c.h.b16 %v511
  %v2040 = vunpack.c.l.b16 %v512
  %v2041 = vunpack.c.h.b16 %v512
  %v2042 = vunpack.c.l.b16 %v513
  %v2043 = vunpack.c.h.b16 %v513
  %v2044 = vunpack.c.l.b16 %v514
  %v2045 = vunpack.c.h.b16 %v514
  %v2046 = vunpack.c.l.b16 %v515
  %v2047 = vunpack.c.h.b16 %v515
  %v2048 = vunpack.c.l.b16 %v516
  %v2049 = vunpack.c.h.b16 %v516
  %v2050 = vunpack.c.l.b16 %v517
  %v2051 = vunpack.c.l.b16 %v518
  %v2052 = vunpack.c.h.b16 %v518
  %v2053 = vunpack.c.l.b16 %v519
  %v2054 = vunpack.c.h.b16 %v519
  %v2055 = vunpack.c.l.b16 %v520
  %v2056 = vunpack.c.h.b16 %v520
  %v2057 = vunpack.c.l.b16 %v521
  %v2058 = vunpack.c.h.b16 %v521
  %v2059 = vunpack.c.l.b16 %v522
  %v2060 = vunpack.c.h.b16 %v522
  %v2061 = vunpack.c.l.b16 %v523
  %v2062 = vunpack.c.h.b16 %v523
  %v2063 = vunpack.c.l.b16 %v524
  %v2064 = vunpack.c.h.b16 %v524
  %v2065 = vunpack.c.l.b16 %v525
  %v2066 = vunpack.c.h.b16 %v525
  %v2067 = vunpack.c.l.b16 %v526
  %v2068 = vunpack.c.h.b16 %v526
  %v2069 = vunpack.c.l.b16 %v527
  %v2070 = vunpack.c.l.b16 %v528
  %v2071 = vunpack.c.h.b16 %v528
  %v2072 = vunpack.c.l.b16 %v529
  %v2073 = vunpack.c.h.b16 %v529
  %v2074 = vunpack.c.l.b16 %v530
  %v2075 = vunpack.c.h.b16 %v530
  %v2076 = vunpack.c.l.b16 %v531
  %v2077 = vunpack.c.h.b16 %v531
  %v2078 = vunpack.c.l.b16 %v532
  %v2079 = vunpack.c.h.b16 %v532
  %v2080 = vunpack.c.l.b16 %v533
  %v2081 = vunpack.c.h.b16 %v533
  %v2082 = vunpack.c.l.b16 %v534
  %v2083 = vunpack.c.h.b16 %v534
  %v2084 = vunpack.c.l.b16 %v535
  %v2085 = vunpack.c.h.b16 %v535
  %v2086 = vunpack.c.l.b16 %v536
  %v2087 = vunpack.c.h.b16 %v536
  %v2088 = vunpack.c.l.b16 %v537
  %v2089 = vunpack.c.l.b16 %v538
  %v2090 = vunpack.c.h.b16 %v538
  %v2091 = vunpack.c.l.b16 %v539
  %v2092 = vunpack.c.h.b16 %v539
  %v2093 = vunpack.c.l.b16 %v540
  %v2094 = vunpack.c.h.b16 %v540
  %v2095 = vunpack.c.l.b16 %v541
  %v2096 = vunpack.c.h.b16 %v541
  %v2097 = vunpack.c.l.b16 %v542
  %v2098 = vunpack.c.h.b16 %v542
  %v2099 = vunpack.c.l.b16 %v543
  %v2100 = vunpack.c.h.b16 %v543
  %v2101 = vunpack.c.l.b16 %v544
  %v2102 = vunpack.c.h.b16 %v544
  %v2103 = vunpack.c.l.b16 %v545
  %v2104 = vunpack.c.h.b16 %v545
  %v2105 = vunpack.c.l.b16 %v546
  %v2106 = vunpack.c.h.b16 %v546
  %v2107 = vunpack.c.l.b16 %v547
  %v2108 = vunpack.c.l.b16 %v548
  %v2109 = vunpack.c.h.b16 %v548
  %v2110 = vunpack.c.l.b16 %v549
  %v2111 = vunpack.c.h.b16 %v549
  %v2112 = vunpack.c.l.b16 %v550
  %v2113 = vunpack.c.h.b16 %v550
  %v2114 = vunpack.c.l.b16 %v551
  %v2115 = vunpack.c.h.b16 %v551
  %v2116 = vunpack.c.l.b16 %v552
  %v2117 = vunpack.c.h.b16 %v552
  %v2118 = vunpack.c.l.b16 %v553
  %v2119 = vunpack.c.h.b16 %v553
  %v2120 = vunpack.c.l.b16 %v554
  %v2121 = vunpack.c.h.b16 %v554
  %v2122 = vunpack.c.l.b16 %v555
  %v2123 = vunpack.c.h.b16 %v555
  %v2124 = vunpack.c.l.b16 %v556
  %v2125 = vunpack.c.h.b16 %v556
  %v2126 = vunpack.c.l.b16 %v557
  %v2127 = vunpack.c.l.b16 %v558
  %v2128 = vunpack.c.h.b16 %v558
  %v2129 = vunpack.c.l.b16 %v559
  %v2130 = vunpack.c.h.b16 %v559
  %v2131 = vunpack.c.l.b16 %v560
  %v2132 = vunpack.c.h.b16 %v560
  %v2133 = vunpack.c.l.b16 %v561
  %v2134 = vunpack.c.h.b16 %v561
  %v2135 = vunpack.c.l.b16 %v562
  %v2136 = vunpack.c.h.b16 %v562
  %v2137 = vunpack.c.l.b16 %v563
  %v2138 = vunpack.c.h.b16 %v563
  %v2139 = vunpack.c.l.b16 %v564
  %v2140 = vunpack.c.h.b16 %v564
  %v2141 = vunpack.c.l.b16 %v565
  %v2142 = vunpack.c.h.b16 %v565
  %v2143 = vunpack.c.l.b16 %v566
  %v2144 = vunpack.c.h.b16 %v566
  %v2145 = vunpack.c.l.b16 %v567
  %v2146 = vunpack.c.l.b16 %v568
  %v2147 = vunpack.c.h.b16 %v568
  %v2148 = vunpack.c.l.b16 %v569
  %v2149 = vunpack.c.h.b16 %v569
  %v2150 = vunpack.c.l.b16 %v570
  %v2151 = vunpack.c.h.b16 %v570
  %v2152 = vunpack.c.l.b16 %v571
  %v2153 = vunpack.c.h.b16 %v571
  %v2154 = vunpack.c.l.b16 %v572
  %v2155 = vunpack.c.h.b16 %v572
  %v2156 = vunpack.c.l.b16 %v573
  %v2157 = vunpack.c.h.b16 %v573
  %v2158 = vunpack.c.l.b16 %v574
  %v2159 = vunpack.c.h.b16 %v574
  %v2160 = vunpack.c.l.b16 %v575
  %v2161 = vunpack.c.h.b16 %v575
  %v2162 = vunpack.c.l.b16 %v576
  %v2163 = vunpack.c.h.b16 %v576
  %v2164 = vunpack.c.l.b16 %v577
  %v2165 = vunpack.c.l.b16 %v578
  %v2166 = vunpack.c.h.b16 %v578
  %v2167 = vunpack.c.l.b16 %v579
  %v2168 = vunpack.c.h.b16 %v579
  %v2169 = vunpack.c.l.b16 %v580
  %v2170 = vunpack.c.h.b16 %v580
  %v2171 = vunpack.c.l.b16 %v581
  %v2172 = vunpack.c.h.b16 %v581
  %v2173 = vunpack.c.l.b16 %v582
  %v2174 = vunpack.c.h.b16 %v582
  %v2175 = vunpack.c.l.b16 %v583
  %v2176 = vunpack.c.h.b16 %v583
  %v2177 = vunpack.c.l.b16 %v584
  %v2178 = vunpack.c.h.b16 %v584
  %v2179 = vunpack.c.l.b16 %v585
  %v2180 = vunpack.c.h.b16 %v585
  %v2181 = vunpack.c.l.b16 %v586
  %v2182 = vunpack.c.h.b16 %v586
  %v2183 = vunpack.c.l.b16 %v587
  %v2184 = vunpack.c.l.b16 %v588
  %v2185 = vunpack.c.h.b16 %v588
  %v2186 = vunpack.c.l.b16 %v589
  %v2187 = vunpack.c.h.b16 %v589
  %v2188 = vunpack.c.l.b16 %v590
  %v2189 = vunpack.c.h.b16 %v590
  %v2190 = vunpack.c.l.b16 %v591
  %v2191 = vunpack.c.h.b16 %v591
  %v2192 = vunpack.c.l.b16 %v592
  %v2193 = vunpack.c.h.b16 %v592
  %v2194 = vunpack.c.l.b16 %v593
  %v2195 = vunpack.c.h.b16 %v593
  %v2196 = vunpack.c.l.b16 %v594
  %v2197 = vunpack.c.h.b16 %v594
  %v2198 = vunpack.c.l.b16 %v595
  %v2199 = vunpack.c.h.b16 %v595
  %v2200 = vunpack.c.l.b16 %v596
  %v2201 = vunpack.c.h.b16 %v596
  %v2202 = vunpack.c.l.b16 %v597
  %v2203 = vunpack.c.l.b16 %v598
  %v2204 = vunpack.c.h.b16 %v598
  %v2205 = vunpack.c.l.b16 %v599
  %v2206 = vunpack.c.h.b16 %v599
  %v2207 = vunpack.c.l.b16 %v600
  %v2208 = vunpack.c.h.b16 %v600
  %v2209 = vunpack.c.l.b16 %v601
  %v2210 = vunpack.c.h.b16 %v601
  %v2211 = vunpack.c.l.b16 %v602
  %v2212 = vunpack.c.h.b16 %v602
  %v2213 = vunpack.c.l.b16 %v603
  %v2214 = vunpack.c.h.b16 %v603
  %v2215 = vunpack.c.l.b16 %v604
  %v2216 = vunpack.c.h.b16 %v604
  %v2217 = vunpack.c.l.b16 %v605
  %v2218 = vunpack.c.h.b16 %v605
  %v2219 = vunpack.c.l.b16 %v606
  %v2220 = vunpack.c.h.b16 %v606
  %v2221 = vunpack.c.l.b16 %v607
  %v2222 = vunpack.c.l.b16 %v608
  %v2223 = vunpack.c.h.b16 %v608
  %v2224 = vunpack.c.l.b16 %v609
  %v2225 = vunpack.c.h.b16 %v609
  %v2226 = vunpack.c.l.b16 %v610
  %v2227 = vunpack.c.h.b16 %v610
  %v2228 = vunpack.c.l.b16 %v611
  %v2229 = vunpack.c.h.b16 %v611
  %v2230 = vunpack.c.l.b16 %v612
  %v2231 = vunpack.c.h.b16 %v612
  %v2232 = vunpack.c.l.b16 %v613
  %v2233 = vunpack.c.h.b16 %v613
  %v2234 = vunpack.c.l.b16 %v614
  %v2235 = vunpack.c.h.b16 %v614
  %v2236 = vunpack.c.l.b16 %v615
  %v2237 = vunpack.c.h.b16 %v615
  %v2238 = vunpack.c.l.b16 %v616
  %v2239 = vunpack.c.h.b16 %v616
  %v2240 = vunpack.c.l.b16 %v617
  %v2241 = vunpack.c.l.b16 %v618
  %v2242 = vunpack.c.h.b16 %v618
  %v2243 = vunpack.c.l.b16 %v619
  %v2244 = vunpack.c.h.b16 %v619
  %v2245 = vunpack.c.l.b16 %v620
  %v2246 = vunpack.c.h.b16 %v620
  %v2247 = vunpack.c.l.b16 %v621
  %v2248 = vunpack.c.h.b16 %v621
  %v2249 = vunpack.c.l.b16 %v622
  %v2250 = vunpack.c.h.b16 %v622
  %v2251 = vunpack.c.l.b16 %v623
  %v2252 = vunpack.c.h.b16 %v623
  %v2253 = vunpack.c.l.b16 %v624
  %v2254 = vunpack.c.h.b16 %v624
  %v2255 = vunpack.c.l.b16 %v625
  %v2256 = vunpack.c.h.b16 %v625
  %v2257 = vunpack.c.l.b16 %v626
  %v2258 = vunpack.c.h.b16 %v626
  %v2259 = vunpack.c.l.b16 %v627
  %v2260 = vunpack.c.l.b16 %v628
  %v2261 = vunpack.c.h.b16 %v628
  %v2262 = vunpack.c.l.b16 %v629
  %v2263 = vunpack.c.h.b16 %v629
  %v2264 = vunpack.c.l.b16 %v630
  %v2265 = vunpack.c.h.b16 %v630
  %v2266 = vunpack.c.l.b16 %v631
  %v2267 = vunpack.c.h.b16 %v631
  %v2268 = vunpack.c.l.b16 %v632
  %v2269 = vunpack.c.h.b16 %v632
  %v2270 = vunpack.c.l.b16 %v633
  %v2271 = vunpack.c.h.b16 %v633
  %v2272 = vunpack.c.l.b16 %v634
  %v2273 = vunpack.c.h.b16 %v634
  %v2274 = vunpack.c.l.b16 %v635
  %v2275 = vunpack.c.h.b16 %v635
  %v2276 = vunpack.c.l.b16 %v636
  %v2277 = vunpack.c.h.b16 %v636
  %v2278 = vunpack.c.l.b16 %v637
  %v2279 = vunpack.c.l.b16 %v638
  %v2280 = vunpack.c.h.b16 %v638
  %v2281 = vunpack.c.l.b16 %v639
  %v2282 = vunpack.c.h.b16 %v639
  %v2283 = vunpack.c.l.b16 %v640
  %v2284 = vunpack.c.h.b16 %v640
  %v2285 = vunpack.c.l.b16 %v641
  %v2286 = vunpack.c.h.b16 %v641
  %v2287 = vunpack.c.l.b16 %v642
  %v2288 = vunpack.c.h.b16 %v642
  %v2289 = vunpack.c.l.b16 %v643
  %v2290 = vunpack.c.h.b16 %v643
  %v2291 = vunpack.c.l.b16 %v644
  %v2292 = vunpack.c.h.b16 %v644
  %v2293 = vunpack.c.l.b16 %v645
  %v2294 = vunpack.c.h.b16 %v645
  %v2295 = vunpack.c.l.b16 %v646
  %v2296 = vunpack.c.h.b16 %v646
  %v2297 = vunpack.c.l.b16 %v647
  %v2298 = vunpack.c.l.b16 %v648
  %v2299 = vunpack.c.h.b16 %v648
  %v2300 = vunpack.c.l.b16 %v649
  %v2301 = vunpack.c.h.b16 %v649
  %v2302 = vunpack.c.l.b16 %v650
  %v2303 = vunpack.c.h.b16 %v650
  %v2304 = vunpack.c.l.b16 %v651
  %v2305 = vunpack.c.h.b16 %v651
  %v2306 = vunpack.c.l.b16 %v652
  %v2307 = vunpack.c.h.b16 %v652
  %v2308 = vunpack.c.l.b16 %v653
  %v2309 = vunpack.c.h.b16 %v653
  %v2310 = vunpack.c.l.b16 %v654
  %v2311 = vunpack.c.h.b16 %v654
  %v2312 = vunpack.c.l.b16 %v655
  %v2313 = vunpack.c.h.b16 %v655
  %v2314 = vunpack.c.l.b16 %v656
  %v2315 = vunpack.c.h.b16 %v656
  %v2316 = vunpack.c.l.b16 %v657
  %v2317 = vunpack.c.l.b16 %v658
  %v2318 = vunpack.c.h.b16 %v658
  %v2319 = vunpack.c.l.b16 %v659
  %v2320 = vunpack.c.h.b16 %v659
  %v2321 = vunpack.c.l.b16 %v660
  %v2322 = vunpack.c.h.b16 %v660
  %v2323 = vunpack.c.l.b16 %v661
  %v2324 = vunpack.c.h.b16 %v661
  %v2325 = vunpack.c.l.b16 %v662
  %v2326 = vunpack.c.h.b16 %v662
  %v2327 = vunpack.c.l.b16 %v663
  %v2328 = vunpack.c.h.b16 %v663
  %v2329 = vunpack.c.l.b16 %v664
  %v2330 = vunpack.c.h.b16 %v664
  %v2331 = vunpack.c.l.b16 %v665
  %v2332 = vunpack.c.h.b16 %v665
  %v2333 = vunpack.c.l.b16 %v666
  %v2334 = vunpack.c.h.b16 %v666
  %v2335 = vunpack.c.l.b16 %v667
  %v2336 = vunpack.c.l.b16 %v668
  %v2337 = vunpack.c.h.b16 %v668
  %v2338 = vunpack.c.l.b16 %v669
  %v2339 = vunpack.c.h.b16 %v669
  %v2340 = vunpack.c.l.b16 %v670
  %v2341 = vunpack.c.h.b16 %v670
  %v2342 = vunpack.c.l.b16 %v671
  %v2343 = vunpack.c.h.b16 %v671
  %v2344 = vunpack.c.l.b16 %v672
  %v2345 = vunpack.c.h.b16 %v672
  %v2346 = vunpack.c.l.b16 %v673
  %v2347 = vunpack.c.h.b16 %v673
  %v2348 = vunpack.c.l.b16 %v674
  %v2349 = vunpack.c.h.b16 %v674
  %v2350 = vunpack.c.l.b16 %v675
  %v2351 = vunpack.c.h.b16 %v675
  %v2352 = vunpack.c.l.b16 %v676
  %v2353 = vunpack.c.h.b16 %v676
  %v2354 = vunpack.c.l.b16 %v677
  %v2355 = vunpack.c.l.b16 %v678
  %v2356 = vunpack.c.h.b16 %v678
  %v2357 = vunpack.c.l.b16 %v679
  %v2358 = vunpack.c.h.b16 %v679
  %v2359 = vunpack.c.l.b16 %v680
  %v2360 = vunpack.c.h.b16 %v680
  %v2361 = vunpack.c.l.b16 %v681
  %v2362 = vunpack.c.h.b16 %v681
  %v2363 = vunpack.c.l.b16 %v682
  %v2364 = vunpack.c.h.b16 %v682
  %v2365 = vunpack.c.l.b16 %v683
  %v2366 = vunpack.c.h.b16 %v683
  %v2367 = vunpack.c.l.b16 %v684
  %v2368 = vunpack.c.h.b16 %v684
  %v2369 = vunpack.c.l.b16 %v685
  %v2370 = vunpack.c.h.b16 %v685
  %v2371 = vunpack.c.l.b16 %v686
  %v2372 = vunpack.c.h.b16 %v686
  %v2373 = vunpack.c.l.b16 %v687
  %v2374 = vunpack.c.l.b16 %v688
  %v2375 = vunpack.c.h.b16 %v688
  %v2376 = vunpack.c.l.b16 %v689
  %v2377 = vunpack.c.h.b16 %v689
  %v2378 = vunpack.c.l.b16 %v690
  %v2379 = vunpack.c.h.b16 %v690
  %v2380 = vunpack.c.l.b16 %v691
  %v2381 = vunpack.c.h.b16 %v691
  %v2382 = vunpack.c.l.b16 %v692
  %v2383 = vunpack.c.h.b16 %v692
  %v2384 = vunpack.c.l.b16 %v693
  %v2385 = vunpack.c.h.b16 %v693
  %v2386 = vunpack.c.l.b16 %v694
  %v2387 = vunpack.c.h.b16 %v694
  %v2388 = vunpack.c.l.b16 %v695
  %v2389 = vunpack.c.h.b16 %v695
  %v2390 = vunpack.c.l.b16 %v696
  %v2391 = vunpack.c.h.b16 %v696
  %v2392 = vunpack.c.l.b16 %v697
  %v2393 = vunpack.c.l.b16 %v698
  %v2394 = vunpack.c.h.b16 %v698
  %v2395 = vunpack.c.l.b16 %v699
  %v2396 = vunpack.c.h.b16 %v699
  %v2397 = vunpack.c.l.b16 %v700
  %v2398 = vunpack.c.h.b16 %v700
  %v2399 = vunpack.c.l.b16 %v701
  %v2400 = vunpack.c.h.b16 %v701
  %v2401 = vunpack.c.l.b16 %v702
  %v2402 = vunpack.c.h.b16 %v702
  %v2403 = vunpack.c.l.b16 %v703
  %v2404 = vunpack.c.h.b16 %v703
  %v2405 = vunpack.c.l.b16 %v704
  %v2406 = vunpack.c.h.b16 %v704
  %v2407 = vunpack.c.l.b16 %v705
  %v2408 = vunpack.c.h.b16 %v705
  %v2409 = vunpack.c.l.b16 %v706
  %v2410 = vunpack.c.h.b16 %v706
  %v2411 = vunpack.c.l.b16 %v707
  %v2412 = vunpack.c.l.b16 %v708
  %v2413 = vunpack.c.h.b16 %v708
  %v2414 = vunpack.c.l.b16 %v709
  %v2415 = vunpack.c.h.b16 %v709
  %v2416 = vunpack.c.l.b16 %v710
  %v2417 = vunpack.c.h.b16 %v710
  %v2418 = vunpack.c.l.b16 %v711
  %v2419 = vunpack.c.h.b16 %v711
  %v2420 = vunpack.c.l.b16 %v712
  %v2421 = vunpack.c.h.b16 %v712
  %v2422 = vunpack.c.l.b16 %v713
  %v2423 = vunpack.c.h.b16 %v713
  %v2424 = vunpack.c.l.b16 %v714
  %v2425 = vunpack.c.h.b16 %v714
  %v2426 = vunpack.c.l.b16 %v715
  %v2427 = vunpack.c.h.b16 %v715
  %v2428 = vunpack.c.l.b16 %v716
  %v2429 = vunpack.c.h.b16 %v716
  %v2430 = vunpack.c.l.b16 %v717
  %v2431 = vunpack.c.l.b16 %v718
  %v2432 = vunpack.c.h.b16 %v718
  %v2433 = vunpack.c.l.b16 %v719
  %v2434 = vunpack.c.h.b16 %v719
  %v2435 = vunpack.c.l.b16 %v720
  %v2436 = vunpack.c.h.b16 %v720
  %v2437 = vunpack.c.l.b16 %v721
  %v2438 = vunpack.c.h.b16 %v721
  %v2439 = vunpack.c.l.b16 %v722
  %v2440 = vunpack.c.h.b16 %v722
  %v2441 = vunpack.c.l.b16 %v723
  %v2442 = vunpack.c.h.b16 %v723
  %v2443 = vunpack.c.l.b16 %v724
  %v2444 = vunpack.c.h.b16 %v724
  %v2445 = vunpack.c.l.b16 %v725
  %v2446 = vunpack.c.h.b16 %v725
  %v2447 = vunpack.c.l.b16 %v726
  %v2448 = vunpack.c.h.b16 %v726
  %v2449 = vunpack.c.l.b16 %v727
  %v2450 = vunpack.c.l.b16 %v728
  %v2451 = vunpack.c.h.b16 %v728
  %v2452 = vunpack.c.l.b16 %v729
  %v2453 = vunpack.c.h.b16 %v729
  %v2454 = vunpack.c.l.b16 %v730
  %v2455 = vunpack.c.h.b16 %v730
  %v2456 = vunpack.c.l.b16 %v731
  %v2457 = vunpack.c.h.b16 %v731
  %v2458 = vunpack.c.l.b16 %v732
  %v2459 = vunpack.c.h.b16 %v732
  %v2460 = vunpack.c.l.b16 %v733
  %v2461 = vunpack.c.h.b16 %v733
  %v2462 = vunpack.c.l.b16 %v734
  %v2463 = vunpack.c.h.b16 %v734
  %v2464 = vunpack.c.l.b16 %v735
  %v2465 = vunpack.c.h.b16 %v735
  %v2466 = vunpack.c.l.b16 %v736
  %v2467 = vunpack.c.h.b16 %v736
  %v2468 = vunpack.c.l.b16 %v737
  %v2469 = vunpack.c.l.b16 %v738
  %v2470 = vunpack.c.h.b16 %v738
  %v2471 = vunpack.c.l.b16 %v739
  %v2472 = vunpack.c.h.b16 %v739
  %v2473 = vunpack.c.l.b16 %v740
  %v2474 = vunpack.c.h.b16 %v740
  %v2475 = vunpack.c.l.b16 %v741
  %v2476 = vunpack.c.h.b16 %v741
  %v2477 = vunpack.c.l.b16 %v742
  %v2478 = vunpack.c.h.b16 %v742
  %v2479 = vunpack.c.l.b16 %v743
  %v2480 = vunpack.c.h.b16 %v743
  %v2481 = vunpack.c.l.b16 %v744
  %v2482 = vunpack.c.h.b16 %v744
  %v2483 = vunpack.c.l.b16 %v745
  %v2484 = vunpack.c.h.b16 %v745
  %v2485 = vunpack.c.l.b16 %v746
  %v2486 = vunpack.c.h.b16 %v746
  %v2487 = vunpack.c.l.b16 %v747
  %v2488 = vunpack.c.l.b16 %v748
  %v2489 = vunpack.c.h.b16 %v748
  %v2490 = vunpack.c.l.b16 %v749
  %v2491 = vunpack.c.h.b16 %v749
  %v2492 = vunpack.c.l.b16 %v750
  %v2493 = vunpack.c.h.b16 %v750
  %v2494 = vunpack.c.l.b16 %v751
  %v2495 = vunpack.c.h.b16 %v751
  %v2496 = vunpack.c.l.b16 %v752
  %v2497 = vunpack.c.h.b16 %v752
  %v2498 = vunpack.c.l.b16 %v753
  %v2499 = vunpack.c.h.b16 %v753
  %v2500 = vunpack.c.l.b16 %v754
  %v2501 = vunpack.c.h.b16 %v754
  %v2502 = vunpack.c.l.b16 %v755
  %v2503 = vunpack.c.h.b16 %v755
  %v2504 = vunpack.c.l.b16 %v756
  %v2505 = vunpack.c.h.b16 %v756
  %v2506 = vunpack.c.l.b16 %v757
  %v2507 = vunpack.c.l.b16 %v758
  %v2508 = vunpack.c.h.b16 %v758
  %v2509 = vunpack.c.l.b16 %v759
  %v2510 = vunpack.c.h.b16 %v759
  %v2511 = vunpack.c.l.b16 %v760
  %v2512 = vunpack.c.h.b16 %v760
  %v2513 = vunpack.c.l.b16 %v761
  %v2514 = vunpack.c.h.b16 %v761
  %v2515 = vunpack.c.l.b16 %v762
  %v2516 = vunpack.c.h.b16 %v762
  %v2517 = vunpack.c.l.b16 %v763
  %v2518 = vunpack.c.h.b16 %v763
  %v2519 = vunpack.c.l.b16 %v764
  %v2520 = vunpack.c.h.b16 %v764
  %v2521 = vunpack.c.l.b16 %v765
  %v2522 = vunpack.c.h.b16 %v765
  %v2523 = vunpack.c.l.b16 %v766
  %v2524 = vunpack.c.h.b16 %v766
  %v2525 = vunpack.c.l.b16 %v767
  %v2526 = vunpack.c.l.b16 %v768
  %v2527 = vunpack.c.h.b16 %v768
  %v2528 = vunpack.c.l.b16 %v769
  %v2529 = vunpack.c.h.b16 %v769
  %v2530 = vunpack.c.l.b16 %v770
  %v2531 = vunpack.c.h.b16 %v770
  %v2532 = vunpack.c.l.b16 %v771
  %v2533 = vunpack.c.h.b16 %v771
  %v2534 = vunpack.c.l.b16 %v772
  %v2535 = vunpack.c.h.b16 %v772
  %v2536 = vunpack.c.l.b16 %v773
  %v2537 = vunpack.c.h.b16 %v773
  %v2538 = vunpack.c.l.b16 %v774
  %v2539 = vunpack.c.h.b16 %v774
  %v2540 = vunpack.c.l.b16 %v775
  %v2541 = vunpack.c.h.b16 %v775
  %v2542 = vunpack.c.l.b16 %v776
  %v2543 = vunpack.c.h.b16 %v776
  %v2544 = vunpack.c.l.b16 %v777
  %v2545 = vunpack.c.l.b16 %v778
  %v2546 = vunpack.c.h.b16 %v778
  %v2547 = vunpack.c.l.b16 %v779
  %v2548 = vunpack.c.h.b16 %v779
  %v2549 = vunpack.c.l.b16 %v780
  %v2550 = vunpack.c.h.b16 %v780
  %v2551 = vunpack.c.l.b16 %v781
  %v2552 = vunpack.c.h.b16 %v781
  %v2553 = vunpack.c.l.b16 %v782
  %v2554 = vunpack.c.h.b16 %v782
  %v2555 = vunpack.c.l.b16 %v783
  %v2556 = vunpack.c.h.b16 %v783
  %v2557 = vunpack.c.l.b16 %v784
  %v2558 = vunpack.c.h.b16 %v784
  %v2559 = vunpack.c.l.b16 %v785
  %v2560 = vunpack.c.h.b16 %v785
  %v2561 = vunpack.c.l.b16 %v786
  %v2562 = vunpack.c.h.b16 %v786
  %v2563 = vunpack.c.l.b16 %v787
  %v2564 = vunpack.c.l.b16 %v788
  %v2565 = vunpack.c.h.b16 %v788
  %v2566 = vunpack.c.l.b16 %v789
  %v2567 = vunpack.c.h.b16 %v789
  %v2568 = vunpack.c.l.b16 %v790
  %v2569 = vunpack.c.h.b16 %v790
  %v2570 = vunpack.c.l.b16 %v791
  %v2571 = vunpack.c.h.b16 %v791
  %v2572 = vunpack.c.l.b16 %v792
  %v2573 = vunpack.c.h.b16 %v792
  %v2574 = vunpack.c.l.b16 %v793
  %v2575 = vunpack.c.h.b16 %v793
  %v2576 = vunpack.c.l.b16 %v794
  %v2577 = vunpack.c.h.b16 %v794
  %v2578 = vunpack.c.l.b16 %v795
  %v2579 = vunpack.c.h.b16 %v795
  %v2580 = vunpack.c.l.b16 %v796
  %v2581 = vunpack.c.h.b16 %v796
  %v2582 = vunpack.c.l.b16 %v797
  %v2583 = vunpack.c.l.b16 %v798
  %v2584 = vunpack.c.h.b16 %v798
  %v2585 = vunpack.c.l.b16 %v799
  %v2586 = vunpack.c.h.b16 %v799
  %v2587 = vunpack.c.l.b16 %v800
  %v2588 = vunpack.c.h.b16 %v800
  %v2589 = vunpack.c.l.b16 %v801
  %v2590 = vunpack.c.h.b16 %v801
  %v2591 = vunpack.c.l.b16 %v802
  %v2592 = vunpack.c.h.b16 %v802
  %v2593 = vunpack.c.l.b16 %v803
  %v2594 = vunpack.c.h.b16 %v803
  %v2595 = vunpack.c.l.b16 %v804
  %v2596 = vunpack.c.h.b16 %v804
  %v2597 = vunpack.c.l.b16 %v805
  %v2598 = vunpack.c.h.b16 %v805
  %v2599 = vunpack.c.l.b16 %v806
  %v2600 = vunpack.c.h.b16 %v806
  %v2601 = vunpack.c.l.b16 %v807
  %v2602 = vunpack.c.l.b16 %v808
  %v2603 = vunpack.c.h.b16 %v808
  %v2604 = vunpack.c.l.b16 %v809
  %v2605 = vunpack.c.h.b16 %v809
  %v2606 = vunpack.c.l.b16 %v810
  %v2607 = vunpack.c.h.b16 %v810
  %v2608 = vunpack.c.l.b16 %v811
  %v2609 = vunpack.c.h.b16 %v811
  %v2610 = vunpack.c.l.b16 %v812
  %v2611 = vunpack.c.h.b16 %v812
  %v2612 = vunpack.c.l.b16 %v813
  %v2613 = vunpack.c.h.b16 %v813
  %v2614 = vunpack.c.l.b16 %v814
  %v2615 = vunpack.c.h.b16 %v814
  %v2616 = vunpack.c.l.b16 %v815
  %v2617 = vunpack.c.h.b16 %v815
  %v2618 = vunpack.c.l.b16 %v816
  %v2619 = vunpack.c.h.b16 %v816
  %v2620 = vunpack.c.l.b16 %v817
  %v2621 = vunpack.c.l.b16 %v818
  %v2622 = vunpack.c.h.b16 %v818
  %v2623 = vunpack.c.l.b16 %v819
  %v2624 = vunpack.c.h.b16 %v819
  %v2625 = vunpack.c.l.b16 %v820
  %v2626 = vunpack.c.h.b16 %v820
  %v2627 = vunpack.c.l.b16 %v821
  %v2628 = vunpack.c.h.b16 %v821
  %v2629 = vunpack.c.l.b16 %v822
  %v2630 = vunpack.c.h.b16 %v822
  %v2631 = vunpack.c.l.b16 %v823
  %v2632 = vunpack.c.h.b16 %v823
  %v2633 = vunpack.c.l.b16 %v824
  %v2634 = vunpack.c.h.b16 %v824
  %v2635 = vunpack.c.l.b16 %v825
  %v2636 = vunpack.c.h.b16 %v825
  %v2637 = vunpack.c.l.b16 %v826
  %v2638 = vunpack.c.h.b16 %v826
  %v2639 = vunpack.c.l.b16 %v827
  %v2640 = vunpack.c.l.b16 %v828
  %v2641 = vunpack.c.h.b16 %v828
  %v2642 = vunpack.c.l.b16 %v829
  %v2643 = vunpack.c.h.b16 %v829
  %v2644 = vunpack.c.l.b16 %v830
  %v2645 = vunpack.c.h.b16 %v830
  %v2646 = vunpack.c.l.b16 %v831
  %v2647 = vunpack.c.h.b16 %v831
  %v2648 = vunpack.c.l.b16 %v832
  %v2649 = vunpack.c.h.b16 %v832
  %v2650 = vunpack.c.l.b16 %v833
  %v2651 = vunpack.c.h.b16 %v833
  %v2652 = vunpack.c.l.b16 %v834
  %v2653 = vunpack.c.h.b16 %v834
  %v2654 = vunpack.c.l.b16 %v835
  %v2655 = vunpack.c.h.b16 %v835
  %v2656 = vunpack.c.l.b16 %v836
  %v2657 = vunpack.c.h.b16 %v836
  %v2658 = vunpack.c.l.b16 %v837
  %v2659 = vunpack.c.l.b16 %v838
  %v2660 = vunpack.c.h.b16 %v838
  %v2661 = vunpack.c.l.b16 %v839
  %v2662 = vunpack.c.h.b16 %v839
  %v2663 = vunpack.c.l.b16 %v840
  %v2664 = vunpack.c.h.b16 %v840
  %v2665 = vunpack.c.l.b16 %v841
  %v2666 = vunpack.c.h.b16 %v841
  %v2667 = vunpack.c.l.b16 %v842
  %v2668 = vunpack.c.h.b16 %v842
  %v2669 = vunpack.c.l.b16 %v843
  %v2670 = vunpack.c.h.b16 %v843
  %v2671 = vunpack.c.l.b16 %v844
  %v2672 = vunpack.c.h.b16 %v844
  %v2673 = vunpack.c.l.b16 %v845
  %v2674 = vunpack.c.h.b16 %v845
  %v2675 = vunpack.c.l.b16 %v846
  %v2676 = vunpack.c.h.b16 %v846
  %v2677 = vunpack.c.l.b16 %v847
  %v2678 = vunpack.c.l.b16 %v848
  %v2679 = vunpack.c.h.b16 %v848
  %v2680 = vunpack.c.l.b16 %v849
  %v2681 = vunpack.c.h.b16 %v849
  %v2682 = vunpack.c.l.b16 %v850
  %v2683 = vunpack.c.h.b16 %v850
  %v2684 = vunpack.c.l.b16 %v851
  %v2685 = vunpack.c.h.b16 %v851
  %v2686 = vunpack.c.l.b16 %v852
  %v2687 = vunpack.c.h.b16 %v852
  %v2688 = vunpack.c.l.b16 %v853
  %v2689 = vunpack.c.h.b16 %v853
  %v2690 = vunpack.c.l.b16 %v854
  %v2691 = vunpack.c.h.b16 %v854
  %v2692 = vunpack.c.l.b16 %v855
  %v2693 = vunpack.c.h.b16 %v855
  %v2694 = vunpack.c.l.b16 %v856
  %v2695 = vunpack.c.h.b16 %v856
  %v2696 = vunpack.c.l.b16 %v857
  %v2697 = vunpack.c.l.b16 %v858
  %v2698 = vunpack.c.h.b16 %v858
  %v2699 = vunpack.c.l.b16 %v859
  %v2700 = vunpack.c.h.b16 %v859
  %v2701 = vunpack.c.l.b16 %v860
  %v2702 = vunpack.c.h.b16 %v860
  %v2703 = vunpack.c.l.b16 %v861
  %v2704 = vunpack.c.h.b16 %v861
  %v2705 = vunpack.c.l.b16 %v862
  %v2706 = vunpack.c.h.b16 %v862
  %v2707 = vunpack.c.l.b16 %v863
  %v2708 = vunpack.c.h.b16 %v863
  %v2709 = vunpack.c.l.b16 %v864
  %v2710 = vunpack.c.h.b16 %v864
  %v2711 = vunpack.c.l.b16 %v865
  %v2712 = vunpack.c.h.b16 %v865
  %v2713 = vunpack.c.l.b16 %v866
  %v2714 = vunpack.c.h.b16 %v866
  %v2715 = vunpack.c.l.b16 %v867
  %v2716 = vunpack.c.l.b16 %v868
  %v2717 = vunpack.c.h.b16 %v868
  %v2718 = vunpack.c.l.b16 %v869
  %v2719 = vunpack.c.h.b16 %v869
  %v2720 = vunpack.c.l.b16 %v870
  %v2721 = vunpack.c.h.b16 %v870
  %v2722 = vunpack.c.l.b16 %v871
  %v2723 = vunpack.c.h.b16 %v871
  %v2724 = vunpack.c.l.b16 %v872
  %v2725 = vunpack.c.h.b16 %v872
  %v2726 = vunpack.c.l.b16 %v873
  %v2727 = vunpack.c.h.b16 %v873
  %v2728 = vunpack.c.l.b16 %v874
  %v2729 = vunpack.c.h.b16 %v874
  %v2730 = vunpack.c.l.b16 %v875
  %v2731 = vunpack.c.h.b16 %v875
  %v2732 = vunpack.c.l.b16 %v876
  %v2733 = vunpack.c.h.b16 %v876
  %v2734 = vunpack.c.l.b16 %v877
  %v2735 = vunpack.c.l.b16 %v878
  %v2736 = vunpack.c.h.b16 %v878
  %v2737 = vunpack.c.l.b16 %v879
  %v2738 = vunpack.c.h.b16 %v879
  %v2739 = vunpack.c.l.b16 %v880
  %v2740 = vunpack.c.h.b16 %v880
  %v2741 = vunpack.c.l.b16 %v881
  %v2742 = vunpack.c.h.b16 %v881
  %v2743 = vunpack.c.l.b16 %v882
  %v2744 = vunpack.c.h.b16 %v882
  %v2745 = vunpack.c.l.b16 %v883
  %v2746 = vunpack.c.h.b16 %v883
  %v2747 = vunpack.c.l.b16 %v884
  %v2748 = vunpack.c.h.b16 %v884
  %v2749 = vunpack.c.l.b16 %v885
  %v2750 = vunpack.c.h.b16 %v885
  %v2751 = vunpack.c.l.b16 %v886
  %v2752 = vunpack.c.h.b16 %v886
  %v2753 = vunpack.c.l.b16 %v887
  %v2754 = vunpack.c.l.b16 %v888
  %v2755 = vunpack.c.h.b16 %v888
  %v2756 = vunpack.c.l.b16 %v889
  %v2757 = vunpack.c.h.b16 %v889
  %v2758 = vunpack.c.l.b16 %v890
  %v2759 = vunpack.c.h.b16 %v890
  %v2760 = vunpack.c.l.b16 %v891
  %v2761 = vunpack.c.h.b16 %v891
  %v2762 = vunpack.c.l.b16 %v892
  %v2763 = vunpack.c.h.b16 %v892
  %v2764 = vunpack.c.l.b16 %v893
  %v2765 = vunpack.c.h.b16 %v893
  %v2766 = vunpack.c.l.b16 %v894
  %v2767 = vunpack.c.h.b16 %v894
  %v2768 = vunpack.c.l.b16 %v895
  %v2769 = vunpack.c.h.b16 %v895
  %v2770 = vunpack.c.l.b16 %v896
  %v2771 = vunpack.c.h.b16 %v896
  %v2772 = vunpack.c.l.b16 %v897
  %v2773 = vunpack.c.l.b16 %v898
  %v2774 = vunpack.c.h.b16 %v898
  %v2775 = vunpack.c.l.b16 %v899
  %v2776 = vunpack.c.h.b16 %v899
  %v2777 = vunpack.c.l.b16 %v900
  %v2778 = vunpack.c.h.b16 %v900
  %v2779 = vunpack.c.l.b16 %v901
  %v2780 = vunpack.c.h.b16 %v901
  %v2781 = vunpack.c.l.b16 %v902
  %v2782 = vunpack.c.h.b16 %v902
  %v2783 = vunpack.c.l.b16 %v903
  %v2784 = vunpack.c.h.b16 %v903
  %v2785 = vunpack.c.l.b16 %v904
  %v2786 = vunpack.c.h.b16 %v904
  %v2787 = vunpack.c.l.b16 %v905
  %v2788 = vunpack.c.h.b16 %v905
  %v2789 = vunpack.c.l.b16 %v906
  %v2790 = vunpack.c.h.b16 %v906
  %v2791 = vunpack.c.l.b16 %v907
  %v2792 = vunpack.c.l.b16 %v908
  %v2793 = vunpack.c.h.b16 %v908
  %v2794 = vunpack.c.l.b16 %v909
  %v2795 = vunpack.c.h.b16 %v909
  %v2796 = vunpack.c.l.b16 %v910
  %v2797 = vunpack.c.h.b16 %v910
  %v2798 = vunpack.c.l.b16 %v911
  %v2799 = vunpack.c.h.b16 %v911
  %v2800 = vunpack.c.l.b16 %v912
  %v2801 = vunpack.c.h.b16 %v912
  %v2802 = vunpack.c.l.b16 %v913
  %v2803 = vunpack.c.h.b16 %v913
  %v2804 = vunpack.c.l.b16 %v914
  %v2805 = vunpack.c.h.b16 %v914
  %v2806 = vunpack.c.l.b16 %v915
  %v2807 = vunpack.c.h.b16 %v915
  %v2808 = vunpack.c.l.b16 %v916
  %v2809 = vunpack.c.h.b16 %v916
  %v2810 = vunpack.c.l.b16 %v917
  %v2811 = vunpack.c.l.b16 %v918
  %v2812 = vunpack.c.h.b16 %v918
  %v2813 = vunpack.c.l.b16 %v919
  %v2814 = vunpack.c.h.b16 %v919
  %v2815 = vunpack.c.l.b16 %v920
  %v2816 = vunpack.c.h.b16 %v920
  %v2817 = vunpack.c.l.b16 %v921
  %v2818 = vunpack.c.h.b16 %v921
  %v2819 = vunpack.c.l.b16 %v922
  %v2820 = vunpack.c.h.b16 %v922
  %v2821 = vunpack.c.l.b16 %v923
  %v2822 = vunpack.c.h.b16 %v923
  %v2823 = vunpack.c.l.b16 %v924
  %v2824 = vunpack.c.h.b16 %v924
  %v2825 = vunpack.c.l.b16 %v925
  %v2826 = vunpack.c.h.b16 %v925
  %v2827 = vunpack.c.l.b16 %v926
  %v2828 = vunpack.c.h.b16 %v926
  %v2829 = vunpack.c.l.b16 %v927
  %v2830 = vunpack.c.l.b16 %v928
  %v2831 = vunpack.c.h.b16 %v928
  %v2832 = vunpack.c.l.b16 %v929
  %v2833 = vunpack.c.h.b16 %v929
  %v2834 = vunpack.c.l.b16 %v930
  %v2835 = vunpack.c.h.b16 %v930
  %v2836 = vunpack.c.l.b16 %v931
  %v2837 = vunpack.c.h.b16 %v931
  %v2838 = vunpack.c.l.b16 %v932
  %v2839 = vunpack.c.h.b16 %v932
  %v2840 = vunpack.c.l.b16 %v933
  %v2841 = vunpack.c.h.b16 %v933
  %v2842 = vunpack.c.l.b16 %v934
  %v2843 = vunpack.c.h.b16 %v934
  %v2844 = vunpack.c.l.b16 %v935
  %v2845 = vunpack.c.h.b16 %v935
  %v2846 = vunpack.c.l.b16 %v936
  %v2847 = vunpack.c.h.b16 %v936
  %v2848 = vunpack.c.l.b16 %v937
  %v2849 = vunpack.c.l.b16 %v938
  %v2850 = vunpack.c.h.b16 %v938
  %v2851 = vunpack.c.l.b16 %v939
  %v2852 = vunpack.c.h.b16 %v939
  %v2853 = vunpack.c.l.b16 %v940
  %v2854 = vunpack.c.h.b16 %v940
  %v2855 = vunpack.c.l.b16 %v941
  %v2856 = vunpack.c.h.b16 %v941
  %v2857 = vunpack.c.l.b16 %v942
  %v2858 = vunpack.c.h.b16 %v942
  %v2859 = vunpack.c.l.b16 %v943
  %v2860 = vunpack.c.h.b16 %v943
  %v2861 = vunpack.c.l.b16 %v944
  %v2862 = vunpack.c.h.b16 %v944
  %v2863 = vunpack.c.l.b16 %v945
  %v2864 = vunpack.c.h.b16 %v945
  %v2865 = vunpack.c.l.b16 %v946
  %v2866 = vunpack.c.h.b16 %v946
  %v2867 = vunpack.c.l.b16 %v947
  %v2868 = vunpack.c.l.b16 %v948
  %v2869 = vunpack.c.h.b16 %v948
  %v2870 = vunpack.c.l.b16 %v949
  %v2871 = vunpack.c.h.b16 %v949
  %v2872 = vunpack.c.l.b16 %v950
  %v2873 = vunpack.c.h.b16 %v950
  %v2874 = vunpack.c.l.b16 %v951
  %v2875 = vunpack.c.h.b16 %v951
  %v2876 = vunpack.c.l.b16 %v952
  %v2877 = vunpack.c.h.b16 %v952
  %v2878 = vunpack.c.l.b16 %v953
  %v2879 = vunpack.c.h.b16 %v953
  %v2880 = vunpack.c.l.b16 %v954
  %v2881 = vunpack.c.h.b16 %v954
  %v2882 = vunpack.c.l.b16 %v955
  %v2883 = vunpack.c.h.b16 %v955
  %v2884 = vunpack.c.l.b16 %v956
  %v2885 = vunpack.c.h.b16 %v956
  %v2886 = vunpack.c.l.b16 %v957
  %v2887 = vunpack.c.l.b16 %v958
  %v2888 = vunpack.c.h.b16 %v958
  %v2889 = vunpack.c.l.b16 %v959
  %v2890 = vunpack.c.h.b16 %v959
  %v2891 = vunpack.c.l.b16 %v960
  %v2892 = vunpack.c.h.b16 %v960
  %v2893 = vunpack.c.l.b16 %v961
  %v2894 = vunpack.c.h.b16 %v961
  %v2895 = vunpack.c.l.b16 %v962
  %v2896 = vunpack.c.h.b16 %v962
  %v2897 = vunpack.c.l.b16 %v963
  %v2898 = vunpack.c.h.b16 %v963
  %v2899 = vunpack.c.l.b16 %v964
  %v2900 = vunpack.c.h.b16 %v964
  %v2901 = vunpack.c.l.b16 %v965
  %v2902 = vunpack.c.h.b16 %v965
  %v2903 = vunpack.c.l.b16 %v966
  %v2904 = vunpack.c.h.b16 %v966
  %v2905 = vunpack.c.l.b16 %v967
  %v2906 = vunpack.c.l.b16 %v968
  %v2907 = vunpack.c.h.b16 %v968
  %v2908 = vunpack.c.l.b16 %v969
  %v2909 = vunpack.c.h.b16 %v969
  %v2910 = vunpack.c.l.b16 %v970
  %v2911 = vunpack.c.h.b16 %v970
  %v2912 = vunpack.c.l.b16 %v971
  %v2913 = vunpack.c.h.b16 %v971
  %v2914 = vunpack.c.l.b16 %v972
  %v2915 = vunpack.c.h.b16 %v972
  %v2916 = vunpack.c.l.b16 %v973
  %v2917 = vunpack.c.h.b16 %v973
  %v2918 = vunpack.c.l.b16 %v974
  %v2919 = vunpack.c.h.b16 %v974
  %v2920 = vunpack.c.l.b16 %v975
  %v2921 = vunpack.c.h.b16 %v975
  %v2922 = vunpack.c.l.b16 %v976
  %v2923 = vunpack.c.h.b16 %v976
  %v2924 = vunpack.c.l.b16 %v977
  %v2925 = vunpack.c.l.b16 %v978
  %v2926 = vunpack.c.h.b16 %v978
  %v2927 = vunpack.c.l.b16 %v979
  %v2928 = vunpack.c.h.b16 %v979
  %v2929 = vunpack.c.l.b16 %v980
  %v2930 = vunpack.c.h.b16 %v980
  %v2931 = vunpack.c.l.b16 %v981
  %v2932 = vunpack.c.h.b16 %v981
  %v2933 = vunpack.c.l.b16 %v982
  %v2934 = vunpack.c.h.b16 %v982
  %v2935 = vunpack.c.l.b16 %v983
  %v2936 = vunpack.c.h.b16 %v983
  %v2937 = vunpack.c.l.b16 %v984
  %v2938 = vunpack.c.h.b16 %v984
  %v2939 = vunpack.c.l.b16 %v985
  %v2940 = vunpack.c.h.b16 %v985
  %v2941 = vunpack.c.l.b16 %v986
  %v2942 = vunpack.c.h.b16 %v986
  %v2943 = vunpack.c.l.b16 %v987
  %v2944 = vunpack.c.l.b16 %v988
  %v2945 = vunpack.c.h.b16 %v988
  %v2946 = vunpack.c.l.b16 %v989
  %v2947 = vunpack.c.h.b16 %v989
  %v2948 = vunpack.c.l.b16 %v990
  %v2949 = vunpack.c.h.b16 %v990
  %v2950 = vunpack.c.l.b16 %v991
  %v2951 = vunpack.c.h.b16 %v991
  %v2952 = vunpack.c.l.b16 %v992
  %v2953 = vunpack.c.h.b16 %v992
  %v2954 = vunpack.c.l.b16 %v993
  %v2955 = vunpack.c.h.b16 %v993
  %v2956 = vunpack.c.l.b16 %v994
  %v2957 = vunpack.c.h.b16 %v994
  %v2958 = vunpack.c.l.b16 %v995
  %v2959 = vunpack.c.h.b16 %v995
  %v2960 = vunpack.c.l.b16 %v996
  %v2961 = vunpack.c.h.b16 %v996
  %v2962 = vunpack.c.l.b16 %v997
  %v2963 = vunpack.c.l.b16 %v998
  %v2964 = vunpack.c.h.b16 %v998
  %v2965 = vunpack.c.l.b16 %v999
  %v2966 = vunpack.c.h.b16 %v999
  %v2967 = vunpack.c.l.b16 %v1000
  %v2968 = vunpack.c.h.b16 %v1000
  %v2969 = vunpack.c.l.b16 %v1001
  %v2970 = vunpack.c.h.b16 %v1001
  %v2971 = vunpack.c.l.b16 %v1002
  %v2972 = vunpack.c.h.b16 %v1002
  %v2973 = vunpack.c.l.b16 %v1003
  %v2974 = vunpack.c.h.b16 %v1003
  %v2975 = vunpack.c.l.b16 %v1004
  %v2976 = vunpack.c.h.b16 %v1004
  %v2977 = vunpack.c.l.b16 %v1005
  %v2978 = vunpack.c.h.b16 %v1005
  %v2979 = vunpack.c.l.b16 %v1006
  %v2980 = vunpack.c.h.b16 %v1006
  %v2981 = vunpack.c.l.b16 %v1007
  %v2982 = vunpack.c.l.b16 %v1008
  %v2983 = vunpack.c.h.b16 %v1008
  %v2984 = vunpack.c.l.b16 %v1009
  %v2985 = vunpack.c.h.b16 %v1009
  %v2986 = vunpack.c.l.b16 %v1010
  %v2987 = vunpack.c.h.b16 %v1010
  %v2988 = vunpack.c.l.b16 %v1011
  %v2989 = vunpack.c.h.b16 %v1011
  %v2990 = vunpack.c.l.b16 %v1012
  %v2991 = vunpack.c.h.b16 %v1012
  %v2992 = vunpack.c.l.b16 %v1013
  %v2993 = vunpack.c.h.b16 %v1013
  %v2994 = vunpack.c.l.b16 %v1014
  %v2995 = vunpack.c.h.b16 %v1014
  %v2996 = vunpack.c.l.b16 %v1015
  %v2997 = vunpack.c.h.b16 %v1015
  %v2998 = vunpack.c.l.b16 %v1016
  %v2999 = vunpack.c.h.b16 %v1016
  %v3000 = vunpack.c.l.b16 %v1017
  %v3001 = vunpack.c.l.b16 %v1018
  %v3002 = vunpack.c.h.b16 %v1018
  %v3003 = vunpack.c.l.b16 %v1019
  %v3004 = vunpack.c.h.b16 %v1019
  %v3005 = vunpack.c.l.b16 %v1020
  %v3006 = vunpack.c.h.b16 %v1020
  %v3007 = vunpack.c.l.b16 %v1021
  %v3008 = vunpack.c.h.b16 %v1021
  %v3009 = vunpack.c.l.b16 %v1022
  %v3010 = vunpack.c.h.b16 %v1022
  %v3011 = vunpack.c.l.b16 %v1023
  %v3012 = vunpack.c.h.b16 %v1023
  %v3013 = vunpack.c.l.b16 %v1024
  %v3014 = vunpack.c.h.b16 %v1024
  %v3015 = vunpack.c.l.b16 %v1025
  %v3016 = vunpack.c.h.b16 %v1025
  %v3017 = vunpack.c.l.b16 %v1026
  %v3018 = vunpack.c.h.b16 %v1026
  %v3019 = vunpack.c.l.b16 %v1027
  %v3020 = vunpack.c.l.b16 %v1028
  %v3021 = vunpack.c.h.b16 %v1028
  %v3022 = vunpack.c.l.b16 %v1029
  %v3023 = vunpack.c.h.b16 %v1029
  %v3024 = vunpack.c.l.b16 %v1030
  %v3025 = vunpack.c.h.b16 %v1030
  %v3026 = vunpack.c.l.b16 %v1031
  %v3027 = vunpack.c.h.b16 %v1031
  %v3028 = vunpack.c.l.b16 %v1032
  %v3029 = vunpack.c.h.b16 %v1032
  %v3030 = vunpack.c.l.b16 %v1033
  %v3031 = vunpack.c.h.b16 %v1033
  %v3032 = vunpack.c.l.b16 %v1034
  %v3033 = vunpack.c.h.b16 %v1034
  %v3034 = vunpack.c.l.b16 %v1035
  %v3035 = vunpack.c.h.b16 %v1035
  %v3036 = vunpack.c.l.b16 %v1036
  %v3037 = vunpack.c.h.b16 %v1036
  %v3038 = vunpack.c.l.b16 %v1037
  %v3039 = vunpack.c.l.b16 %v1038
  %v3040 = vunpack.c.h.b16 %v1038
  %v3041 = vunpack.c.l.b16 %v1039
  %v3042 = vunpack.c.h.b16 %v1039
  %v3043 = vunpack.c.l.b16 %v1040
  %v3044 = vunpack.c.h.b16 %v1040
  %v3045 = vunpack.c.l.b16 %v1041
  %v3046 = vunpack.c.h.b16 %v1041
  %v3047 = vunpack.c.l.b16 %v1042
  %v3048 = vunpack.c.h.b16 %v1042
  %v3049 = vunpack.c.l.b16 %v1043
  %v3050 = vunpack.c.h.b16 %v1043
  %v3051 = vunpack.c.l.b16 %v1044
  %v3052 = vunpack.c.h.b16 %v1044
  %v3053 = vunpack.c.l.b16 %v1045
  %v3054 = vunpack.c.h.b16 %v1045
  %v3055 = vunpack.c.l.b16 %v1046
  %v3056 = vunpack.c.h.b16 %v1046
  %v3057 = vunpack.c.l.b16 %v1047
  %v3058 = vunpack.c.l.b16 %v1048
  %v3059 = vunpack.c.h.b16 %v1048
  %v3060 = vunpack.c.l.b16 %v1049
  %v3061 = vunpack.c.h.b16 %v1049
  %v3062 = vunpack.c.l.b16 %v1050
  %v3063 = vunpack.c.h.b16 %v1050
  %v3064 = vunpack.c.l.b16 %v1051
  %v3065 = vunpack.c.h.b16 %v1051
  %v3066 = vunpack.c.l.b16 %v1052
  %v3067 = vunpack.c.h.b16 %v1052
  %v3068 = vunpack.c.l.b16 %v1053
  %v3069 = vunpack.c.h.b16 %v1053
  %v3070 = vunpack.c.l.b16 %v1054
  %v3071 = vunpack.c.h.b16 %v1054
  %v3072 = vunpack.c.l.b16 %v1055
  %v3073 = vunpack.c.h.b16 %v1055
  %v3074 = vunpack.c.l.b16 %v1056
  %v3075 = vunpack.c.h.b16 %v1056
  %v3076 = vunpack.c.l.b16 %v1057
  %v3077 = vunpack.c.l.b16 %v1058
  %v3078 = vunpack.c.h.b16 %v1058
  %v3079 = vunpack.c.l.b16 %v1059
  %v3080 = vunpack.c.h.b16 %v1059
  %v3081 = vunpack.c.l.b16 %v1060
  %v3082 = vunpack.c.h.b16 %v1060
  %v3083 = vunpack.c.l.b16 %v1061
  %v3084 = vunpack.c.h.b16 %v1061
  %v3085 = vunpack.c.l.b16 %v1062
  %v3086 = vunpack.c.h.b16 %v1062
  %v3087 = vunpack.c.l.b16 %v1063
  %v3088 = vunpack.c.h.b16 %v1063
  %v3089 = vunpack.c.l.b16 %v1064
  %v3090 = vunpack.c.h.b16 %v1064
  %v3091 = vunpack.c.l.b16 %v1065
  %v3092 = vunpack.c.h.b16 %v1065
  %v3093 = vunpack.c.l.b16 %v1066
  %v3094 = vunpack.c.h.b16 %v1066
  %v3095 = vunpack.c.l.b16 %v1067
  %v3096 = vunpack.c.l.b16 %v1068
  %v3097 = vunpack.c.h.b16 %v1068
  %v3098 = vunpack.c.l.b16 %v1069
  %v3099 = vunpack.c.h.b16 %v1069
  %v3100 = vunpack.c.l.b16 %v1070
  %v3101 = vunpack.c.h.b16 %v1070
  %v3102 = vunpack.c.l.b16 %v1071
  %v3103 = vunpack.c.h.b16 %v1071
  %v3104 = vunpack.c.l.b16 %v1072
  %v3105 = vunpack.c.h.b16 %v1072
  %v3106 = vunpack.c.l.b16 %v1073
  %v3107 = vunpack.c.h.b16 %v1073
  %v3108 = vunpack.c.l.b16 %v1074
  %v3109 = vunpack.c.h.b16 %v1074
  %v3110 = vunpack.c.l.b16 %v1075
  %v3111 = vunpack.c.h.b16 %v1075
  %v3112 = vunpack.c.l.b16 %v1076
  %v3113 = vunpack.c.h.b16 %v1076
  %v3114 = vunpack.c.l.b16 %v1077
  %v3115 = vpack.c.b16 %v1918, %v1899
  %v3116 = vpack.c.b16 %v1919, %v1900
  %v3117 = vpack.c.b16 %v1920, %v1901
  %v3118 = vpack.c.b16 %v1921, %v1902
  %v3119 = vpack.c.b16 %v1922, %v1903
  %v3120 = vpack.c.b16 %v1923, %v1904
  %v3121 = vpack.c.b16 %v1924, %v1905
  %v3122 = vpack.c.b16 %v1925, %v1906
  %v3123 = vpack.c.b16 %v1926, %v1907
  %v3124 = vpack.c.b16 %v1927, %v1908
  %v3125 = vpack.c.b16 %v1928, %v1909
  %v3126 = vpack.c.b16 %v1929, %v1910
  %v3127 = vpack.c.b16 %v1930, %v1911
  %v3128 = vpack.c.b16 %v1931, %v1912
  %v3129 = vpack.c.b16 %v1932, %v1913
  %v3130 = vpack.c.b16 %v1933, %v1914
  %v3131 = vpack.c.b16 %v1934, %v1915
  %v3132 = vpack.c.b16 %v1935, %v1916
  %v3133 = vpack.c.b16 %v1936, %v1917
  %v3134 = vpack.c.b16 %v1956, %v1937
  %v3135 = vpack.c.b16 %v1957, %v1938
  %v3136 = vpack.c.b16 %v1958, %v1939
  %v3137 = vpack.c.b16 %v1959, %v1940
  %v3138 = vpack.c.b16 %v1960, %v1941
  %v3139 = vpack.c.b16 %v1961, %v1942
  %v3140 = vpack.c.b16 %v1962, %v1943
  %v3141 = vpack.c.b16 %v1963, %v1944
  %v3142 = vpack.c.b16 %v1964, %v1945
  %v3143 = vpack.c.b16 %v1965, %v1946
  %v3144 = vpack.c.b16 %v1966, %v1947
  %v3145 = vpack.c.b16 %v1967, %v1948
  %v3146 = vpack.c.b16 %v1968, %v1949
  %v3147 = vpack.c.b16 %v1969, %v1950
  %v3148 = vpack.c.b16 %v1970, %v1951
  %v3149 = vpack.c.b16 %v1971, %v1952
  %v3150 = vpack.c.b16 %v1972, %v1953
  %v3151 = vpack.c.b16 %v1973, %v1954
  %v3152 = vpack.c.b16 %v1974, %v1955
  %v3153 = vpack.c.b16 %v1994, %v1975
  %v3154 = vpack.c.b16 %v1995, %v1976
  %v3155 = vpack.c.b16 %v1996, %v1977
  %v3156 = vpack.c.b16 %v1997, %v1978
  %v3157 = vpack.c.b16 %v1998, %v1979
  %v3158 = vpack.c.b16 %v1999, %v1980
  %v3159 = vpack.c.b16 %v2000, %v1981
  %v3160 = vpack.c.b16 %v2001, %v1982
  %v3161 = vpack.c.b16 %v2002, %v1983
  %v3162 = vpack.c.b16 %v2003, %v1984
  %v3163 = vpack.c.b16 %v2004, %v1985
  %v3164 = vpack.c.b16 %v2005, %v1986
  %v3165 = vpack.c.b16 %v2006, %v1987
  %v3166 = vpack.c.b16 %v2007, %v1988
  %v3167 = vpack.c.b16 %v2008, %v1989
  %v3168 = vpack.c.b16 %v2009, %v1990
  %v3169 = vpack.c.b16 %v2010, %v1991
  %v3170 = vpack.c.b16 %v2011, %v1992
  %v3171 = vpack.c.b16 %v2012, %v1993
  %v3172 = vpack.c.b16 %v2032, %v2013
  %v3173 = vpack.c.b16 %v2033, %v2014
  %v3174 = vpack.c.b16 %v2034, %v2015
  %v3175 = vpack.c.b16 %v2035, %v2016
  %v3176 = vpack.c.b16 %v2036, %v2017
  %v3177 = vpack.c.b16 %v2037, %v2018
  %v3178 = vpack.c.b16 %v2038, %v2019
  %v3179 = vpack.c.b16 %v2039, %v2020
  %v3180 = vpack.c.b16 %v2040, %v2021
  %v3181 = vpack.c.b16 %v2041, %v2022
  %v3182 = vpack.c.b16 %v2042, %v2023
  %v3183 = vpack.c.b16 %v2043, %v2024
  %v3184 = vpack.c.b16 %v2044, %v2025
  %v3185 = vpack.c.b16 %v2045, %v2026
  %v3186 = vpack.c.b16 %v2046, %v2027
  %v3187 = vpack.c.b16 %v2047, %v2028
  %v3188 = vpack.c.b16 %v2048, %v2029
  %v3189 = vpack.c.b16 %v2049, %v2030
  %v3190 = vpack.c.b16 %v2050, %v2031
  %v3191 = vpack.c.b16 %v2070, %v2051
  %v3192 = vpack.c.b16 %v2071, %v2052
  %v3193 = vpack.c.b16 %v2072, %v2053
  %v3194 = vpack.c.b16 %v2073, %v2054
  %v3195 = vpack.c.b16 %v2074, %v2055
  %v3196 = vpack.c.b16 %v2075, %v2056
  %v3197 = vpack.c.b16 %v2076, %v2057
  %v3198 = vpack.c.b16 %v2077, %v2058
  %v3199 = vpack.c.b16 %v2078, %v2059
  %v3200 = vpack.c.b16 %v2079, %v2060
  %v3201 = vpack.c.b16 %v2080, %v2061
  %v3202 = vpack.c.b16 %v2081, %v2062
  %v3203 = vpack.c.b16 %v2082, %v2063
  %v3204 = vpack.c.b16 %v2083, %v2064
  %v3205 = vpack.c.b16 %v2084, %v2065
  %v3206 = vpack.c.b16 %v2085, %v2066
  %v3207 = vpack.c.b16 %v2086, %v2067
  %v3208 = vpack.c.b16 %v2087, %v2068
  %v3209 = vpack.c.b16 %v2088, %v2069
  %v3210 = vpack.c.b16 %v2108, %v2089
  %v3211 = vpack.c.b16 %v2109, %v2090
  %v3212 = vpack.c.b16 %v2110, %v2091
  %v3213 = vpack.c.b16 %v2111, %v2092
  %v3214 = vpack.c.b16 %v2112, %v2093
  %v3215 = vpack.c.b16 %v2113, %v2094
  %v3216 = vpack.c.b16 %v2114, %v2095
  %v3217 = vpack.c.b16 %v2115, %v2096
  %v3218 = vpack.c.b16 %v2116, %v2097
  %v3219 = vpack.c.b16 %v2117, %v2098
  %v3220 = vpack.c.b16 %v2118, %v2099
  %v3221 = vpack.c.b16 %v2119, %v2100
  %v3222 = vpack.c.b16 %v2120, %v2101
  %v3223 = vpack.c.b16 %v2121, %v2102
  %v3224 = vpack.c.b16 %v2122, %v2103
  %v3225 = vpack.c.b16 %v2123, %v2104
  %v3226 = vpack.c.b16 %v2124, %v2105
  %v3227 = vpack.c.b16 %v2125, %v2106
  %v3228 = vpack.c.b16 %v2126, %v2107
  %v3229 = vpack.c.b16 %v2146, %v2127
  %v3230 = vpack.c.b16 %v2147, %v2128
  %v3231 = vpack.c.b16 %v2148, %v2129
  %v3232 = vpack.c.b16 %v2149, %v2130
  %v3233 = vpack.c.b16 %v2150, %v2131
  %v3234 = vpack.c.b16 %v2151, %v2132
  %v3235 = vpack.c.b16 %v2152, %v2133
  %v3236 = vpack.c.b16 %v2153, %v2134
  %v3237 = vpack.c.b16 %v2154, %v2135
  %v3238 = vpack.c.b16 %v2155, %v2136
  %v3239 = vpack.c.b16 %v2156, %v2137
  %v3240 = vpack.c.b16 %v2157, %v2138
  %v3241 = vpack.c.b16 %v2158, %v2139
  %v3242 = vpack.c.b16 %v2159, %v2140
  %v3243 = vpack.c.b16 %v2160, %v2141
  %v3244 = vpack.c.b16 %v2161, %v2142
  %v3245 = vpack.c.b16 %v2162, %v2143
  %v3246 = vpack.c.b16 %v2163, %v2144
  %v3247 = vpack.c.b16 %v2164, %v2145
  %v3248 = vpack.c.b16 %v2184, %v2165
  %v3249 = vpack.c.b16 %v2185, %v2166
  %v3250 = vpack.c.b16 %v2186, %v2167
  %v3251 = vpack.c.b16 %v2187, %v2168
  %v3252 = vpack.c.b16 %v2188, %v2169
  %v3253 = vpack.c.b16 %v2189, %v2170
  %v3254 = vpack.c.b16 %v2190, %v2171
  %v3255 = vpack.c.b16 %v2191, %v2172
  %v3256 = vpack.c.b16 %v2192, %v2173
  %v3257 = vpack.c.b16 %v2193, %v2174
  %v3258 = vpack.c.b16 %v2194, %v2175
  %v3259 = vpack.c.b16 %v2195, %v2176
  %v3260 = vpack.c.b16 %v2196, %v2177
  %v3261 = vpack.c.b16 %v2197, %v2178
  %v3262 = vpack.c.b16 %v2198, %v2179
  %v3263 = vpack.c.b16 %v2199, %v2180
  %v3264 = vpack.c.b16 %v2200, %v2181
  %v3265 = vpack.c.b16 %v2201, %v2182
  %v3266 = vpack.c.b16 %v2202, %v2183
  %v3267 = vpack.c.b16 %v2222, %v2203
  %v3268 = vpack.c.b16 %v2223, %v2204
  %v3269 = vpack.c.b16 %v2224, %v2205
  %v3270 = vpack.c.b16 %v2225, %v2206
  %v3271 = vpack.c.b16 %v2226, %v2207
  %v3272 = vpack.c.b16 %v2227, %v2208
  %v3273 = vpack.c.b16 %v2228, %v2209
  %v3274 = vpack.c.b16 %v2229, %v2210
  %v3275 = vpack.c.b16 %v2230, %v2211
  %v3276 = vpack.c.b16 %v2231, %v2212
  %v3277 = vpack.c.b16 %v2232, %v2213
  %v3278 = vpack.c.b16 %v2233, %v2214
  %v3279 = vpack.c.b16 %v2234, %v2215
  %v3280 = vpack.c.b16 %v2235, %v2216
  %v3281 = vpack.c.b16 %v2236, %v2217
  %v3282 = vpack.c.b16 %v2237, %v2218
  %v3283 = vpack.c.b16 %v2238, %v2219
  %v3284 = vpack.c.b16 %v2239, %v2220
  %v3285 = vpack.c.b16 %v2240, %v2221
  %v3286 = vpack.c.b16 %v2260, %v2241
  %v3287 = vpack.c.b16 %v2261, %v2242
  %v3288 = vpack.c.b16 %v2262, %v2243
  %v3289 = vpack.c.b16 %v2263, %v2244
  %v3290 = vpack.c.b16 %v2264, %v2245
  %v3291 = vpack.c.b16 %v2265, %v2246
  %v3292 = vpack.c.b16 %v2266, %v2247
  %v3293 = vpack.c.b16 %v2267, %v2248
  %v3294 = vpack.c.b16 %v2268, %v2249
  %v3295 = vpack.c.b16 %v2269, %v2250
  %v3296 = vpack.c.b16 %v2270, %v2251
  %v3297 = vpack.c.b16 %v2271, %v2252
  %v3298 = vpack.c.b16 %v2272, %v2253
  %v3299 = vpack.c.b16 %v2273, %v2254
  %v3300 = vpack.c.b16 %v2274, %v2255
  %v3301 = vpack.c.b16 %v2275, %v2256
  %v3302 = vpack.c.b16 %v2276, %v2257
  %v3303 = vpack.c.b16 %v2277, %v2258
  %v3304 = vpack.c.b16 %v2278, %v2259
  %v3305 = vpack.c.b16 %v2298, %v2279
  %v3306 = vpack.c.b16 %v2299, %v2280
  %v3307 = vpack.c.b16 %v2300, %v2281
  %v3308 = vpack.c.b16 %v2301, %v2282
  %v3309 = vpack.c.b16 %v2302, %v2283
  %v3310 = vpack.c.b16 %v2303, %v2284
  %v3311 = vpack.c.b16 %v2304, %v2285
  %v3312 = vpack.c.b16 %v2305, %v2286
  %v3313 = vpack.c.b16 %v2306, %v2287
  %v3314 = vpack.c.b16 %v2307, %v2288
  %v3315 = vpack.c.b16 %v2308, %v2289
  %v3316 = vpack.c.b16 %v2309, %v2290
  %v3317 = vpack.c.b16 %v2310, %v2291
  %v3318 = vpack.c.b16 %v2311, %v2292
  %v3319 = vpack.c.b16 %v2312, %v2293
  %v3320 = vpack.c.b16 %v2313, %v2294
  %v3321 = vpack.c.b16 %v2314, %v2295
  %v3322 = vpack.c.b16 %v2315, %v2296
  %v3323 = vpack.c.b16 %v2316, %v2297
  %v3324 = vpack.c.b16 %v2336, %v2317
  %v3325 = vpack.c.b16 %v2337, %v2318
  %v3326 = vpack.c.b16 %v2338, %v2319
  %v3327 = vpack.c.b16 %v2339, %v2320
  %v3328 = vpack.c.b16 %v2340, %v2321
  %v3329 = vpack.c.b16 %v2341, %v2322
  %v3330 = vpack.c.b16 %v2342, %v2323
  %v3331 = vpack.c.b16 %v2343, %v2324
  %v3332 = vpack.c.b16 %v2344, %v2325
  %v3333 = vpack.c.b16 %v2345, %v2326
  %v3334 = vpack.c.b16 %v2346, %v2327
  %v3335 = vpack.c.b16 %v2347, %v2328
  %v3336 = vpack.c.b16 %v2348, %v2329
  %v3337 = vpack.c.b16 %v2349, %v2330
  %v3338 = vpack.c.b16 %v2350, %v2331
  %v3339 = vpack.c.b16 %v2351, %v2332
  %v3340 = vpack.c.b16 %v2352, %v2333
  %v3341 = vpack.c.b16 %v2353, %v2334
  %v3342 = vpack.c.b16 %v2354, %v2335
  %v3343 = vpack.c.b16 %v2374, %v2355
  %v3344 = vpack.c.b16 %v2375, %v2356
  %v3345 = vpack.c.b16 %v2376, %v2357
  %v3346 = vpack.c.b16 %v2377, %v2358
  %v3347 = vpack.c.b16 %v2378, %v2359
  %v3348 = vpack.c.b16 %v2379, %v2360
  %v3349 = vpack.c.b16 %v2380, %v2361
  %v3350 = vpack.c.b16 %v2381, %v2362
  %v3351 = vpack.c.b16 %v2382, %v2363
  %v3352 = vpack.c.b16 %v2383, %v2364
  %v3353 = vpack.c.b16 %v2384, %v2365
  %v3354 = vpack.c.b16 %v2385, %v2366
  %v3355 = vpack.c.b16 %v2386, %v2367
  %v3356 = vpack.c.b16 %v2387, %v2368
  %v3357 = vpack.c.b16 %v2388, %v2369
  %v3358 = vpack.c.b16 %v2389, %v2370
  %v3359 = vpack.c.b16 %v2390, %v2371
  %v3360 = vpack.c.b16 %v2391, %v2372
  %v3361 = vpack.c.b16 %v2392, %v2373
  %v3362 = vpack.c.b16 %v2412, %v2393
  %v3363 = vpack.c.b16 %v2413, %v2394
  %v3364 = vpack.c.b16 %v2414, %v2395
  %v3365 = vpack.c.b16 %v2415, %v2396
  %v3366 = vpack.c.b16 %v2416, %v2397
  %v3367 = vpack.c.b16 %v2417, %v2398
  %v3368 = vpack.c.b16 %v2418, %v2399
  %v3369 = vpack.c.b16 %v2419, %v2400
  %v3370 = vpack.c.b16 %v2420, %v2401
  %v3371 = vpack.c.b16 %v2421, %v2402
  %v3372 = vpack.c.b16 %v2422, %v2403
  %v3373 = vpack.c.b16 %v2423, %v2404
  %v3374 = vpack.c.b16 %v2424, %v2405
  %v3375 = vpack.c.b16 %v2425, %v2406
  %v3376 = vpack.c.b16 %v2426, %v2407
  %v3377 = vpack.c.b16 %v2427, %v2408
  %v3378 = vpack.c.b16 %v2428, %v2409
  %v3379 = vpack.c.b16 %v2429, %v2410
  %v3380 = vpack.c.b16 %v2430, %v2411
  %v3381 = vpack.c.b16 %v2450, %v2431
  %v3382 = vpack.c.b16 %v2451, %v2432
  %v3383 = vpack.c.b16 %v2452, %v2433
  %v3384 = vpack.c.b16 %v2453, %v2434
  %v3385 = vpack.c.b16 %v2454, %v2435
  %v3386 = vpack.c.b16 %v2455, %v2436
  %v3387 = vpack.c.b16 %v2456, %v2437
  %v3388 = vpack.c.b16 %v2457, %v2438
  %v3389 = vpack.c.b16 %v2458, %v2439
  %v3390 = vpack.c.b16 %v2459, %v2440
  %v3391 = vpack.c.b16 %v2460, %v2441
  %v3392 = vpack.c.b16 %v2461, %v2442
  %v3393 = vpack.c.b16 %v2462, %v2443
  %v3394 = vpack.c.b16 %v2463, %v2444
  %v3395 = vpack.c.b16 %v2464, %v2445
  %v3396 = vpack.c.b16 %v2465, %v2446
  %v3397 = vpack.c.b16 %v2466, %v2447
  %v3398 = vpack.c.b16 %v2467, %v2448
  %v3399 = vpack.c.b16 %v2468, %v2449
  %v3400 = vpack.c.b16 %v2488, %v2469
  %v3401 = vpack.c.b16 %v2489, %v2470
  %v3402 = vpack.c.b16 %v2490, %v2471
  %v3403 = vpack.c.b16 %v2491, %v2472
  %v3404 = vpack.c.b16 %v2492, %v2473
  %v3405 = vpack.c.b16 %v2493, %v2474
  %v3406 = vpack.c.b16 %v2494, %v2475
  %v3407 = vpack.c.b16 %v2495, %v2476
  %v3408 = vpack.c.b16 %v2496, %v2477
  %v3409 = vpack.c.b16 %v2497, %v2478
  %v3410 = vpack.c.b16 %v2498, %v2479
  %v3411 = vpack.c.b16 %v2499, %v2480
  %v3412 = vpack.c.b16 %v2500, %v2481
  %v3413 = vpack.c.b16 %v2501, %v2482
  %v3414 = vpack.c.b16 %v2502, %v2483
  %v3415 = vpack.c.b16 %v2503, %v2484
  %v3416 = vpack.c.b16 %v2504, %v2485
  %v3417 = vpack.c.b16 %v2505, %v2486
  %v3418 = vpack.c.b16 %v2506, %v2487
  %v3419 = vpack.c.b16 %v2526, %v2507
  %v3420 = vpack.c.b16 %v2527, %v2508
  %v3421 = vpack.c.b16 %v2528, %v2509
  %v3422 = vpack.c.b16 %v2529, %v2510
  %v3423 = vpack.c.b16 %v2530, %v2511
  %v3424 = vpack.c.b16 %v2531, %v2512
  %v3425 = vpack.c.b16 %v2532, %v2513
  %v3426 = vpack.c.b16 %v2533, %v2514
  %v3427 = vpack.c.b16 %v2534, %v2515
  %v3428 = vpack.c.b16 %v2535, %v2516
  %v3429 = vpack.c.b16 %v2536, %v2517
  %v3430 = vpack.c.b16 %v2537, %v2518
  %v3431 = vpack.c.b16 %v2538, %v2519
  %v3432 = vpack.c.b16 %v2539, %v2520
  %v3433 = vpack.c.b16 %v2540, %v2521
  %v3434 = vpack.c.b16 %v2541, %v2522
  %v3435 = vpack.c.b16 %v2542, %v2523
  %v3436 = vpack.c.b16 %v2543, %v2524
  %v3437 = vpack.c.b16 %v2544, %v2525
  %v3438 = vpack.c.b16 %v2564, %v2545
  %v3439 = vpack.c.b16 %v2565, %v2546
  %v3440 = vpack.c.b16 %v2566, %v2547
  %v3441 = vpack.c.b16 %v2567, %v2548
  %v3442 = vpack.c.b16 %v2568, %v2549
  %v3443 = vpack.c.b16 %v2569, %v2550
  %v3444 = vpack.c.b16 %v2570, %v2551
  %v3445 = vpack.c.b16 %v2571, %v2552
  %v3446 = vpack.c.b16 %v2572, %v2553
  %v3447 = vpack.c.b16 %v2573, %v2554
  %v3448 = vpack.c.b16 %v2574, %v2555
  %v3449 = vpack.c.b16 %v2575, %v2556
  %v3450 = vpack.c.b16 %v2576, %v2557
  %v3451 = vpack.c.b16 %v2577, %v2558
  %v3452 = vpack.c.b16 %v2578, %v2559
  %v3453 = vpack.c.b16 %v2579, %v2560
  %v3454 = vpack.c.b16 %v2580, %v2561
  %v3455 = vpack.c.b16 %v2581, %v2562
  %v3456 = vpack.c.b16 %v2582, %v2563
  %v3457 = vpack.c.b16 %v2602, %v2583
  %v3458 = vpack.c.b16 %v2603, %v2584
  %v3459 = vpack.c.b16 %v2604, %v2585
  %v3460 = vpack.c.b16 %v2605, %v2586
  %v3461 = vpack.c.b16 %v2606, %v2587
  %v3462 = vpack.c.b16 %v2607, %v2588
  %v3463 = vpack.c.b16 %v2608, %v2589
  %v3464 = vpack.c.b16 %v2609, %v2590
  %v3465 = vpack.c.b16 %v2610, %v2591
  %v3466 = vpack.c.b16 %v2611, %v2592
  %v3467 = vpack.c.b16 %v2612, %v2593
  %v3468 = vpack.c.b16 %v2613, %v2594
  %v3469 = vpack.c.b16 %v2614, %v2595
  %v3470 = vpack.c.b16 %v2615, %v2596
  %v3471 = vpack.c.b16 %v2616, %v2597
  %v3472 = vpack.c.b16 %v2617, %v2598
  %v3473 = vpack.c.b16 %v2618, %v2599
  %v3474 = vpack.c.b16 %v2619, %v2600
  %v3475 = vpack.c.b16 %v2620, %v2601
  %v3476 = vpack.c.b16 %v2640, %v2621
  %v3477 = vpack.c.b16 %v2641, %v2622
  %v3478 = vpack.c.b16 %v2642, %v2623
  %v3479 = vpack.c.b16 %v2643, %v2624
  %v3480 = vpack.c.b16 %v2644, %v2625
  %v3481 = vpack.c.b16 %v2645, %v2626
  %v3482 = vpack.c.b16 %v2646, %v2627
  %v3483 = vpack.c.b16 %v2647, %v2628
  %v3484 = vpack.c.b16 %v2648, %v2629
  %v3485 = vpack.c.b16 %v2649, %v2630
  %v3486 = vpack.c.b16 %v2650, %v2631
  %v3487 = vpack.c.b16 %v2651, %v2632
  %v3488 = vpack.c.b16 %v2652, %v2633
  %v3489 = vpack.c.b16 %v2653, %v2634
  %v3490 = vpack.c.b16 %v2654, %v2635
  %v3491 = vpack.c.b16 %v2655, %v2636
  %v3492 = vpack.c.b16 %v2656, %v2637
  %v3493 = vpack.c.b16 %v2657, %v2638
  %v3494 = vpack.c.b16 %v2658, %v2639
  %v3495 = vpack.c.b16 %v2678, %v2659
  %v3496 = vpack.c.b16 %v2679, %v2660
  %v3497 = vpack.c.b16 %v2680, %v2661
  %v3498 = vpack.c.b16 %v2681, %v2662
  %v3499 = vpack.c.b16 %v2682, %v2663
  %v3500 = vpack.c.b16 %v2683, %v2664
  %v3501 = vpack.c.b16 %v2684, %v2665
  %v3502 = vpack.c.b16 %v2685, %v2666
  %v3503 = vpack.c.b16 %v2686, %v2667
  %v3504 = vpack.c.b16 %v2687, %v2668
  %v3505 = vpack.c.b16 %v2688, %v2669
  %v3506 = vpack.c.b16 %v2689, %v2670
  %v3507 = vpack.c.b16 %v2690, %v2671
  %v3508 = vpack.c.b16 %v2691, %v2672
  %v3509 = vpack.c.b16 %v2692, %v2673
  %v3510 = vpack.c.b16 %v2693, %v2674
  %v3511 = vpack.c.b16 %v2694, %v2675
  %v3512 = vpack.c.b16 %v2695, %v2676
  %v3513 = vpack.c.b16 %v2696, %v2677
  %v3514 = vpack.c.b16 %v2716, %v2697
  %v3515 = vpack.c.b16 %v2717, %v2698
  %v3516 = vpack.c.b16 %v2718, %v2699
  %v3517 = vpack.c.b16 %v2719, %v2700
  %v3518 = vpack.c.b16 %v2720, %v2701
  %v3519 = vpack.c.b16 %v2721, %v2702
  %v3520 = vpack.c.b16 %v2722, %v2703
  %v3521 = vpack.c.b16 %v2723, %v2704
  %v3522 = vpack.c.b16 %v2724, %v2705
  %v3523 = vpack.c.b16 %v2725, %v2706
  %v3524 = vpack.c.b16 %v2726, %v2707
  %v3525 = vpack.c.b16 %v2727, %v2708
  %v3526 = vpack.c.b16 %v2728, %v2709
  %v3527 = vpack.c.b16 %v2729, %v2710
  %v3528 = vpack.c.b16 %v2730, %v2711
  %v3529 = vpack.c.b16 %v2731, %v2712
  %v3530 = vpack.c.b16 %v2732, %v2713
  %v3531 = vpack.c.b16 %v2733, %v2714
  %v3532 = vpack.c.b16 %v2734, %v2715
  %v3533 = vpack.c.b16 %v2754, %v2735
  %v3534 = vpack.c.b16 %v2755, %v2736
  %v3535 = vpack.c.b16 %v2756, %v2737
  %v3536 = vpack.c.b16 %v2757, %v2738
  %v3537 = vpack.c.b16 %v2758, %v2739
  %v3538 = vpack.c.b16 %v2759, %v2740
  %v3539 = vpack.c.b16 %v2760, %v2741
  %v3540 = vpack.c.b16 %v2761, %v2742
  %v3541 = vpack.c.b16 %v2762, %v2743
  %v3542 = vpack.c.b16 %v2763, %v2744
  %v3543 = vpack.c.b16 %v2764, %v2745
  %v3544 = vpack.c.b16 %v2765, %v2746
  %v3545 = vpack.c.b16 %v2766, %v2747
  %v3546 = vpack.c.b16 %v2767, %v2748
  %v3547 = vpack.c.b16 %v2768, %v2749
  %v3548 = vpack.c.b16 %v2769, %v2750
  %v3549 = vpack.c.b16 %v2770, %v2751
  %v3550 = vpack.c.b16 %v2771, %v2752
  %v3551 = vpack.c.b16 %v2772, %v2753
  %v3552 = vpack.c.b16 %v2792, %v2773
  %v3553 = vpack.c.b16 %v2793, %v2774
  %v3554 = vpack.c.b16 %v2794, %v2775
  %v3555 = vpack.c.b16 %v2795, %v2776
  %v3556 = vpack.c.b16 %v2796, %v2777
  %v3557 = vpack.c.b16 %v2797, %v2778
  %v3558 = vpack.c.b16 %v2798, %v2779
  %v3559 = vpack.c.b16 %v2799, %v2780
  %v3560 = vpack.c.b16 %v2800, %v2781
  %v3561 = vpack.c.b16 %v2801, %v2782
  %v3562 = vpack.c.b16 %v2802, %v2783
  %v3563 = vpack.c.b16 %v2803, %v2784
  %v3564 = vpack.c.b16 %v2804, %v2785
  %v3565 = vpack.c.b16 %v2805, %v2786
  %v3566 = vpack.c.b16 %v2806, %v2787
  %v3567 = vpack.c.b16 %v2807, %v2788
  %v3568 = vpack.c.b16 %v2808, %v2789
  %v3569 = vpack.c.b16 %v2809, %v2790
  %v3570 = vpack.c.b16 %v2810, %v2791
  %v3571 = vpack.c.b16 %v2830, %v2811
  %v3572 = vpack.c.b16 %v2831, %v2812
  %v3573 = vpack.c.b16 %v2832, %v2813
  %v3574 = vpack.c.b16 %v2833, %v2814
  %v3575 = vpack.c.b16 %v2834, %v2815
  %v3576 = vpack.c.b16 %v2835, %v2816
  %v3577 = vpack.c.b16 %v2836, %v2817
  %v3578 = vpack.c.b16 %v2837, %v2818
  %v3579 = vpack.c.b16 %v2838, %v2819
  %v3580 = vpack.c.b16 %v2839, %v2820
  %v3581 = vpack.c.b16 %v2840, %v2821
  %v3582 = vpack.c.b16 %v2841, %v2822
  %v3583 = vpack.c.b16 %v2842, %v2823
  %v3584 = vpack.c.b16 %v2843, %v2824
  %v3585 = vpack.c.b16 %v2844, %v2825
  %v3586 = vpack.c.b16 %v2845, %v2826
  %v3587 = vpack.c.b16 %v2846, %v2827
  %v3588 = vpack.c.b16 %v2847, %v2828
  %v3589 = vpack.c.b16 %v2848, %v2829
  %v3590 = vpack.c.b16 %v2868, %v2849
  %v3591 = vpack.c.b16 %v2869, %v2850
  %v3592 = vpack.c.b16 %v2870, %v2851
  %v3593 = vpack.c.b16 %v2871, %v2852
  %v3594 = vpack.c.b16 %v2872, %v2853
  %v3595 = vpack.c.b16 %v2873, %v2854
  %v3596 = vpack.c.b16 %v2874, %v2855
  %v3597 = vpack.c.b16 %v2875, %v2856
  %v3598 = vpack.c.b16 %v2876, %v2857
  %v3599 = vpack.c.b16 %v2877, %v2858
  %v3600 = vpack.c.b16 %v2878, %v2859
  %v3601 = vpack.c.b16 %v2879, %v2860
  %v3602 = vpack.c.b16 %v2880, %v2861
  %v3603 = vpack.c.b16 %v2881, %v2862
  %v3604 = vpack.c.b16 %v2882, %v2863
  %v3605 = vpack.c.b16 %v2883, %v2864
  %v3606 = vpack.c.b16 %v2884, %v2865
  %v3607 = vpack.c.b16 %v2885, %v2866
  %v3608 = vpack.c.b16 %v2886, %v2867
  %v3609 = vpack.c.b16 %v2906, %v2887
  %v3610 = vpack.c.b16 %v2907, %v2888
  %v3611 = vpack.c.b16 %v2908, %v2889
  %v3612 = vpack.c.b16 %v2909, %v2890
  %v3613 = vpack.c.b16 %v2910, %v2891
  %v3614 = vpack.c.b16 %v2911, %v2892
  %v3615 = vpack.c.b16 %v2912, %v2893
  %v3616 = vpack.c.b16 %v2913, %v2894
  %v3617 = vpack.c.b16 %v2914, %v2895
  %v3618 = vpack.c.b16 %v2915, %v2896
  %v3619 = vpack.c.b16 %v2916, %v2897
  %v3620 = vpack.c.b16 %v2917, %v2898
  %v3621 = vpack.c.b16 %v2918, %v2899
  %v3622 = vpack.c.b16 %v2919, %v2900
  %v3623 = vpack.c.b16 %v2920, %v2901
  %v3624 = vpack.c.b16 %v2921, %v2902
  %v3625 = vpack.c.b16 %v2922, %v2903
  %v3626 = vpack.c.b16 %v2923, %v2904
  %v3627 = vpack.c.b16 %v2924, %v2905
  %v3628 = vpack.c.b16 %v2944, %v2925
  %v3629 = vpack.c.b16 %v2945, %v2926
  %v3630 = vpack.c.b16 %v2946, %v2927
  %v3631 = vpack.c.b16 %v2947, %v2928
  %v3632 = vpack.c.b16 %v2948, %v2929
  %v3633 = vpack.c.b16 %v2949, %v2930
  %v3634 = vpack.c.b16 %v2950, %v2931
  %v3635 = vpack.c.b16 %v2951, %v2932
  %v3636 = vpack.c.b16 %v2952, %v2933
  %v3637 = vpack.c.b16 %v2953, %v2934
  %v3638 = vpack.c.b16 %v2954, %v2935
  %v3639 = vpack.c.b16 %v2955, %v2936
  %v3640 = vpack.c.b16 %v2956, %v2937
  %v3641 = vpack.c.b16 %v2957, %v2938
  %v3642 = vpack.c.b16 %v2958, %v2939
  %v3643 = vpack.c.b16 %v2959, %v2940
  %v3644 = vpack.c.b16 %v2960, %v2941
  %v3645 = vpack.c.b16 %v2961, %v2942
  %v3646 = vpack.c.b16 %v2962, %v2943
  %v3647 = vpack.c.b16 %v2982, %v2963
  %v3648 = vpack.c.b16 %v2983, %v2964
  %v3649 = vpack.c.b16 %v2984, %v2965
  %v3650 = vpack.c.b16 %v2985, %v2966
  %v3651 = vpack.c.b16 %v2986, %v2967
  %v3652 = vpack.c.b16 %v2987, %v2968
  %v3653 = vpack.c.b16 %v2988, %v2969
  %v3654 = vpack.c.b16 %v2989, %v2970
  %v3655 = vpack.c.b16 %v2990, %v2971
  %v3656 = vpack.c.b16 %v2991, %v2972
  %v3657 = vpack.c.b16 %v2992, %v2973
  %v3658 = vpack.c.b16 %v2993, %v2974
  %v3659 = vpack.c.b16 %v2994, %v2975
  %v3660 = vpack.c.b16 %v2995, %v2976
  %v3661 = vpack.c.b16 %v2996, %v2977
  %v3662 = vpack.c.b16 %v2997, %v2978
  %v3663 = vpack.c.b16 %v2998, %v2979
  %v3664 = vpack.c.b16 %v2999, %v2980
  %v3665 = vpack.c.b16 %v3000, %v2981
  %v3666 = vpack.c.b16 %v3020, %v3001
  %v3667 = vpack.c.b16 %v3021, %v3002
  %v3668 = vpack.c.b16 %v3022, %v3003
  %v3669 = vpack.c.b16 %v3023, %v3004
  %v3670 = vpack.c.b16 %v3024, %v3005
  %v3671 = vpack.c.b16 %v3025, %v3006
  %v3672 = vpack.c.b16 %v3026, %v3007
  %v3673 = vpack.c.b16 %v3027, %v3008
  %v3674 = vpack.c.b16 %v3028, %v3009
  %v3675 = vpack.c.b16 %v3029, %v3010
  %v3676 = vpack.c.b16 %v3030, %v3011
  %v3677 = vpack.c.b16 %v3031, %v3012
  %v3678 = vpack.c.b16 %v3032, %v3013
  %v3679 = vpack.c.b16 %v3033, %v3014
  %v3680 = vpack.c.b16 %v3034, %v3015
  %v3681 = vpack.c.b16 %v3035, %v3016
  %v3682 = vpack.c.b16 %v3036, %v3017
  %v3683 = vpack.c.b16 %v3037, %v3018
  %v3684 = vpack.c.b16 %v3038, %v3019
  %v3685 = vpack.c.b16 %v3058, %v3039
  %v3686 = vpack.c.b16 %v3059, %v3040
  %v3687 = vpack.c.b16 %v3060, %v3041
  %v3688 = vpack.c.b16 %v3061, %v3042
  %v3689 = vpack.c.b16 %v3062, %v3043
  %v3690 = vpack.c.b16 %v3063, %v3044
  %v3691 = vpack.c.b16 %v3064, %v3045
  %v3692 = vpack.c.b16 %v3065, %v3046
  %v3693 = vpack.c.b16 %v3066, %v3047
  %v3694 = vpack.c.b16 %v3067, %v3048
  %v3695 = vpack.c.b16 %v3068, %v3049
  %v3696 = vpack.c.b16 %v3069, %v3050
  %v3697 = vpack.c.b16 %v3070, %v3051
  %v3698 = vpack.c.b16 %v3071, %v3052
  %v3699 = vpack.c.b16 %v3072, %v3053
  %v3700 = vpack.c.b16 %v3073, %v3054
  %v3701 = vpack.c.b16 %v3074, %v3055
  %v3702 = vpack.c.b16 %v3075, %v3056
  %v3703 = vpack.c.b16 %v3076, %v3057
  %v3704 = vpack.c.b16 %v3096, %v3077
  %v3705 = vpack.c.b16 %v3097, %v3078
  %v3706 = vpack.c.b16 %v3098, %v3079
  %v3707 = vpack.c.b16 %v3099, %v3080
  %v3708 = vpack.c.b16 %v3100, %v3081
  %v3709 = vpack.c.b16 %v3101, %v3082
  %v3710 = vpack.c.b16 %v3102, %v3083
  %v3711 = vpack.c.b16 %v3103, %v3084
  %v3712 = vpack.c.b16 %v3104, %v3085
  %v3713 = vpack.c.b16 %v3105, %v3086
  %v3714 = vpack.c.b16 %v3106, %v3087
  %v3715 = vpack.c.b16 %v3107, %v3088
  %v3716 = vpack.c.b16 %v3108, %v3089
  %v3717 = vpack.c.b16 %v3109, %v3090
  %v3718 = vpack.c.b16 %v3110, %v3091
  %v3719 = vpack.c.b16 %v3111, %v3092
  %v3720 = vpack.c.b16 %v3112, %v3093
  %v3721 = vpack.c.b16 %v3113, %v3094
  %v3722 = vpack.c.b16 %v3114, %v3095
  %4331 = vmatprep.subr.bf16.mxu0 %v3249
  %4332 = vmatpush1.bf16.msra.mxu0 %v3248
  %4333 = vmatprep.subr.bf16.mxu0 %v3230
  %4334 = vmatpush1.bf16.msra.mxu0 %v3229
  %4335 = vmatprep.subr.bf16.mxu0 %v3211
  %4336 = vmatpush1.bf16.msra.mxu0 %v3210
  %4337 = vmatprep.subr.bf16.mxu0 %v3192
  %4338 = vmatpush1.bf16.msra.mxu0 %v3191
  %4339 = vmatprep.subr.bf16.mxu0 %v3173
  %4340 = vmatpush1.bf16.msra.mxu0 %v3172
  %4341 = vmatprep.subr.bf16.mxu0 %v3154
  %4342 = vmatpush1.bf16.msra.mxu0 %v3153
  %4343 = vmatprep.subr.bf16.mxu0 %v3135
  %4344 = vmatpush1.bf16.msra.mxu0 %v3134
  %4345 = vmatprep.subr.bf16.mxu0 %v3116
  %4346 = vmatpush1.bf16.msra.mxu0 %v3115
  %4347 = vmatprep.subr.bf16.mxu0 %v3401
  %4348 = vmatpush2.bf16.msra.mxu0 %v3400
  %4349 = vmatprep.subr.bf16.mxu0 %v3382
  %4350 = vmatpush2.bf16.msra.mxu0 %v3381
  %4351 = vmatprep.subr.bf16.mxu0 %v3363
  %4352 = vmatpush2.bf16.msra.mxu0 %v3362
  %4353 = vmatprep.subr.bf16.mxu0 %v3344
  %4354 = vmatpush2.bf16.msra.mxu0 %v3343
  %4355 = vmatprep.subr.bf16.mxu0 %v3325
  %4356 = vmatpush2.bf16.msra.mxu0 %v3324
  %4357 = vmatprep.subr.bf16.mxu0 %v3306
  %4358 = vmatpush2.bf16.msra.mxu0 %v3305
  %4359 = vmatprep.subr.bf16.mxu0 %v3287
  %4360 = vmatpush2.bf16.msra.mxu0 %v3286
  %4361 = vmatprep.subr.bf16.mxu0 %v3268
  %4362 = vmatpush2.bf16.msra.mxu0 %v3267
  %4363 = vmatprep.mubr.bf16.mxu0 %v1228
  %4364 = vmatmul.mubr.bf16.gmra.mxu0 %v1227
  %v4365 = vpop.f32.mrf.mxu0
  %v4366 = vadd.f32 %v1087, %v4365
  %v4367 = vpop.f32.mrf.mxu0
  %v4368 = vadd.f32 %v1091, %v4367
  %v4369 = vpop.f32.mrf.mxu0
  %v4370 = vadd.f32 %v1087, %v4369
  %v4371 = vpop.f32.mrf.mxu0
  %v4372 = vadd.f32 %v1091, %v4371
  %4373 = vmatprep.mubr.bf16.mxu0 %v1232
  %4374 = vmatmul.mubr.bf16.gmra.mxu0 %v1231
  %v4375 = vpop.f32.mrf.mxu0
  %v4376 = vadd.f32 %v1087, %v4375
  %v4377 = vpop.f32.mrf.mxu0
  %v4378 = vadd.f32 %v1091, %v4377
  %v4379 = vpop.f32.mrf.mxu0
  %v4380 = vadd.f32 %v1087, %v4379
  %v4381 = vpop.f32.mrf.mxu0
  %v4382 = vadd.f32 %v1091, %v4381
  %4383 = vmatprep.mubr.bf16.mxu0 %v1236
  %4384 = vmatmul.mubr.bf16.gmra.mxu0 %v1235
  %v4385 = vpop.f32.mrf.mxu0
  %v4386 = vadd.f32 %v1087, %v4385
  %v4387 = vpop.f32.mrf.mxu0
  %v4388 = vadd.f32 %v1091, %v4387
  %v4389 = vpop.f32.mrf.mxu0
  %v4390 = vadd.f32 %v1087, %v4389
  %v4391 = vpop.f32.mrf.mxu0
  %v4392 = vadd.f32 %v1091, %v4391
  %4393 = vmatprep.mubr.bf16.mxu0 %v1240
  %4394 = vmatmul.mubr.bf16.gmra.mxu0 %v1239
  %v4395 = vpop.f32.mrf.mxu0
  %v4396 = vadd.f32 %v1087, %v4395
  %v4397 = vpop.f32.mrf.mxu0
  %v4398 = vadd.f32 %v1091, %v4397
  %v4399 = vpop.f32.mrf.mxu0
  %v4400 = vadd.f32 %v1087, %v4399
  %v4401 = vpop.f32.mrf.mxu0
  %v4402 = vadd.f32 %v1091, %v4401
  %4403 = vdwg.mxu0
  %4404 = vmatprep.subr.bf16.mxu0 %v3553
  %4405 = vmatpush1.bf16.msra.mxu0 %v3552
  %4406 = vmatprep.subr.bf16.mxu0 %v3534
  %4407 = vmatpush1.bf16.msra.mxu0 %v3533
  %4408 = vmatprep.subr.bf16.mxu0 %v3515
  %4409 = vmatpush1.bf16.msra.mxu0 %v3514
  %4410 = vmatprep.subr.bf16.mxu0 %v3496
  %4411 = vmatpush1.bf16.msra.mxu0 %v3495
  %4412 = vmatprep.subr.bf16.mxu0 %v3477
  %4413 = vmatpush1.bf16.msra.mxu0 %v3476
  %4414 = vmatprep.subr.bf16.mxu0 %v3458
  %4415 = vmatpush1.bf16.msra.mxu0 %v3457
  %4416 = vmatprep.subr.bf16.mxu0 %v3439
  %4417 = vmatpush1.bf16.msra.mxu0 %v3438
  %4418 = vmatprep.subr.bf16.mxu0 %v3420
  %4419 = vmatpush1.bf16.msra.mxu0 %v3419
  %4420 = vmatprep.subr.bf16.mxu0 %v3705
  %4421 = vmatpush2.bf16.msra.mxu0 %v3704
  %4422 = vmatprep.subr.bf16.mxu0 %v3686
  %4423 = vmatpush2.bf16.msra.mxu0 %v3685
  %4424 = vmatprep.subr.bf16.mxu0 %v3667
  %4425 = vmatpush2.bf16.msra.mxu0 %v3666
  %4426 = vmatprep.subr.bf16.mxu0 %v3648
  %4427 = vmatpush2.bf16.msra.mxu0 %v3647
  %4428 = vmatprep.subr.bf16.mxu0 %v3629
  %4429 = vmatpush2.bf16.msra.mxu0 %v3628
  %4430 = vmatprep.subr.bf16.mxu0 %v3610
  %4431 = vmatpush2.bf16.msra.mxu0 %v3609
  %4432 = vmatprep.subr.bf16.mxu0 %v3591
  %4433 = vmatpush2.bf16.msra.mxu0 %v3590
  %4434 = vmatprep.subr.bf16.mxu0 %v3572
  %4435 = vmatpush2.bf16.msra.mxu0 %v3571
  %4436 = vmatprep.mubr.bf16.mxu0 %v1230
  %4437 = vmatmul.mubr.bf16.gmra.mxu0 %v1229
  %v4438 = vpop.f32.mrf.mxu0
  %v4439 = vadd.f32 %v4366, %v4438
  %v4440 = vpop.f32.mrf.mxu0
  %v4441 = vadd.f32 %v4368, %v4440
  %v4442 = vpop.f32.mrf.mxu0
  %v4443 = vadd.f32 %v4370, %v4442
  %v4444 = vpop.f32.mrf.mxu0
  %v4445 = vadd.f32 %v4372, %v4444
  %4446 = vmatprep.mubr.bf16.mxu0 %v1234
  %4447 = vmatmul.mubr.bf16.gmra.mxu0 %v1233
  %v4448 = vpop.f32.mrf.mxu0
  %v4449 = vadd.f32 %v4376, %v4448
  %v4450 = vpop.f32.mrf.mxu0
  %v4451 = vadd.f32 %v4378, %v4450
  %v4452 = vpop.f32.mrf.mxu0
  %v4453 = vadd.f32 %v4380, %v4452
  %v4454 = vpop.f32.mrf.mxu0
  %v4455 = vadd.f32 %v4382, %v4454
  %4456 = vmatprep.mubr.bf16.mxu0 %v1238
  %4457 = vmatmul.mubr.bf16.gmra.mxu0 %v1237
  %v4458 = vpop.f32.mrf.mxu0
  %v4459 = vadd.f32 %v4386, %v4458
  %v4460 = vpop.f32.mrf.mxu0
  %v4461 = vadd.f32 %v4388, %v4460
  %v4462 = vpop.f32.mrf.mxu0
  %v4463 = vadd.f32 %v4390, %v4462
  %v4464 = vpop.f32.mrf.mxu0
  %v4465 = vadd.f32 %v4392, %v4464
  %4466 = vmatprep.mubr.bf16.mxu0 %v1242
  %4467 = vmatmul.mubr.bf16.gmra.mxu0 %v1241
  %v4468 = vpop.f32.mrf.mxu0
  %v4469 = vadd.f32 %v4396, %v4468
  %v4470 = vpop.f32.mrf.mxu0
  %v4471 = vadd.f32 %v4398, %v4470
  %v4472 = vpop.f32.mrf.mxu0
  %v4473 = vadd.f32 %v4400, %v4472
  %v4474 = vpop.f32.mrf.mxu0
  %v4475 = vadd.f32 %v4402, %v4474
  %4476 = vdwg.mxu0
  %4477 = vmatprep.subr.bf16.mxu0 %v3251
  %4478 = vmatpush1.bf16.msra.mxu0 %v3250
  %4479 = vmatprep.subr.bf16.mxu0 %v3232
  %4480 = vmatpush1.bf16.msra.mxu0 %v3231
  %4481 = vmatprep.subr.bf16.mxu0 %v3213
  %4482 = vmatpush1.bf16.msra.mxu0 %v3212
  %4483 = vmatprep.subr.bf16.mxu0 %v3194
  %4484 = vmatpush1.bf16.msra.mxu0 %v3193
  %4485 = vmatprep.subr.bf16.mxu0 %v3175
  %4486 = vmatpush1.bf16.msra.mxu0 %v3174
  %4487 = vmatprep.subr.bf16.mxu0 %v3156
  %4488 = vmatpush1.bf16.msra.mxu0 %v3155
  %4489 = vmatprep.subr.bf16.mxu0 %v3137
  %4490 = vmatpush1.bf16.msra.mxu0 %v3136
  %4491 = vmatprep.subr.bf16.mxu0 %v3118
  %4492 = vmatpush1.bf16.msra.mxu0 %v3117
  %4493 = vmatprep.subr.bf16.mxu0 %v3403
  %4494 = vmatpush2.bf16.msra.mxu0 %v3402
  %4495 = vmatprep.subr.bf16.mxu0 %v3384
  %4496 = vmatpush2.bf16.msra.mxu0 %v3383
  %4497 = vmatprep.subr.bf16.mxu0 %v3365
  %4498 = vmatpush2.bf16.msra.mxu0 %v3364
  %4499 = vmatprep.subr.bf16.mxu0 %v3346
  %4500 = vmatpush2.bf16.msra.mxu0 %v3345
  %4501 = vmatprep.subr.bf16.mxu0 %v3327
  %4502 = vmatpush2.bf16.msra.mxu0 %v3326
  %4503 = vmatprep.subr.bf16.mxu0 %v3308
  %4504 = vmatpush2.bf16.msra.mxu0 %v3307
  %4505 = vmatprep.subr.bf16.mxu0 %v3289
  %4506 = vmatpush2.bf16.msra.mxu0 %v3288
  %4507 = vmatprep.subr.bf16.mxu0 %v3270
  %4508 = vmatpush2.bf16.msra.mxu0 %v3269
  %4509 = vmatprep.mubr.bf16.mxu0 %v1228
  %4510 = vmatmul.mubr.bf16.gmra.mxu0 %v1227
  %v4511 = vpop.f32.mrf.mxu0
  %v4512 = vadd.f32 %v1095, %v4511
  %v4513 = vpop.f32.mrf.mxu0
  %v4514 = vadd.f32 %v1099, %v4513
  %v4515 = vpop.f32.mrf.mxu0
  %v4516 = vadd.f32 %v1095, %v4515
  %v4517 = vpop.f32.mrf.mxu0
  %v4518 = vadd.f32 %v1099, %v4517
  %4519 = vmatprep.mubr.bf16.mxu0 %v1232
  %4520 = vmatmul.mubr.bf16.gmra.mxu0 %v1231
  %v4521 = vpop.f32.mrf.mxu0
  %v4522 = vadd.f32 %v1095, %v4521
  %v4523 = vpop.f32.mrf.mxu0
  %v4524 = vadd.f32 %v1099, %v4523
  %v4525 = vpop.f32.mrf.mxu0
  %v4526 = vadd.f32 %v1095, %v4525
  %v4527 = vpop.f32.mrf.mxu0
  %v4528 = vadd.f32 %v1099, %v4527
  %4529 = vmatprep.mubr.bf16.mxu0 %v1236
  %4530 = vmatmul.mubr.bf16.gmra.mxu0 %v1235
  %v4531 = vpop.f32.mrf.mxu0
  %v4532 = vadd.f32 %v1095, %v4531
  %v4533 = vpop.f32.mrf.mxu0
  %v4534 = vadd.f32 %v1099, %v4533
  %v4535 = vpop.f32.mrf.mxu0
  %v4536 = vadd.f32 %v1095, %v4535
  %v4537 = vpop.f32.mrf.mxu0
  %v4538 = vadd.f32 %v1099, %v4537
  %4539 = vmatprep.mubr.bf16.mxu0 %v1240
  %4540 = vmatmul.mubr.bf16.gmra.mxu0 %v1239
  %v4541 = vpop.f32.mrf.mxu0
  %v4542 = vadd.f32 %v1095, %v4541
  %v4543 = vpop.f32.mrf.mxu0
  %v4544 = vadd.f32 %v1099, %v4543
  %v4545 = vpop.f32.mrf.mxu0
  %v4546 = vadd.f32 %v1095, %v4545
  %v4547 = vpop.f32.mrf.mxu0
  %v4548 = vadd.f32 %v1099, %v4547
  %4549 = vdwg.mxu0
  %4550 = vmatprep.subr.bf16.mxu0 %v3555
  %4551 = vmatpush1.bf16.msra.mxu0 %v3554
  %4552 = vmatprep.subr.bf16.mxu0 %v3536
  %4553 = vmatpush1.bf16.msra.mxu0 %v3535
  %4554 = vmatprep.subr.bf16.mxu0 %v3517
  %4555 = vmatpush1.bf16.msra.mxu0 %v3516
  %4556 = vmatprep.subr.bf16.mxu0 %v3498
  %4557 = vmatpush1.bf16.msra.mxu0 %v3497
  %4558 = vmatprep.subr.bf16.mxu0 %v3479
  %4559 = vmatpush1.bf16.msra.mxu0 %v3478
  %4560 = vmatprep.subr.bf16.mxu0 %v3460
  %4561 = vmatpush1.bf16.msra.mxu0 %v3459
  %4562 = vmatprep.subr.bf16.mxu0 %v3441
  %4563 = vmatpush1.bf16.msra.mxu0 %v3440
  %4564 = vmatprep.subr.bf16.mxu0 %v3422
  %4565 = vmatpush1.bf16.msra.mxu0 %v3421
  %4566 = vmatprep.subr.bf16.mxu0 %v3707
  %4567 = vmatpush2.bf16.msra.mxu0 %v3706
  %4568 = vmatprep.subr.bf16.mxu0 %v3688
  %4569 = vmatpush2.bf16.msra.mxu0 %v3687
  %4570 = vmatprep.subr.bf16.mxu0 %v3669
  %4571 = vmatpush2.bf16.msra.mxu0 %v3668
  %4572 = vmatprep.subr.bf16.mxu0 %v3650
  %4573 = vmatpush2.bf16.msra.mxu0 %v3649
  %4574 = vmatprep.subr.bf16.mxu0 %v3631
  %4575 = vmatpush2.bf16.msra.mxu0 %v3630
  %4576 = vmatprep.subr.bf16.mxu0 %v3612
  %4577 = vmatpush2.bf16.msra.mxu0 %v3611
  %4578 = vmatprep.subr.bf16.mxu0 %v3593
  %4579 = vmatpush2.bf16.msra.mxu0 %v3592
  %4580 = vmatprep.subr.bf16.mxu0 %v3574
  %4581 = vmatpush2.bf16.msra.mxu0 %v3573
  %4582 = vmatprep.mubr.bf16.mxu0 %v1230
  %4583 = vmatmul.mubr.bf16.gmra.mxu0 %v1229
  %v4584 = vpop.f32.mrf.mxu0
  %v4585 = vadd.f32 %v4512, %v4584
  %v4586 = vpop.f32.mrf.mxu0
  %v4587 = vadd.f32 %v4514, %v4586
  %v4588 = vpop.f32.mrf.mxu0
  %v4589 = vadd.f32 %v4516, %v4588
  %v4590 = vpop.f32.mrf.mxu0
  %v4591 = vadd.f32 %v4518, %v4590
  %4592 = vmatprep.mubr.bf16.mxu0 %v1234
  %4593 = vmatmul.mubr.bf16.gmra.mxu0 %v1233
  %v4594 = vpop.f32.mrf.mxu0
  %v4595 = vadd.f32 %v4522, %v4594
  %v4596 = vpop.f32.mrf.mxu0
  %v4597 = vadd.f32 %v4524, %v4596
  %v4598 = vpop.f32.mrf.mxu0
  %v4599 = vadd.f32 %v4526, %v4598
  %v4600 = vpop.f32.mrf.mxu0
  %v4601 = vadd.f32 %v4528, %v4600
  %4602 = vmatprep.mubr.bf16.mxu0 %v1238
  %4603 = vmatmul.mubr.bf16.gmra.mxu0 %v1237
  %v4604 = vpop.f32.mrf.mxu0
  %v4605 = vadd.f32 %v4532, %v4604
  %v4606 = vpop.f32.mrf.mxu0
  %v4607 = vadd.f32 %v4534, %v4606
  %v4608 = vpop.f32.mrf.mxu0
  %v4609 = vadd.f32 %v4536, %v4608
  %v4610 = vpop.f32.mrf.mxu0
  %v4611 = vadd.f32 %v4538, %v4610
  %4612 = vmatprep.mubr.bf16.mxu0 %v1242
  %4613 = vmatmul.mubr.bf16.gmra.mxu0 %v1241
  %v4614 = vpop.f32.mrf.mxu0
  %v4615 = vadd.f32 %v4542, %v4614
  %v4616 = vpop.f32.mrf.mxu0
  %v4617 = vadd.f32 %v4544, %v4616
  %v4618 = vpop.f32.mrf.mxu0
  %v4619 = vadd.f32 %v4546, %v4618
  %v4620 = vpop.f32.mrf.mxu0
  %v4621 = vadd.f32 %v4548, %v4620
  %4622 = vdwg.mxu0
  %4623 = vmatprep.subr.bf16.mxu0 %v3253
  %4624 = vmatpush1.bf16.msra.mxu0 %v3252
  %4625 = vmatprep.subr.bf16.mxu0 %v3234
  %4626 = vmatpush1.bf16.msra.mxu0 %v3233
  %4627 = vmatprep.subr.bf16.mxu0 %v3215
  %4628 = vmatpush1.bf16.msra.mxu0 %v3214
  %4629 = vmatprep.subr.bf16.mxu0 %v3196
  %4630 = vmatpush1.bf16.msra.mxu0 %v3195
  %4631 = vmatprep.subr.bf16.mxu0 %v3177
  %4632 = vmatpush1.bf16.msra.mxu0 %v3176
  %4633 = vmatprep.subr.bf16.mxu0 %v3158
  %4634 = vmatpush1.bf16.msra.mxu0 %v3157
  %4635 = vmatprep.subr.bf16.mxu0 %v3139
  %4636 = vmatpush1.bf16.msra.mxu0 %v3138
  %4637 = vmatprep.subr.bf16.mxu0 %v3120
  %4638 = vmatpush1.bf16.msra.mxu0 %v3119
  %4639 = vmatprep.subr.bf16.mxu0 %v3405
  %4640 = vmatpush2.bf16.msra.mxu0 %v3404
  %4641 = vmatprep.subr.bf16.mxu0 %v3386
  %4642 = vmatpush2.bf16.msra.mxu0 %v3385
  %4643 = vmatprep.subr.bf16.mxu0 %v3367
  %4644 = vmatpush2.bf16.msra.mxu0 %v3366
  %4645 = vmatprep.subr.bf16.mxu0 %v3348
  %4646 = vmatpush2.bf16.msra.mxu0 %v3347
  %4647 = vmatprep.subr.bf16.mxu0 %v3329
  %4648 = vmatpush2.bf16.msra.mxu0 %v3328
  %4649 = vmatprep.subr.bf16.mxu0 %v3310
  %4650 = vmatpush2.bf16.msra.mxu0 %v3309
  %4651 = vmatprep.subr.bf16.mxu0 %v3291
  %4652 = vmatpush2.bf16.msra.mxu0 %v3290
  %4653 = vmatprep.subr.bf16.mxu0 %v3272
  %4654 = vmatpush2.bf16.msra.mxu0 %v3271
  %4655 = vmatprep.mubr.bf16.mxu0 %v1228
  %4656 = vmatmul.mubr.bf16.gmra.mxu0 %v1227
  %v4657 = vpop.f32.mrf.mxu0
  %v4658 = vadd.f32 %v1103, %v4657
  %v4659 = vpop.f32.mrf.mxu0
  %v4660 = vadd.f32 %v1107, %v4659
  %v4661 = vpop.f32.mrf.mxu0
  %v4662 = vadd.f32 %v1103, %v4661
  %v4663 = vpop.f32.mrf.mxu0
  %v4664 = vadd.f32 %v1107, %v4663
  %4665 = vmatprep.mubr.bf16.mxu0 %v1232
  %4666 = vmatmul.mubr.bf16.gmra.mxu0 %v1231
  %v4667 = vpop.f32.mrf.mxu0
  %v4668 = vadd.f32 %v1103, %v4667
  %v4669 = vpop.f32.mrf.mxu0
  %v4670 = vadd.f32 %v1107, %v4669
  %v4671 = vpop.f32.mrf.mxu0
  %v4672 = vadd.f32 %v1103, %v4671
  %v4673 = vpop.f32.mrf.mxu0
  %v4674 = vadd.f32 %v1107, %v4673
  %4675 = vmatprep.mubr.bf16.mxu0 %v1236
  %4676 = vmatmul.mubr.bf16.gmra.mxu0 %v1235
  %v4677 = vpop.f32.mrf.mxu0
  %v4678 = vadd.f32 %v1103, %v4677
  %v4679 = vpop.f32.mrf.mxu0
  %v4680 = vadd.f32 %v1107, %v4679
  %v4681 = vpop.f32.mrf.mxu0
  %v4682 = vadd.f32 %v1103, %v4681
  %v4683 = vpop.f32.mrf.mxu0
  %v4684 = vadd.f32 %v1107, %v4683
  %4685 = vmatprep.mubr.bf16.mxu0 %v1240
  %4686 = vmatmul.mubr.bf16.gmra.mxu0 %v1239
  %v4687 = vpop.f32.mrf.mxu0
  %v4688 = vadd.f32 %v1103, %v4687
  %v4689 = vpop.f32.mrf.mxu0
  %v4690 = vadd.f32 %v1107, %v4689
  %v4691 = vpop.f32.mrf.mxu0
  %v4692 = vadd.f32 %v1103, %v4691
  %v4693 = vpop.f32.mrf.mxu0
  %v4694 = vadd.f32 %v1107, %v4693
  %4695 = vdwg.mxu0
  %4696 = vmatprep.subr.bf16.mxu0 %v3557
  %4697 = vmatpush1.bf16.msra.mxu0 %v3556
  %4698 = vmatprep.subr.bf16.mxu0 %v3538
  %4699 = vmatpush1.bf16.msra.mxu0 %v3537
  %4700 = vmatprep.subr.bf16.mxu0 %v3519
  %4701 = vmatpush1.bf16.msra.mxu0 %v3518
  %4702 = vmatprep.subr.bf16.mxu0 %v3500
  %4703 = vmatpush1.bf16.msra.mxu0 %v3499
  %4704 = vmatprep.subr.bf16.mxu0 %v3481
  %4705 = vmatpush1.bf16.msra.mxu0 %v3480
  %4706 = vmatprep.subr.bf16.mxu0 %v3462
  %4707 = vmatpush1.bf16.msra.mxu0 %v3461
  %4708 = vmatprep.subr.bf16.mxu0 %v3443
  %4709 = vmatpush1.bf16.msra.mxu0 %v3442
  %4710 = vmatprep.subr.bf16.mxu0 %v3424
  %4711 = vmatpush1.bf16.msra.mxu0 %v3423
  %4712 = vmatprep.subr.bf16.mxu0 %v3709
  %4713 = vmatpush2.bf16.msra.mxu0 %v3708
  %4714 = vmatprep.subr.bf16.mxu0 %v3690
  %4715 = vmatpush2.bf16.msra.mxu0 %v3689
  %4716 = vmatprep.subr.bf16.mxu0 %v3671
  %4717 = vmatpush2.bf16.msra.mxu0 %v3670
  %4718 = vmatprep.subr.bf16.mxu0 %v3652
  %4719 = vmatpush2.bf16.msra.mxu0 %v3651
  %4720 = vmatprep.subr.bf16.mxu0 %v3633
  %4721 = vmatpush2.bf16.msra.mxu0 %v3632
  %4722 = vmatprep.subr.bf16.mxu0 %v3614
  %4723 = vmatpush2.bf16.msra.mxu0 %v3613
  %4724 = vmatprep.subr.bf16.mxu0 %v3595
  %4725 = vmatpush2.bf16.msra.mxu0 %v3594
  %4726 = vmatprep.subr.bf16.mxu0 %v3576
  %4727 = vmatpush2.bf16.msra.mxu0 %v3575
  %4728 = vmatprep.mubr.bf16.mxu0 %v1230
  %4729 = vmatmul.mubr.bf16.gmra.mxu0 %v1229
  %v4730 = vpop.f32.mrf.mxu0
  %v4731 = vadd.f32 %v4658, %v4730
  %v4732 = vpop.f32.mrf.mxu0
  %v4733 = vadd.f32 %v4660, %v4732
  %v4734 = vpop.f32.mrf.mxu0
  %v4735 = vadd.f32 %v4662, %v4734
  %v4736 = vpop.f32.mrf.mxu0
  %v4737 = vadd.f32 %v4664, %v4736
  %4738 = vmatprep.mubr.bf16.mxu0 %v1234
  %4739 = vmatmul.mubr.bf16.gmra.mxu0 %v1233
  %v4740 = vpop.f32.mrf.mxu0
  %v4741 = vadd.f32 %v4668, %v4740
  %v4742 = vpop.f32.mrf.mxu0
  %v4743 = vadd.f32 %v4670, %v4742
  %v4744 = vpop.f32.mrf.mxu0
  %v4745 = vadd.f32 %v4672, %v4744
  %v4746 = vpop.f32.mrf.mxu0
  %v4747 = vadd.f32 %v4674, %v4746
  %4748 = vmatprep.mubr.bf16.mxu0 %v1238
  %4749 = vmatmul.mubr.bf16.gmra.mxu0 %v1237
  %v4750 = vpop.f32.mrf.mxu0
  %v4751 = vadd.f32 %v4678, %v4750
  %v4752 = vpop.f32.mrf.mxu0
  %v4753 = vadd.f32 %v4680, %v4752
  %v4754 = vpop.f32.mrf.mxu0
  %v4755 = vadd.f32 %v4682, %v4754
  %v4756 = vpop.f32.mrf.mxu0
  %v4757 = vadd.f32 %v4684, %v4756
  %4758 = vmatprep.mubr.bf16.mxu0 %v1242
  %4759 = vmatmul.mubr.bf16.gmra.mxu0 %v1241
  %v4760 = vpop.f32.mrf.mxu0
  %v4761 = vadd.f32 %v4688, %v4760
  %v4762 = vpop.f32.mrf.mxu0
  %v4763 = vadd.f32 %v4690, %v4762
  %v4764 = vpop.f32.mrf.mxu0
  %v4765 = vadd.f32 %v4692, %v4764
  %v4766 = vpop.f32.mrf.mxu0
  %v4767 = vadd.f32 %v4694, %v4766
  %4768 = vdwg.mxu0
  %4769 = vmatprep.subr.bf16.mxu0 %v3255
  %4770 = vmatpush1.bf16.msra.mxu0 %v3254
  %4771 = vmatprep.subr.bf16.mxu0 %v3236
  %4772 = vmatpush1.bf16.msra.mxu0 %v3235
  %4773 = vmatprep.subr.bf16.mxu0 %v3217
  %4774 = vmatpush1.bf16.msra.mxu0 %v3216
  %4775 = vmatprep.subr.bf16.mxu0 %v3198
  %4776 = vmatpush1.bf16.msra.mxu0 %v3197
  %4777 = vmatprep.subr.bf16.mxu0 %v3179
  %4778 = vmatpush1.bf16.msra.mxu0 %v3178
  %4779 = vmatprep.subr.bf16.mxu0 %v3160
  %4780 = vmatpush1.bf16.msra.mxu0 %v3159
  %4781 = vmatprep.subr.bf16.mxu0 %v3141
  %4782 = vmatpush1.bf16.msra.mxu0 %v3140
  %4783 = vmatprep.subr.bf16.mxu0 %v3122
  %4784 = vmatpush1.bf16.msra.mxu0 %v3121
  %4785 = vmatprep.subr.bf16.mxu0 %v3407
  %4786 = vmatpush2.bf16.msra.mxu0 %v3406
  %4787 = vmatprep.subr.bf16.mxu0 %v3388
  %4788 = vmatpush2.bf16.msra.mxu0 %v3387
  %4789 = vmatprep.subr.bf16.mxu0 %v3369
  %4790 = vmatpush2.bf16.msra.mxu0 %v3368
  %4791 = vmatprep.subr.bf16.mxu0 %v3350
  %4792 = vmatpush2.bf16.msra.mxu0 %v3349
  %4793 = vmatprep.subr.bf16.mxu0 %v3331
  %4794 = vmatpush2.bf16.msra.mxu0 %v3330
  %4795 = vmatprep.subr.bf16.mxu0 %v3312
  %4796 = vmatpush2.bf16.msra.mxu0 %v3311
  %4797 = vmatprep.subr.bf16.mxu0 %v3293
  %4798 = vmatpush2.bf16.msra.mxu0 %v3292
  %4799 = vmatprep.subr.bf16.mxu0 %v3274
  %4800 = vmatpush2.bf16.msra.mxu0 %v3273
  %4801 = vmatprep.mubr.bf16.mxu0 %v1228
  %4802 = vmatmul.mubr.bf16.gmra.mxu0 %v1227
  %v4803 = vpop.f32.mrf.mxu0
  %v4804 = vadd.f32 %v1111, %v4803
  %v4805 = vpop.f32.mrf.mxu0
  %v4806 = vadd.f32 %v1115, %v4805
  %v4807 = vpop.f32.mrf.mxu0
  %v4808 = vadd.f32 %v1111, %v4807
  %v4809 = vpop.f32.mrf.mxu0
  %v4810 = vadd.f32 %v1115, %v4809
  %4811 = vmatprep.mubr.bf16.mxu0 %v1232
  %4812 = vmatmul.mubr.bf16.gmra.mxu0 %v1231
  %v4813 = vpop.f32.mrf.mxu0
  %v4814 = vadd.f32 %v1111, %v4813
  %v4815 = vpop.f32.mrf.mxu0
  %v4816 = vadd.f32 %v1115, %v4815
  %v4817 = vpop.f32.mrf.mxu0
  %v4818 = vadd.f32 %v1111, %v4817
  %v4819 = vpop.f32.mrf.mxu0
  %v4820 = vadd.f32 %v1115, %v4819
  %4821 = vmatprep.mubr.bf16.mxu0 %v1236
  %4822 = vmatmul.mubr.bf16.gmra.mxu0 %v1235
  %v4823 = vpop.f32.mrf.mxu0
  %v4824 = vadd.f32 %v1111, %v4823
  %v4825 = vpop.f32.mrf.mxu0
  %v4826 = vadd.f32 %v1115, %v4825
  %v4827 = vpop.f32.mrf.mxu0
  %v4828 = vadd.f32 %v1111, %v4827
  %v4829 = vpop.f32.mrf.mxu0
  %v4830 = vadd.f32 %v1115, %v4829
  %4831 = vmatprep.mubr.bf16.mxu0 %v1240
  %4832 = vmatmul.mubr.bf16.gmra.mxu0 %v1239
  %v4833 = vpop.f32.mrf.mxu0
  %v4834 = vadd.f32 %v1111, %v4833
  %v4835 = vpop.f32.mrf.mxu0
  %v4836 = vadd.f32 %v1115, %v4835
  %v4837 = vpop.f32.mrf.mxu0
  %v4838 = vadd.f32 %v1111, %v4837
  %v4839 = vpop.f32.mrf.mxu0
  %v4840 = vadd.f32 %v1115, %v4839
  %4841 = vdwg.mxu0
  %4842 = vmatprep.subr.bf16.mxu0 %v3559
  %4843 = vmatpush1.bf16.msra.mxu0 %v3558
  %4844 = vmatprep.subr.bf16.mxu0 %v3540
  %4845 = vmatpush1.bf16.msra.mxu0 %v3539
  %4846 = vmatprep.subr.bf16.mxu0 %v3521
  %4847 = vmatpush1.bf16.msra.mxu0 %v3520
  %4848 = vmatprep.subr.bf16.mxu0 %v3502
  %4849 = vmatpush1.bf16.msra.mxu0 %v3501
  %4850 = vmatprep.subr.bf16.mxu0 %v3483
  %4851 = vmatpush1.bf16.msra.mxu0 %v3482
  %4852 = vmatprep.subr.bf16.mxu0 %v3464
  %4853 = vmatpush1.bf16.msra.mxu0 %v3463
  %4854 = vmatprep.subr.bf16.mxu0 %v3445
  %4855 = vmatpush1.bf16.msra.mxu0 %v3444
  %4856 = vmatprep.subr.bf16.mxu0 %v3426
  %4857 = vmatpush1.bf16.msra.mxu0 %v3425
  %4858 = vmatprep.subr.bf16.mxu0 %v3711
  %4859 = vmatpush2.bf16.msra.mxu0 %v3710
  %4860 = vmatprep.subr.bf16.mxu0 %v3692
  %4861 = vmatpush2.bf16.msra.mxu0 %v3691
  %4862 = vmatprep.subr.bf16.mxu0 %v3673
  %4863 = vmatpush2.bf16.msra.mxu0 %v3672
  %4864 = vmatprep.subr.bf16.mxu0 %v3654
  %4865 = vmatpush2.bf16.msra.mxu0 %v3653
  %4866 = vmatprep.subr.bf16.mxu0 %v3635
  %4867 = vmatpush2.bf16.msra.mxu0 %v3634
  %4868 = vmatprep.subr.bf16.mxu0 %v3616
  %4869 = vmatpush2.bf16.msra.mxu0 %v3615
  %4870 = vmatprep.subr.bf16.mxu0 %v3597
  %4871 = vmatpush2.bf16.msra.mxu0 %v3596
  %4872 = vmatprep.subr.bf16.mxu0 %v3578
  %4873 = vmatpush2.bf16.msra.mxu0 %v3577
  %4874 = vmatprep.mubr.bf16.mxu0 %v1230
  %4875 = vmatmul.mubr.bf16.gmra.mxu0 %v1229
  %v4876 = vpop.f32.mrf.mxu0
  %v4877 = vadd.f32 %v4804, %v4876
  %v4878 = vpop.f32.mrf.mxu0
  %v4879 = vadd.f32 %v4806, %v4878
  %v4880 = vpop.f32.mrf.mxu0
  %v4881 = vadd.f32 %v4808, %v4880
  %v4882 = vpop.f32.mrf.mxu0
  %v4883 = vadd.f32 %v4810, %v4882
  %4884 = vmatprep.mubr.bf16.mxu0 %v1234
  %4885 = vmatmul.mubr.bf16.gmra.mxu0 %v1233
  %v4886 = vpop.f32.mrf.mxu0
  %v4887 = vadd.f32 %v4814, %v4886
  %v4888 = vpop.f32.mrf.mxu0
  %v4889 = vadd.f32 %v4816, %v4888
  %v4890 = vpop.f32.mrf.mxu0
  %v4891 = vadd.f32 %v4818, %v4890
  %v4892 = vpop.f32.mrf.mxu0
  %v4893 = vadd.f32 %v4820, %v4892
  %4894 = vmatprep.mubr.bf16.mxu0 %v1238
  %4895 = vmatmul.mubr.bf16.gmra.mxu0 %v1237
  %v4896 = vpop.f32.mrf.mxu0
  %v4897 = vadd.f32 %v4824, %v4896
  %v4898 = vpop.f32.mrf.mxu0
  %v4899 = vadd.f32 %v4826, %v4898
  %v4900 = vpop.f32.mrf.mxu0
  %v4901 = vadd.f32 %v4828, %v4900
  %v4902 = vpop.f32.mrf.mxu0
  %v4903 = vadd.f32 %v4830, %v4902
  %4904 = vmatprep.mubr.bf16.mxu0 %v1242
  %4905 = vmatmul.mubr.bf16.gmra.mxu0 %v1241
  %v4906 = vpop.f32.mrf.mxu0
  %v4907 = vadd.f32 %v4834, %v4906
  %v4908 = vpop.f32.mrf.mxu0
  %v4909 = vadd.f32 %v4836, %v4908
  %v4910 = vpop.f32.mrf.mxu0
  %v4911 = vadd.f32 %v4838, %v4910
  %v4912 = vpop.f32.mrf.mxu0
  %v4913 = vadd.f32 %v4840, %v4912
  %4914 = vdwg.mxu0
  %4915 = vmatprep.subr.bf16.mxu0 %v3257
  %4916 = vmatpush1.bf16.msra.mxu0 %v3256
  %4917 = vmatprep.subr.bf16.mxu0 %v3238
  %4918 = vmatpush1.bf16.msra.mxu0 %v3237
  %4919 = vmatprep.subr.bf16.mxu0 %v3219
  %4920 = vmatpush1.bf16.msra.mxu0 %v3218
  %4921 = vmatprep.subr.bf16.mxu0 %v3200
  %4922 = vmatpush1.bf16.msra.mxu0 %v3199
  %4923 = vmatprep.subr.bf16.mxu0 %v3181
  %4924 = vmatpush1.bf16.msra.mxu0 %v3180
  %4925 = vmatprep.subr.bf16.mxu0 %v3162
  %4926 = vmatpush1.bf16.msra.mxu0 %v3161
  %4927 = vmatprep.subr.bf16.mxu0 %v3143
  %4928 = vmatpush1.bf16.msra.mxu0 %v3142
  %4929 = vmatprep.subr.bf16.mxu0 %v3124
  %4930 = vmatpush1.bf16.msra.mxu0 %v3123
  %4931 = vmatprep.subr.bf16.mxu0 %v3409
  %4932 = vmatpush2.bf16.msra.mxu0 %v3408
  %4933 = vmatprep.subr.bf16.mxu0 %v3390
  %4934 = vmatpush2.bf16.msra.mxu0 %v3389
  %4935 = vmatprep.subr.bf16.mxu0 %v3371
  %4936 = vmatpush2.bf16.msra.mxu0 %v3370
  %4937 = vmatprep.subr.bf16.mxu0 %v3352
  %4938 = vmatpush2.bf16.msra.mxu0 %v3351
  %4939 = vmatprep.subr.bf16.mxu0 %v3333
  %4940 = vmatpush2.bf16.msra.mxu0 %v3332
  %4941 = vmatprep.subr.bf16.mxu0 %v3314
  %4942 = vmatpush2.bf16.msra.mxu0 %v3313
  %4943 = vmatprep.subr.bf16.mxu0 %v3295
  %4944 = vmatpush2.bf16.msra.mxu0 %v3294
  %4945 = vmatprep.subr.bf16.mxu0 %v3276
  %4946 = vmatpush2.bf16.msra.mxu0 %v3275
  %4947 = vmatprep.mubr.bf16.mxu0 %v1228
  %4948 = vmatmul.mubr.bf16.gmra.mxu0 %v1227
  %v4949 = vpop.f32.mrf.mxu0
  %v4950 = vadd.f32 %v1119, %v4949
  %v4951 = vpop.f32.mrf.mxu0
  %v4952 = vadd.f32 %v1123, %v4951
  %v4953 = vpop.f32.mrf.mxu0
  %v4954 = vadd.f32 %v1119, %v4953
  %v4955 = vpop.f32.mrf.mxu0
  %v4956 = vadd.f32 %v1123, %v4955
  %4957 = vmatprep.mubr.bf16.mxu0 %v1232
  %4958 = vmatmul.mubr.bf16.gmra.mxu0 %v1231
  %v4959 = vpop.f32.mrf.mxu0
  %v4960 = vadd.f32 %v1119, %v4959
  %v4961 = vpop.f32.mrf.mxu0
  %v4962 = vadd.f32 %v1123, %v4961
  %v4963 = vpop.f32.mrf.mxu0
  %v4964 = vadd.f32 %v1119, %v4963
  %v4965 = vpop.f32.mrf.mxu0
  %v4966 = vadd.f32 %v1123, %v4965
  %4967 = vmatprep.mubr.bf16.mxu0 %v1236
  %4968 = vmatmul.mubr.bf16.gmra.mxu0 %v1235
  %v4969 = vpop.f32.mrf.mxu0
  %v4970 = vadd.f32 %v1119, %v4969
  %v4971 = vpop.f32.mrf.mxu0
  %v4972 = vadd.f32 %v1123, %v4971
  %v4973 = vpop.f32.mrf.mxu0
  %v4974 = vadd.f32 %v1119, %v4973
  %v4975 = vpop.f32.mrf.mxu0
  %v4976 = vadd.f32 %v1123, %v4975
  %4977 = vmatprep.mubr.bf16.mxu0 %v1240
  %4978 = vmatmul.mubr.bf16.gmra.mxu0 %v1239
  %v4979 = vpop.f32.mrf.mxu0
  %v4980 = vadd.f32 %v1119, %v4979
  %v4981 = vpop.f32.mrf.mxu0
  %v4982 = vadd.f32 %v1123, %v4981
  %v4983 = vpop.f32.mrf.mxu0
  %v4984 = vadd.f32 %v1119, %v4983
  %v4985 = vpop.f32.mrf.mxu0
  %v4986 = vadd.f32 %v1123, %v4985
  %4987 = vdwg.mxu0
  %4988 = vmatprep.subr.bf16.mxu0 %v3561
  %4989 = vmatpush1.bf16.msra.mxu0 %v3560
  %4990 = vmatprep.subr.bf16.mxu0 %v3542
  %4991 = vmatpush1.bf16.msra.mxu0 %v3541
  %4992 = vmatprep.subr.bf16.mxu0 %v3523
  %4993 = vmatpush1.bf16.msra.mxu0 %v3522
  %4994 = vmatprep.subr.bf16.mxu0 %v3504
  %4995 = vmatpush1.bf16.msra.mxu0 %v3503
  %4996 = vmatprep.subr.bf16.mxu0 %v3485
  %4997 = vmatpush1.bf16.msra.mxu0 %v3484
  %4998 = vmatprep.subr.bf16.mxu0 %v3466
  %4999 = vmatpush1.bf16.msra.mxu0 %v3465
  %5000 = vmatprep.subr.bf16.mxu0 %v3447
  %5001 = vmatpush1.bf16.msra.mxu0 %v3446
  %5002 = vmatprep.subr.bf16.mxu0 %v3428
  %5003 = vmatpush1.bf16.msra.mxu0 %v3427
  %5004 = vmatprep.subr.bf16.mxu0 %v3713
  %5005 = vmatpush2.bf16.msra.mxu0 %v3712
  %5006 = vmatprep.subr.bf16.mxu0 %v3694
  %5007 = vmatpush2.bf16.msra.mxu0 %v3693
  %5008 = vmatprep.subr.bf16.mxu0 %v3675
  %5009 = vmatpush2.bf16.msra.mxu0 %v3674
  %5010 = vmatprep.subr.bf16.mxu0 %v3656
  %5011 = vmatpush2.bf16.msra.mxu0 %v3655
  %5012 = vmatprep.subr.bf16.mxu0 %v3637
  %5013 = vmatpush2.bf16.msra.mxu0 %v3636
  %5014 = vmatprep.subr.bf16.mxu0 %v3618
  %5015 = vmatpush2.bf16.msra.mxu0 %v3617
  %5016 = vmatprep.subr.bf16.mxu0 %v3599
  %5017 = vmatpush2.bf16.msra.mxu0 %v3598
  %5018 = vmatprep.subr.bf16.mxu0 %v3580
  %5019 = vmatpush2.bf16.msra.mxu0 %v3579
  %5020 = vmatprep.mubr.bf16.mxu0 %v1230
  %5021 = vmatmul.mubr.bf16.gmra.mxu0 %v1229
  %v5022 = vpop.f32.mrf.mxu0
  %v5023 = vadd.f32 %v4950, %v5022
  %v5024 = vpop.f32.mrf.mxu0
  %v5025 = vadd.f32 %v4952, %v5024
  %v5026 = vpop.f32.mrf.mxu0
  %v5027 = vadd.f32 %v4954, %v5026
  %v5028 = vpop.f32.mrf.mxu0
  %v5029 = vadd.f32 %v4956, %v5028
  %5030 = vmatprep.mubr.bf16.mxu0 %v1234
  %5031 = vmatmul.mubr.bf16.gmra.mxu0 %v1233
  %v5032 = vpop.f32.mrf.mxu0
  %v5033 = vadd.f32 %v4960, %v5032
  %v5034 = vpop.f32.mrf.mxu0
  %v5035 = vadd.f32 %v4962, %v5034
  %v5036 = vpop.f32.mrf.mxu0
  %v5037 = vadd.f32 %v4964, %v5036
  %v5038 = vpop.f32.mrf.mxu0
  %v5039 = vadd.f32 %v4966, %v5038
  %5040 = vmatprep.mubr.bf16.mxu0 %v1238
  %5041 = vmatmul.mubr.bf16.gmra.mxu0 %v1237
  %v5042 = vpop.f32.mrf.mxu0
  %v5043 = vadd.f32 %v4970, %v5042
  %v5044 = vpop.f32.mrf.mxu0
  %v5045 = vadd.f32 %v4972, %v5044
  %v5046 = vpop.f32.mrf.mxu0
  %v5047 = vadd.f32 %v4974, %v5046
  %v5048 = vpop.f32.mrf.mxu0
  %v5049 = vadd.f32 %v4976, %v5048
  %5050 = vmatprep.mubr.bf16.mxu0 %v1242
  %5051 = vmatmul.mubr.bf16.gmra.mxu0 %v1241
  %v5052 = vpop.f32.mrf.mxu0
  %v5053 = vadd.f32 %v4980, %v5052
  %v5054 = vpop.f32.mrf.mxu0
  %v5055 = vadd.f32 %v4982, %v5054
  %v5056 = vpop.f32.mrf.mxu0
  %v5057 = vadd.f32 %v4984, %v5056
  %v5058 = vpop.f32.mrf.mxu0
  %v5059 = vadd.f32 %v4986, %v5058
  %5060 = vdwg.mxu0
  %5061 = vmatprep.subr.bf16.mxu0 %v3259
  %5062 = vmatpush1.bf16.msra.mxu0 %v3258
  %5063 = vmatprep.subr.bf16.mxu0 %v3240
  %5064 = vmatpush1.bf16.msra.mxu0 %v3239
  %5065 = vmatprep.subr.bf16.mxu0 %v3221
  %5066 = vmatpush1.bf16.msra.mxu0 %v3220
  %5067 = vmatprep.subr.bf16.mxu0 %v3202
  %5068 = vmatpush1.bf16.msra.mxu0 %v3201
  %5069 = vmatprep.subr.bf16.mxu0 %v3183
  %5070 = vmatpush1.bf16.msra.mxu0 %v3182
  %5071 = vmatprep.subr.bf16.mxu0 %v3164
  %5072 = vmatpush1.bf16.msra.mxu0 %v3163
  %5073 = vmatprep.subr.bf16.mxu0 %v3145
  %5074 = vmatpush1.bf16.msra.mxu0 %v3144
  %5075 = vmatprep.subr.bf16.mxu0 %v3126
  %5076 = vmatpush1.bf16.msra.mxu0 %v3125
  %5077 = vmatprep.subr.bf16.mxu0 %v3411
  %5078 = vmatpush2.bf16.msra.mxu0 %v3410
  %5079 = vmatprep.subr.bf16.mxu0 %v3392
  %5080 = vmatpush2.bf16.msra.mxu0 %v3391
  %5081 = vmatprep.subr.bf16.mxu0 %v3373
  %5082 = vmatpush2.bf16.msra.mxu0 %v3372
  %5083 = vmatprep.subr.bf16.mxu0 %v3354
  %5084 = vmatpush2.bf16.msra.mxu0 %v3353
  %5085 = vmatprep.subr.bf16.mxu0 %v3335
  %5086 = vmatpush2.bf16.msra.mxu0 %v3334
  %5087 = vmatprep.subr.bf16.mxu0 %v3316
  %5088 = vmatpush2.bf16.msra.mxu0 %v3315
  %5089 = vmatprep.subr.bf16.mxu0 %v3297
  %5090 = vmatpush2.bf16.msra.mxu0 %v3296
  %5091 = vmatprep.subr.bf16.mxu0 %v3278
  %5092 = vmatpush2.bf16.msra.mxu0 %v3277
  %5093 = vmatprep.mubr.bf16.mxu0 %v1228
  %5094 = vmatmul.mubr.bf16.gmra.mxu0 %v1227
  %v5095 = vpop.f32.mrf.mxu0
  %v5096 = vadd.f32 %v1127, %v5095
  %v5097 = vpop.f32.mrf.mxu0
  %v5098 = vadd.f32 %v1131, %v5097
  %v5099 = vpop.f32.mrf.mxu0
  %v5100 = vadd.f32 %v1127, %v5099
  %v5101 = vpop.f32.mrf.mxu0
  %v5102 = vadd.f32 %v1131, %v5101
  %5103 = vmatprep.mubr.bf16.mxu0 %v1232
  %5104 = vmatmul.mubr.bf16.gmra.mxu0 %v1231
  %v5105 = vpop.f32.mrf.mxu0
  %v5106 = vadd.f32 %v1127, %v5105
  %v5107 = vpop.f32.mrf.mxu0
  %v5108 = vadd.f32 %v1131, %v5107
  %v5109 = vpop.f32.mrf.mxu0
  %v5110 = vadd.f32 %v1127, %v5109
  %v5111 = vpop.f32.mrf.mxu0
  %v5112 = vadd.f32 %v1131, %v5111
  %5113 = vmatprep.mubr.bf16.mxu0 %v1236
  %5114 = vmatmul.mubr.bf16.gmra.mxu0 %v1235
  %v5115 = vpop.f32.mrf.mxu0
  %v5116 = vadd.f32 %v1127, %v5115
  %v5117 = vpop.f32.mrf.mxu0
  %v5118 = vadd.f32 %v1131, %v5117
  %v5119 = vpop.f32.mrf.mxu0
  %v5120 = vadd.f32 %v1127, %v5119
  %v5121 = vpop.f32.mrf.mxu0
  %v5122 = vadd.f32 %v1131, %v5121
  %5123 = vmatprep.mubr.bf16.mxu0 %v1240
  %5124 = vmatmul.mubr.bf16.gmra.mxu0 %v1239
  %v5125 = vpop.f32.mrf.mxu0
  %v5126 = vadd.f32 %v1127, %v5125
  %v5127 = vpop.f32.mrf.mxu0
  %v5128 = vadd.f32 %v1131, %v5127
  %v5129 = vpop.f32.mrf.mxu0
  %v5130 = vadd.f32 %v1127, %v5129
  %v5131 = vpop.f32.mrf.mxu0
  %v5132 = vadd.f32 %v1131, %v5131
  %5133 = vdwg.mxu0
  %5134 = vmatprep.subr.bf16.mxu0 %v3563
  %5135 = vmatpush1.bf16.msra.mxu0 %v3562
  %5136 = vmatprep.subr.bf16.mxu0 %v3544
  %5137 = vmatpush1.bf16.msra.mxu0 %v3543
  %5138 = vmatprep.subr.bf16.mxu0 %v3525
  %5139 = vmatpush1.bf16.msra.mxu0 %v3524
  %5140 = vmatprep.subr.bf16.mxu0 %v3506
  %5141 = vmatpush1.bf16.msra.mxu0 %v3505
  %5142 = vmatprep.subr.bf16.mxu0 %v3487
  %5143 = vmatpush1.bf16.msra.mxu0 %v3486
  %5144 = vmatprep.subr.bf16.mxu0 %v3468
  %5145 = vmatpush1.bf16.msra.mxu0 %v3467
  %5146 = vmatprep.subr.bf16.mxu0 %v3449
  %5147 = vmatpush1.bf16.msra.mxu0 %v3448
  %5148 = vmatprep.subr.bf16.mxu0 %v3430
  %5149 = vmatpush1.bf16.msra.mxu0 %v3429
  %5150 = vmatprep.subr.bf16.mxu0 %v3715
  %5151 = vmatpush2.bf16.msra.mxu0 %v3714
  %5152 = vmatprep.subr.bf16.mxu0 %v3696
  %5153 = vmatpush2.bf16.msra.mxu0 %v3695
  %5154 = vmatprep.subr.bf16.mxu0 %v3677
  %5155 = vmatpush2.bf16.msra.mxu0 %v3676
  %5156 = vmatprep.subr.bf16.mxu0 %v3658
  %5157 = vmatpush2.bf16.msra.mxu0 %v3657
  %5158 = vmatprep.subr.bf16.mxu0 %v3639
  %5159 = vmatpush2.bf16.msra.mxu0 %v3638
  %5160 = vmatprep.subr.bf16.mxu0 %v3620
  %5161 = vmatpush2.bf16.msra.mxu0 %v3619
  %5162 = vmatprep.subr.bf16.mxu0 %v3601
  %5163 = vmatpush2.bf16.msra.mxu0 %v3600
  %5164 = vmatprep.subr.bf16.mxu0 %v3582
  %5165 = vmatpush2.bf16.msra.mxu0 %v3581
  %5166 = vmatprep.mubr.bf16.mxu0 %v1230
  %5167 = vmatmul.mubr.bf16.gmra.mxu0 %v1229
  %v5168 = vpop.f32.mrf.mxu0
  %v5169 = vadd.f32 %v5096, %v5168
  %v5170 = vpop.f32.mrf.mxu0
  %v5171 = vadd.f32 %v5098, %v5170
  %v5172 = vpop.f32.mrf.mxu0
  %v5173 = vadd.f32 %v5100, %v5172
  %v5174 = vpop.f32.mrf.mxu0
  %v5175 = vadd.f32 %v5102, %v5174
  %5176 = vmatprep.mubr.bf16.mxu0 %v1234
  %5177 = vmatmul.mubr.bf16.gmra.mxu0 %v1233
  %v5178 = vpop.f32.mrf.mxu0
  %v5179 = vadd.f32 %v5106, %v5178
  %v5180 = vpop.f32.mrf.mxu0
  %v5181 = vadd.f32 %v5108, %v5180
  %v5182 = vpop.f32.mrf.mxu0
  %v5183 = vadd.f32 %v5110, %v5182
  %v5184 = vpop.f32.mrf.mxu0
  %v5185 = vadd.f32 %v5112, %v5184
  %5186 = vmatprep.mubr.bf16.mxu0 %v1238
  %5187 = vmatmul.mubr.bf16.gmra.mxu0 %v1237
  %v5188 = vpop.f32.mrf.mxu0
  %v5189 = vadd.f32 %v5116, %v5188
  %v5190 = vpop.f32.mrf.mxu0
  %v5191 = vadd.f32 %v5118, %v5190
  %v5192 = vpop.f32.mrf.mxu0
  %v5193 = vadd.f32 %v5120, %v5192
  %v5194 = vpop.f32.mrf.mxu0
  %v5195 = vadd.f32 %v5122, %v5194
  %5196 = vmatprep.mubr.bf16.mxu0 %v1242
  %5197 = vmatmul.mubr.bf16.gmra.mxu0 %v1241
  %v5198 = vpop.f32.mrf.mxu0
  %v5199 = vadd.f32 %v5126, %v5198
  %v5200 = vpop.f32.mrf.mxu0
  %v5201 = vadd.f32 %v5128, %v5200
  %v5202 = vpop.f32.mrf.mxu0
  %v5203 = vadd.f32 %v5130, %v5202
  %v5204 = vpop.f32.mrf.mxu0
  %v5205 = vadd.f32 %v5132, %v5204
  %5206 = vdwg.mxu0
  %5207 = vmatprep.subr.bf16.mxu0 %v3261
  %5208 = vmatpush1.bf16.msra.mxu0 %v3260
  %5209 = vmatprep.subr.bf16.mxu0 %v3242
  %5210 = vmatpush1.bf16.msra.mxu0 %v3241
  %5211 = vmatprep.subr.bf16.mxu0 %v3223
  %5212 = vmatpush1.bf16.msra.mxu0 %v3222
  %5213 = vmatprep.subr.bf16.mxu0 %v3204
  %5214 = vmatpush1.bf16.msra.mxu0 %v3203
  %5215 = vmatprep.subr.bf16.mxu0 %v3185
  %5216 = vmatpush1.bf16.msra.mxu0 %v3184
  %5217 = vmatprep.subr.bf16.mxu0 %v3166
  %5218 = vmatpush1.bf16.msra.mxu0 %v3165
  %5219 = vmatprep.subr.bf16.mxu0 %v3147
  %5220 = vmatpush1.bf16.msra.mxu0 %v3146
  %5221 = vmatprep.subr.bf16.mxu0 %v3128
  %5222 = vmatpush1.bf16.msra.mxu0 %v3127
  %5223 = vmatprep.subr.bf16.mxu0 %v3413
  %5224 = vmatpush2.bf16.msra.mxu0 %v3412
  %5225 = vmatprep.subr.bf16.mxu0 %v3394
  %5226 = vmatpush2.bf16.msra.mxu0 %v3393
  %5227 = vmatprep.subr.bf16.mxu0 %v3375
  %5228 = vmatpush2.bf16.msra.mxu0 %v3374
  %5229 = vmatprep.subr.bf16.mxu0 %v3356
  %5230 = vmatpush2.bf16.msra.mxu0 %v3355
  %5231 = vmatprep.subr.bf16.mxu0 %v3337
  %5232 = vmatpush2.bf16.msra.mxu0 %v3336
  %5233 = vmatprep.subr.bf16.mxu0 %v3318
  %5234 = vmatpush2.bf16.msra.mxu0 %v3317
  %5235 = vmatprep.subr.bf16.mxu0 %v3299
  %5236 = vmatpush2.bf16.msra.mxu0 %v3298
  %5237 = vmatprep.subr.bf16.mxu0 %v3280
  %5238 = vmatpush2.bf16.msra.mxu0 %v3279
  %5239 = vmatprep.mubr.bf16.mxu0 %v1228
  %5240 = vmatmul.mubr.bf16.gmra.mxu0 %v1227
  %v5241 = vpop.f32.mrf.mxu0
  %v5242 = vadd.f32 %v1135, %v5241
  %v5243 = vpop.f32.mrf.mxu0
  %v5244 = vadd.f32 %v1139, %v5243
  %v5245 = vpop.f32.mrf.mxu0
  %v5246 = vadd.f32 %v1135, %v5245
  %v5247 = vpop.f32.mrf.mxu0
  %v5248 = vadd.f32 %v1139, %v5247
  %5249 = vmatprep.mubr.bf16.mxu0 %v1232
  %5250 = vmatmul.mubr.bf16.gmra.mxu0 %v1231
  %v5251 = vpop.f32.mrf.mxu0
  %v5252 = vadd.f32 %v1135, %v5251
  %v5253 = vpop.f32.mrf.mxu0
  %v5254 = vadd.f32 %v1139, %v5253
  %v5255 = vpop.f32.mrf.mxu0
  %v5256 = vadd.f32 %v1135, %v5255
  %v5257 = vpop.f32.mrf.mxu0
  %v5258 = vadd.f32 %v1139, %v5257
  %5259 = vmatprep.mubr.bf16.mxu0 %v1236
  %5260 = vmatmul.mubr.bf16.gmra.mxu0 %v1235
  %v5261 = vpop.f32.mrf.mxu0
  %v5262 = vadd.f32 %v1135, %v5261
  %v5263 = vpop.f32.mrf.mxu0
  %v5264 = vadd.f32 %v1139, %v5263
  %v5265 = vpop.f32.mrf.mxu0
  %v5266 = vadd.f32 %v1135, %v5265
  %v5267 = vpop.f32.mrf.mxu0
  %v5268 = vadd.f32 %v1139, %v5267
  %5269 = vmatprep.mubr.bf16.mxu0 %v1240
  %5270 = vmatmul.mubr.bf16.gmra.mxu0 %v1239
  %v5271 = vpop.f32.mrf.mxu0
  %v5272 = vadd.f32 %v1135, %v5271
  %v5273 = vpop.f32.mrf.mxu0
  %v5274 = vadd.f32 %v1139, %v5273
  %v5275 = vpop.f32.mrf.mxu0
  %v5276 = vadd.f32 %v1135, %v5275
  %v5277 = vpop.f32.mrf.mxu0
  %v5278 = vadd.f32 %v1139, %v5277
  %5279 = vdwg.mxu0
  %5280 = vmatprep.subr.bf16.mxu0 %v3565
  %5281 = vmatpush1.bf16.msra.mxu0 %v3564
  %5282 = vmatprep.subr.bf16.mxu0 %v3546
  %5283 = vmatpush1.bf16.msra.mxu0 %v3545
  %5284 = vmatprep.subr.bf16.mxu0 %v3527
  %5285 = vmatpush1.bf16.msra.mxu0 %v3526
  %5286 = vmatprep.subr.bf16.mxu0 %v3508
  %5287 = vmatpush1.bf16.msra.mxu0 %v3507
  %5288 = vmatprep.subr.bf16.mxu0 %v3489
  %5289 = vmatpush1.bf16.msra.mxu0 %v3488
  %5290 = vmatprep.subr.bf16.mxu0 %v3470
  %5291 = vmatpush1.bf16.msra.mxu0 %v3469
  %5292 = vmatprep.subr.bf16.mxu0 %v3451
  %5293 = vmatpush1.bf16.msra.mxu0 %v3450
  %5294 = vmatprep.subr.bf16.mxu0 %v3432
  %5295 = vmatpush1.bf16.msra.mxu0 %v3431
  %5296 = vmatprep.subr.bf16.mxu0 %v3717
  %5297 = vmatpush2.bf16.msra.mxu0 %v3716
  %5298 = vmatprep.subr.bf16.mxu0 %v3698
  %5299 = vmatpush2.bf16.msra.mxu0 %v3697
  %5300 = vmatprep.subr.bf16.mxu0 %v3679
  %5301 = vmatpush2.bf16.msra.mxu0 %v3678
  %5302 = vmatprep.subr.bf16.mxu0 %v3660
  %5303 = vmatpush2.bf16.msra.mxu0 %v3659
  %5304 = vmatprep.subr.bf16.mxu0 %v3641
  %5305 = vmatpush2.bf16.msra.mxu0 %v3640
  %5306 = vmatprep.subr.bf16.mxu0 %v3622
  %5307 = vmatpush2.bf16.msra.mxu0 %v3621
  %5308 = vmatprep.subr.bf16.mxu0 %v3603
  %5309 = vmatpush2.bf16.msra.mxu0 %v3602
  %5310 = vmatprep.subr.bf16.mxu0 %v3584
  %5311 = vmatpush2.bf16.msra.mxu0 %v3583
  %5312 = vmatprep.mubr.bf16.mxu0 %v1230
  %5313 = vmatmul.mubr.bf16.gmra.mxu0 %v1229
  %v5314 = vpop.f32.mrf.mxu0
  %v5315 = vadd.f32 %v5242, %v5314
  %v5316 = vpop.f32.mrf.mxu0
  %v5317 = vadd.f32 %v5244, %v5316
  %v5318 = vpop.f32.mrf.mxu0
  %v5319 = vadd.f32 %v5246, %v5318
  %v5320 = vpop.f32.mrf.mxu0
  %v5321 = vadd.f32 %v5248, %v5320
  %5322 = vmatprep.mubr.bf16.mxu0 %v1234
  %5323 = vmatmul.mubr.bf16.gmra.mxu0 %v1233
  %v5324 = vpop.f32.mrf.mxu0
  %v5325 = vadd.f32 %v5252, %v5324
  %v5326 = vpop.f32.mrf.mxu0
  %v5327 = vadd.f32 %v5254, %v5326
  %v5328 = vpop.f32.mrf.mxu0
  %v5329 = vadd.f32 %v5256, %v5328
  %v5330 = vpop.f32.mrf.mxu0
  %v5331 = vadd.f32 %v5258, %v5330
  %5332 = vmatprep.mubr.bf16.mxu0 %v1238
  %5333 = vmatmul.mubr.bf16.gmra.mxu0 %v1237
  %v5334 = vpop.f32.mrf.mxu0
  %v5335 = vadd.f32 %v5262, %v5334
  %v5336 = vpop.f32.mrf.mxu0
  %v5337 = vadd.f32 %v5264, %v5336
  %v5338 = vpop.f32.mrf.mxu0
  %v5339 = vadd.f32 %v5266, %v5338
  %v5340 = vpop.f32.mrf.mxu0
  %v5341 = vadd.f32 %v5268, %v5340
  %5342 = vmatprep.mubr.bf16.mxu0 %v1242
  %5343 = vmatmul.mubr.bf16.gmra.mxu0 %v1241
  %v5344 = vpop.f32.mrf.mxu0
  %v5345 = vadd.f32 %v5272, %v5344
  %v5346 = vpop.f32.mrf.mxu0
  %v5347 = vadd.f32 %v5274, %v5346
  %v5348 = vpop.f32.mrf.mxu0
  %v5349 = vadd.f32 %v5276, %v5348
  %v5350 = vpop.f32.mrf.mxu0
  %v5351 = vadd.f32 %v5278, %v5350
  %5352 = vdwg.mxu0
  %5353 = vmatprep.subr.bf16.mxu0 %v3263
  %5354 = vmatpush1.bf16.msra.mxu0 %v3262
  %5355 = vmatprep.subr.bf16.mxu0 %v3244
  %5356 = vmatpush1.bf16.msra.mxu0 %v3243
  %5357 = vmatprep.subr.bf16.mxu0 %v3225
  %5358 = vmatpush1.bf16.msra.mxu0 %v3224
  %5359 = vmatprep.subr.bf16.mxu0 %v3206
  %5360 = vmatpush1.bf16.msra.mxu0 %v3205
  %5361 = vmatprep.subr.bf16.mxu0 %v3187
  %5362 = vmatpush1.bf16.msra.mxu0 %v3186
  %5363 = vmatprep.subr.bf16.mxu0 %v3168
  %5364 = vmatpush1.bf16.msra.mxu0 %v3167
  %5365 = vmatprep.subr.bf16.mxu0 %v3149
  %5366 = vmatpush1.bf16.msra.mxu0 %v3148
  %5367 = vmatprep.subr.bf16.mxu0 %v3130
  %5368 = vmatpush1.bf16.msra.mxu0 %v3129
  %5369 = vmatprep.subr.bf16.mxu0 %v3415
  %5370 = vmatpush2.bf16.msra.mxu0 %v3414
  %5371 = vmatprep.subr.bf16.mxu0 %v3396
  %5372 = vmatpush2.bf16.msra.mxu0 %v3395
  %5373 = vmatprep.subr.bf16.mxu0 %v3377
  %5374 = vmatpush2.bf16.msra.mxu0 %v3376
  %5375 = vmatprep.subr.bf16.mxu0 %v3358
  %5376 = vmatpush2.bf16.msra.mxu0 %v3357
  %5377 = vmatprep.subr.bf16.mxu0 %v3339
  %5378 = vmatpush2.bf16.msra.mxu0 %v3338
  %5379 = vmatprep.subr.bf16.mxu0 %v3320
  %5380 = vmatpush2.bf16.msra.mxu0 %v3319
  %5381 = vmatprep.subr.bf16.mxu0 %v3301
  %5382 = vmatpush2.bf16.msra.mxu0 %v3300
  %5383 = vmatprep.subr.bf16.mxu0 %v3282
  %5384 = vmatpush2.bf16.msra.mxu0 %v3281
  %5385 = vmatprep.mubr.bf16.mxu0 %v1228
  %5386 = vmatmul.mubr.bf16.gmra.mxu0 %v1227
  %v5387 = vpop.f32.mrf.mxu0
  %v5388 = vadd.f32 %v1143, %v5387
  %v5389 = vpop.f32.mrf.mxu0
  %v5390 = vadd.f32 %v1147, %v5389
  %v5391 = vpop.f32.mrf.mxu0
  %v5392 = vadd.f32 %v1143, %v5391
  %v5393 = vpop.f32.mrf.mxu0
  %v5394 = vadd.f32 %v1147, %v5393
  %5395 = vmatprep.mubr.bf16.mxu0 %v1232
  %5396 = vmatmul.mubr.bf16.gmra.mxu0 %v1231
  %v5397 = vpop.f32.mrf.mxu0
  %v5398 = vadd.f32 %v1143, %v5397
  %v5399 = vpop.f32.mrf.mxu0
  %v5400 = vadd.f32 %v1147, %v5399
  %v5401 = vpop.f32.mrf.mxu0
  %v5402 = vadd.f32 %v1143, %v5401
  %v5403 = vpop.f32.mrf.mxu0
  %v5404 = vadd.f32 %v1147, %v5403
  %5405 = vmatprep.mubr.bf16.mxu0 %v1236
  %5406 = vmatmul.mubr.bf16.gmra.mxu0 %v1235
  %v5407 = vpop.f32.mrf.mxu0
  %v5408 = vadd.f32 %v1143, %v5407
  %v5409 = vpop.f32.mrf.mxu0
  %v5410 = vadd.f32 %v1147, %v5409
  %v5411 = vpop.f32.mrf.mxu0
  %v5412 = vadd.f32 %v1143, %v5411
  %v5413 = vpop.f32.mrf.mxu0
  %v5414 = vadd.f32 %v1147, %v5413
  %5415 = vmatprep.mubr.bf16.mxu0 %v1240
  %5416 = vmatmul.mubr.bf16.gmra.mxu0 %v1239
  %v5417 = vpop.f32.mrf.mxu0
  %v5418 = vadd.f32 %v1143, %v5417
  %v5419 = vpop.f32.mrf.mxu0
  %v5420 = vadd.f32 %v1147, %v5419
  %v5421 = vpop.f32.mrf.mxu0
  %v5422 = vadd.f32 %v1143, %v5421
  %v5423 = vpop.f32.mrf.mxu0
  %v5424 = vadd.f32 %v1147, %v5423
  %5425 = vdwg.mxu0
  %5426 = vmatprep.subr.bf16.mxu0 %v3567
  %5427 = vmatpush1.bf16.msra.mxu0 %v3566
  %5428 = vmatprep.subr.bf16.mxu0 %v3548
  %5429 = vmatpush1.bf16.msra.mxu0 %v3547
  %5430 = vmatprep.subr.bf16.mxu0 %v3529
  %5431 = vmatpush1.bf16.msra.mxu0 %v3528
  %5432 = vmatprep.subr.bf16.mxu0 %v3510
  %5433 = vmatpush1.bf16.msra.mxu0 %v3509
  %5434 = vmatprep.subr.bf16.mxu0 %v3491
  %5435 = vmatpush1.bf16.msra.mxu0 %v3490
  %5436 = vmatprep.subr.bf16.mxu0 %v3472
  %5437 = vmatpush1.bf16.msra.mxu0 %v3471
  %5438 = vmatprep.subr.bf16.mxu0 %v3453
  %5439 = vmatpush1.bf16.msra.mxu0 %v3452
  %5440 = vmatprep.subr.bf16.mxu0 %v3434
  %5441 = vmatpush1.bf16.msra.mxu0 %v3433
  %5442 = vmatprep.subr.bf16.mxu0 %v3719
  %5443 = vmatpush2.bf16.msra.mxu0 %v3718
  %5444 = vmatprep.subr.bf16.mxu0 %v3700
  %5445 = vmatpush2.bf16.msra.mxu0 %v3699
  %5446 = vmatprep.subr.bf16.mxu0 %v3681
  %5447 = vmatpush2.bf16.msra.mxu0 %v3680
  %5448 = vmatprep.subr.bf16.mxu0 %v3662
  %5449 = vmatpush2.bf16.msra.mxu0 %v3661
  %5450 = vmatprep.subr.bf16.mxu0 %v3643
  %5451 = vmatpush2.bf16.msra.mxu0 %v3642
  %5452 = vmatprep.subr.bf16.mxu0 %v3624
  %5453 = vmatpush2.bf16.msra.mxu0 %v3623
  %5454 = vmatprep.subr.bf16.mxu0 %v3605
  %5455 = vmatpush2.bf16.msra.mxu0 %v3604
  %5456 = vmatprep.subr.bf16.mxu0 %v3586
  %5457 = vmatpush2.bf16.msra.mxu0 %v3585
  %5458 = vmatprep.mubr.bf16.mxu0 %v1230
  %5459 = vmatmul.mubr.bf16.gmra.mxu0 %v1229
  %v5460 = vpop.f32.mrf.mxu0
  %v5461 = vadd.f32 %v5388, %v5460
  %v5462 = vpop.f32.mrf.mxu0
  %v5463 = vadd.f32 %v5390, %v5462
  %v5464 = vpop.f32.mrf.mxu0
  %v5465 = vadd.f32 %v5392, %v5464
  %v5466 = vpop.f32.mrf.mxu0
  %v5467 = vadd.f32 %v5394, %v5466
  %5468 = vmatprep.mubr.bf16.mxu0 %v1234
  %5469 = vmatmul.mubr.bf16.gmra.mxu0 %v1233
  %v5470 = vpop.f32.mrf.mxu0
  %v5471 = vadd.f32 %v5398, %v5470
  %v5472 = vpop.f32.mrf.mxu0
  %v5473 = vadd.f32 %v5400, %v5472
  %v5474 = vpop.f32.mrf.mxu0
  %v5475 = vadd.f32 %v5402, %v5474
  %v5476 = vpop.f32.mrf.mxu0
  %v5477 = vadd.f32 %v5404, %v5476
  %5478 = vmatprep.mubr.bf16.mxu0 %v1238
  %5479 = vmatmul.mubr.bf16.gmra.mxu0 %v1237
  %v5480 = vpop.f32.mrf.mxu0
  %v5481 = vadd.f32 %v5408, %v5480
  %v5482 = vpop.f32.mrf.mxu0
  %v5483 = vadd.f32 %v5410, %v5482
  %v5484 = vpop.f32.mrf.mxu0
  %v5485 = vadd.f32 %v5412, %v5484
  %v5486 = vpop.f32.mrf.mxu0
  %v5487 = vadd.f32 %v5414, %v5486
  %5488 = vmatprep.mubr.bf16.mxu0 %v1242
  %5489 = vmatmul.mubr.bf16.gmra.mxu0 %v1241
  %v5490 = vpop.f32.mrf.mxu0
  %v5491 = vadd.f32 %v5418, %v5490
  %v5492 = vpop.f32.mrf.mxu0
  %v5493 = vadd.f32 %v5420, %v5492
  %v5494 = vpop.f32.mrf.mxu0
  %v5495 = vadd.f32 %v5422, %v5494
  %v5496 = vpop.f32.mrf.mxu0
  %v5497 = vadd.f32 %v5424, %v5496
  %5498 = vdwg.mxu0
  %5499 = vmatprep.subr.bf16.mxu0 %v3265
  %5500 = vmatpush1.bf16.msra.mxu0 %v3264
  %5501 = vmatprep.subr.bf16.mxu0 %v3246
  %5502 = vmatpush1.bf16.msra.mxu0 %v3245
  %5503 = vmatprep.subr.bf16.mxu0 %v3227
  %5504 = vmatpush1.bf16.msra.mxu0 %v3226
  %5505 = vmatprep.subr.bf16.mxu0 %v3208
  %5506 = vmatpush1.bf16.msra.mxu0 %v3207
  %5507 = vmatprep.subr.bf16.mxu0 %v3189
  %5508 = vmatpush1.bf16.msra.mxu0 %v3188
  %5509 = vmatprep.subr.bf16.mxu0 %v3170
  %5510 = vmatpush1.bf16.msra.mxu0 %v3169
  %5511 = vmatprep.subr.bf16.mxu0 %v3151
  %5512 = vmatpush1.bf16.msra.mxu0 %v3150
  %5513 = vmatprep.subr.bf16.mxu0 %v3132
  %5514 = vmatpush1.bf16.msra.mxu0 %v3131
  %5515 = vmatprep.subr.bf16.mxu0 %v3417
  %5516 = vmatpush2.bf16.msra.mxu0 %v3416
  %5517 = vmatprep.subr.bf16.mxu0 %v3398
  %5518 = vmatpush2.bf16.msra.mxu0 %v3397
  %5519 = vmatprep.subr.bf16.mxu0 %v3379
  %5520 = vmatpush2.bf16.msra.mxu0 %v3378
  %5521 = vmatprep.subr.bf16.mxu0 %v3360
  %5522 = vmatpush2.bf16.msra.mxu0 %v3359
  %5523 = vmatprep.subr.bf16.mxu0 %v3341
  %5524 = vmatpush2.bf16.msra.mxu0 %v3340
  %5525 = vmatprep.subr.bf16.mxu0 %v3322
  %5526 = vmatpush2.bf16.msra.mxu0 %v3321
  %5527 = vmatprep.subr.bf16.mxu0 %v3303
  %5528 = vmatpush2.bf16.msra.mxu0 %v3302
  %5529 = vmatprep.subr.bf16.mxu0 %v3284
  %5530 = vmatpush2.bf16.msra.mxu0 %v3283
  %5531 = vmatprep.mubr.bf16.mxu0 %v1228
  %5532 = vmatmul.mubr.bf16.gmra.mxu0 %v1227
  %v5533 = vpop.f32.mrf.mxu0
  %v5534 = vadd.f32 %v1151, %v5533
  %v5535 = vpop.f32.mrf.mxu0
  %v5536 = vadd.f32 %v1155, %v5535
  %v5537 = vpop.f32.mrf.mxu0
  %v5538 = vadd.f32 %v1151, %v5537
  %v5539 = vpop.f32.mrf.mxu0
  %v5540 = vadd.f32 %v1155, %v5539
  %5541 = vmatprep.mubr.bf16.mxu0 %v1232
  %5542 = vmatmul.mubr.bf16.gmra.mxu0 %v1231
  %v5543 = vpop.f32.mrf.mxu0
  %v5544 = vadd.f32 %v1151, %v5543
  %v5545 = vpop.f32.mrf.mxu0
  %v5546 = vadd.f32 %v1155, %v5545
  %v5547 = vpop.f32.mrf.mxu0
  %v5548 = vadd.f32 %v1151, %v5547
  %v5549 = vpop.f32.mrf.mxu0
  %v5550 = vadd.f32 %v1155, %v5549
  %5551 = vmatprep.mubr.bf16.mxu0 %v1236
  %5552 = vmatmul.mubr.bf16.gmra.mxu0 %v1235
  %v5553 = vpop.f32.mrf.mxu0
  %v5554 = vadd.f32 %v1151, %v5553
  %v5555 = vpop.f32.mrf.mxu0
  %v5556 = vadd.f32 %v1155, %v5555
  %v5557 = vpop.f32.mrf.mxu0
  %v5558 = vadd.f32 %v1151, %v5557
  %v5559 = vpop.f32.mrf.mxu0
  %v5560 = vadd.f32 %v1155, %v5559
  %5561 = vmatprep.mubr.bf16.mxu0 %v1240
  %5562 = vmatmul.mubr.bf16.gmra.mxu0 %v1239
  %v5563 = vpop.f32.mrf.mxu0
  %v5564 = vadd.f32 %v1151, %v5563
  %v5565 = vpop.f32.mrf.mxu0
  %v5566 = vadd.f32 %v1155, %v5565
  %v5567 = vpop.f32.mrf.mxu0
  %v5568 = vadd.f32 %v1151, %v5567
  %v5569 = vpop.f32.mrf.mxu0
  %v5570 = vadd.f32 %v1155, %v5569
  %5571 = vdwg.mxu0
  %5572 = vmatprep.subr.bf16.mxu0 %v3569
  %5573 = vmatpush1.bf16.msra.mxu0 %v3568
  %5574 = vmatprep.subr.bf16.mxu0 %v3550
  %5575 = vmatpush1.bf16.msra.mxu0 %v3549
  %5576 = vmatprep.subr.bf16.mxu0 %v3531
  %5577 = vmatpush1.bf16.msra.mxu0 %v3530
  %5578 = vmatprep.subr.bf16.mxu0 %v3512
  %5579 = vmatpush1.bf16.msra.mxu0 %v3511
  %5580 = vmatprep.subr.bf16.mxu0 %v3493
  %5581 = vmatpush1.bf16.msra.mxu0 %v3492
  %5582 = vmatprep.subr.bf16.mxu0 %v3474
  %5583 = vmatpush1.bf16.msra.mxu0 %v3473
  %5584 = vmatprep.subr.bf16.mxu0 %v3455
  %5585 = vmatpush1.bf16.msra.mxu0 %v3454
  %5586 = vmatprep.subr.bf16.mxu0 %v3436
  %5587 = vmatpush1.bf16.msra.mxu0 %v3435
  %5588 = vmatprep.subr.bf16.mxu0 %v3721
  %5589 = vmatpush2.bf16.msra.mxu0 %v3720
  %5590 = vmatprep.subr.bf16.mxu0 %v3702
  %5591 = vmatpush2.bf16.msra.mxu0 %v3701
  %5592 = vmatprep.subr.bf16.mxu0 %v3683
  %5593 = vmatpush2.bf16.msra.mxu0 %v3682
  %5594 = vmatprep.subr.bf16.mxu0 %v3664
  %5595 = vmatpush2.bf16.msra.mxu0 %v3663
  %5596 = vmatprep.subr.bf16.mxu0 %v3645
  %5597 = vmatpush2.bf16.msra.mxu0 %v3644
  %5598 = vmatprep.subr.bf16.mxu0 %v3626
  %5599 = vmatpush2.bf16.msra.mxu0 %v3625
  %5600 = vmatprep.subr.bf16.mxu0 %v3607
  %5601 = vmatpush2.bf16.msra.mxu0 %v3606
  %5602 = vmatprep.subr.bf16.mxu0 %v3588
  %5603 = vmatpush2.bf16.msra.mxu0 %v3587
  %5604 = vmatprep.mubr.bf16.mxu0 %v1230
  %5605 = vmatmul.mubr.bf16.gmra.mxu0 %v1229
  %v5606 = vpop.f32.mrf.mxu0
  %v5607 = vadd.f32 %v5534, %v5606
  %v5608 = vpop.f32.mrf.mxu0
  %v5609 = vadd.f32 %v5536, %v5608
  %v5610 = vpop.f32.mrf.mxu0
  %v5611 = vadd.f32 %v5538, %v5610
  %v5612 = vpop.f32.mrf.mxu0
  %v5613 = vadd.f32 %v5540, %v5612
  %5614 = vmatprep.mubr.bf16.mxu0 %v1234
  %5615 = vmatmul.mubr.bf16.gmra.mxu0 %v1233
  %v5616 = vpop.f32.mrf.mxu0
  %v5617 = vadd.f32 %v5544, %v5616
  %v5618 = vpop.f32.mrf.mxu0
  %v5619 = vadd.f32 %v5546, %v5618
  %v5620 = vpop.f32.mrf.mxu0
  %v5621 = vadd.f32 %v5548, %v5620
  %v5622 = vpop.f32.mrf.mxu0
  %v5623 = vadd.f32 %v5550, %v5622
  %5624 = vmatprep.mubr.bf16.mxu0 %v1238
  %5625 = vmatmul.mubr.bf16.gmra.mxu0 %v1237
  %v5626 = vpop.f32.mrf.mxu0
  %v5627 = vadd.f32 %v5554, %v5626
  %v5628 = vpop.f32.mrf.mxu0
  %v5629 = vadd.f32 %v5556, %v5628
  %v5630 = vpop.f32.mrf.mxu0
  %v5631 = vadd.f32 %v5558, %v5630
  %v5632 = vpop.f32.mrf.mxu0
  %v5633 = vadd.f32 %v5560, %v5632
  %5634 = vmatprep.mubr.bf16.mxu0 %v1242
  %5635 = vmatmul.mubr.bf16.gmra.mxu0 %v1241
  %v5636 = vpop.f32.mrf.mxu0
  %v5637 = vadd.f32 %v5564, %v5636
  %v5638 = vpop.f32.mrf.mxu0
  %v5639 = vadd.f32 %v5566, %v5638
  %v5640 = vpop.f32.mrf.mxu0
  %v5641 = vadd.f32 %v5568, %v5640
  %v5642 = vpop.f32.mrf.mxu0
  %v5643 = vadd.f32 %v5570, %v5642
  %5644 = vdwg.mxu0
  %5645 = vmatprep.subr.bf16.mxu0 0
  %5646 = vmatpush1.bf16.msra.mxu0 %v3266
  %5647 = vmatprep.subr.bf16.mxu0 0
  %5648 = vmatpush1.bf16.msra.mxu0 %v3247
  %5649 = vmatprep.subr.bf16.mxu0 0
  %5650 = vmatpush1.bf16.msra.mxu0 %v3228
  %5651 = vmatprep.subr.bf16.mxu0 0
  %5652 = vmatpush1.bf16.msra.mxu0 %v3209
  %5653 = vmatprep.subr.bf16.mxu0 0
  %5654 = vmatpush1.bf16.msra.mxu0 %v3190
  %5655 = vmatprep.subr.bf16.mxu0 0
  %5656 = vmatpush1.bf16.msra.mxu0 %v3171
  %5657 = vmatprep.subr.bf16.mxu0 0
  %5658 = vmatpush1.bf16.msra.mxu0 %v3152
  %5659 = vmatprep.subr.bf16.mxu0 0
  %5660 = vmatpush1.bf16.msra.mxu0 %v3133
  %5661 = vmatprep.subr.bf16.mxu0 0
  %5662 = vmatpush2.bf16.msra.mxu0 %v3418
  %5663 = vmatprep.subr.bf16.mxu0 0
  %5664 = vmatpush2.bf16.msra.mxu0 %v3399
  %5665 = vmatprep.subr.bf16.mxu0 0
  %5666 = vmatpush2.bf16.msra.mxu0 %v3380
  %5667 = vmatprep.subr.bf16.mxu0 0
  %5668 = vmatpush2.bf16.msra.mxu0 %v3361
  %5669 = vmatprep.subr.bf16.mxu0 0
  %5670 = vmatpush2.bf16.msra.mxu0 %v3342
  %5671 = vmatprep.subr.bf16.mxu0 0
  %5672 = vmatpush2.bf16.msra.mxu0 %v3323
  %5673 = vmatprep.subr.bf16.mxu0 0
  %5674 = vmatpush2.bf16.msra.mxu0 %v3304
  %5675 = vmatprep.subr.bf16.mxu0 0
  %5676 = vmatpush2.bf16.msra.mxu0 %v3285
  %5677 = vmatprep.mubr.bf16.mxu0 %v1228
  %5678 = vmatmul.mubr.bf16.gmra.mxu0 %v1227
  %v5679 = vpop.f32.mrf.mxu0
  %v5680 = vadd.f32 %v1159, %v5679
  %v5681 = vpop.f32.mrf.mxu0
  %v5682 = vpop.f32.mrf.mxu0
  %v5683 = vadd.f32 %v1159, %v5682
  %v5684 = vpop.f32.mrf.mxu0
  %5685 = vmatprep.mubr.bf16.mxu0 %v1232
  %5686 = vmatmul.mubr.bf16.gmra.mxu0 %v1231
  %v5687 = vpop.f32.mrf.mxu0
  %v5688 = vadd.f32 %v1159, %v5687
  %v5689 = vpop.f32.mrf.mxu0
  %v5690 = vpop.f32.mrf.mxu0
  %v5691 = vadd.f32 %v1159, %v5690
  %v5692 = vpop.f32.mrf.mxu0
  %5693 = vmatprep.mubr.bf16.mxu0 %v1236
  %5694 = vmatmul.mubr.bf16.gmra.mxu0 %v1235
  %v5695 = vpop.f32.mrf.mxu0
  %v5696 = vadd.f32 %v1159, %v5695
  %v5697 = vpop.f32.mrf.mxu0
  %v5698 = vpop.f32.mrf.mxu0
  %v5699 = vadd.f32 %v1159, %v5698
  %v5700 = vpop.f32.mrf.mxu0
  %5701 = vmatprep.mubr.bf16.mxu0 %v1240
  %5702 = vmatmul.mubr.bf16.gmra.mxu0 %v1239
  %v5703 = vpop.f32.mrf.mxu0
  %v5704 = vadd.f32 %v1159, %v5703
  %v5705 = vpop.f32.mrf.mxu0
  %v5706 = vpop.f32.mrf.mxu0
  %v5707 = vadd.f32 %v1159, %v5706
  %v5708 = vpop.f32.mrf.mxu0
  %5709 = vdwg.mxu0
  %5710 = vmatprep.subr.bf16.mxu0 0
  %5711 = vmatpush1.bf16.msra.mxu0 %v3570
  %5712 = vmatprep.subr.bf16.mxu0 0
  %5713 = vmatpush1.bf16.msra.mxu0 %v3551
  %5714 = vmatprep.subr.bf16.mxu0 0
  %5715 = vmatpush1.bf16.msra.mxu0 %v3532
  %5716 = vmatprep.subr.bf16.mxu0 0
  %5717 = vmatpush1.bf16.msra.mxu0 %v3513
  %5718 = vmatprep.subr.bf16.mxu0 0
  %5719 = vmatpush1.bf16.msra.mxu0 %v3494
  %5720 = vmatprep.subr.bf16.mxu0 0
  %5721 = vmatpush1.bf16.msra.mxu0 %v3475
  %5722 = vmatprep.subr.bf16.mxu0 0
  %5723 = vmatpush1.bf16.msra.mxu0 %v3456
  %5724 = vmatprep.subr.bf16.mxu0 0
  %5725 = vmatpush1.bf16.msra.mxu0 %v3437
  %5726 = vmatprep.subr.bf16.mxu0 0
  %5727 = vmatpush2.bf16.msra.mxu0 %v3722
  %5728 = vmatprep.subr.bf16.mxu0 0
  %5729 = vmatpush2.bf16.msra.mxu0 %v3703
  %5730 = vmatprep.subr.bf16.mxu0 0
  %5731 = vmatpush2.bf16.msra.mxu0 %v3684
  %5732 = vmatprep.subr.bf16.mxu0 0
  %5733 = vmatpush2.bf16.msra.mxu0 %v3665
  %5734 = vmatprep.subr.bf16.mxu0 0
  %5735 = vmatpush2.bf16.msra.mxu0 %v3646
  %5736 = vmatprep.subr.bf16.mxu0 0
  %5737 = vmatpush2.bf16.msra.mxu0 %v3627
  %5738 = vmatprep.subr.bf16.mxu0 0
  %5739 = vmatpush2.bf16.msra.mxu0 %v3608
  %5740 = vmatprep.subr.bf16.mxu0 0
  %5741 = vmatpush2.bf16.msra.mxu0 %v3589
  %5742 = vmatprep.mubr.bf16.mxu0 %v1230
  %5743 = vmatmul.mubr.bf16.gmra.mxu0 %v1229
  %v5744 = vpop.f32.mrf.mxu0
  %v5745 = vadd.f32 %v5680, %v5744
  %v5746 = vpop.f32.mrf.mxu0
  %v5747 = vpop.f32.mrf.mxu0
  %v5748 = vadd.f32 %v5683, %v5747
  %v5749 = vpop.f32.mrf.mxu0
  %5750 = vmatprep.mubr.bf16.mxu0 %v1234
  %5751 = vmatmul.mubr.bf16.gmra.mxu0 %v1233
  %v5752 = vpop.f32.mrf.mxu0
  %v5753 = vadd.f32 %v5688, %v5752
  %v5754 = vpop.f32.mrf.mxu0
  %v5755 = vpop.f32.mrf.mxu0
  %v5756 = vadd.f32 %v5691, %v5755
  %v5757 = vpop.f32.mrf.mxu0
  %5758 = vmatprep.mubr.bf16.mxu0 %v1238
  %5759 = vmatmul.mubr.bf16.gmra.mxu0 %v1237
  %v5760 = vpop.f32.mrf.mxu0
  %v5761 = vadd.f32 %v5696, %v5760
  %v5762 = vpop.f32.mrf.mxu0
  %v5763 = vpop.f32.mrf.mxu0
  %v5764 = vadd.f32 %v5699, %v5763
  %v5765 = vpop.f32.mrf.mxu0
  %5766 = vmatprep.mubr.bf16.mxu0 %v1242
  %5767 = vmatmul.mubr.bf16.gmra.mxu0 %v1241
  %v5768 = vpop.f32.mrf.mxu0
  %v5769 = vadd.f32 %v5704, %v5768
  %v5770 = vpop.f32.mrf.mxu0
  %v5771 = vpop.f32.mrf.mxu0
  %v5772 = vadd.f32 %v5707, %v5771
  %v5773 = vpop.f32.mrf.mxu0
  %5774 = vdwg.mxu0
  %v5775 = vsub.f32 0.0, %v4439
  %v5776 = vsub.f32 0.0, %v4441
  %v5777 = vsub.f32 0.0, %v4585
  %v5778 = vsub.f32 0.0, %v4587
  %v5779 = vsub.f32 0.0, %v4731
  %v5780 = vsub.f32 0.0, %v4733
  %v5781 = vsub.f32 0.0, %v4877
  %v5782 = vsub.f32 0.0, %v4879
  %v5783 = vsub.f32 0.0, %v5023
  %v5784 = vsub.f32 0.0, %v5025
  %v5785 = vsub.f32 0.0, %v5169
  %v5786 = vsub.f32 0.0, %v5171
  %v5787 = vsub.f32 0.0, %v5315
  %v5788 = vsub.f32 0.0, %v5317
  %v5789 = vsub.f32 0.0, %v5461
  %v5790 = vsub.f32 0.0, %v5463
  %v5791 = vsub.f32 0.0, %v5607
  %v5792 = vsub.f32 0.0, %v5609
  %v5793 = vsub.f32 0.0, %v5745
  %v5794 = vsub.f32 0.0, %v4443
  %v5795 = vsub.f32 0.0, %v4445
  %v5796 = vsub.f32 0.0, %v4589
  %v5797 = vsub.f32 0.0, %v4591
  %v5798 = vsub.f32 0.0, %v4735
  %v5799 = vsub.f32 0.0, %v4737
  %v5800 = vsub.f32 0.0, %v4881
  %v5801 = vsub.f32 0.0, %v4883
  %v5802 = vsub.f32 0.0, %v5027
  %v5803 = vsub.f32 0.0, %v5029
  %v5804 = vsub.f32 0.0, %v5173
  %v5805 = vsub.f32 0.0, %v5175
  %v5806 = vsub.f32 0.0, %v5319
  %v5807 = vsub.f32 0.0, %v5321
  %v5808 = vsub.f32 0.0, %v5465
  %v5809 = vsub.f32 0.0, %v5467
  %v5810 = vsub.f32 0.0, %v5611
  %v5811 = vsub.f32 0.0, %v5613
  %v5812 = vsub.f32 0.0, %v5748
  %v5813 = vsub.f32 0.0, %v4449
  %v5814 = vsub.f32 0.0, %v4451
  %v5815 = vsub.f32 0.0, %v4595
  %v5816 = vsub.f32 0.0, %v4597
  %v5817 = vsub.f32 0.0, %v4741
  %v5818 = vsub.f32 0.0, %v4743
  %v5819 = vsub.f32 0.0, %v4887
  %v5820 = vsub.f32 0.0, %v4889
  %v5821 = vsub.f32 0.0, %v5033
  %v5822 = vsub.f32 0.0, %v5035
  %v5823 = vsub.f32 0.0, %v5179
  %v5824 = vsub.f32 0.0, %v5181
  %v5825 = vsub.f32 0.0, %v5325
  %v5826 = vsub.f32 0.0, %v5327
  %v5827 = vsub.f32 0.0, %v5471
  %v5828 = vsub.f32 0.0, %v5473
  %v5829 = vsub.f32 0.0, %v5617
  %v5830 = vsub.f32 0.0, %v5619
  %v5831 = vsub.f32 0.0, %v5753
  %v5832 = vsub.f32 0.0, %v4453
  %v5833 = vsub.f32 0.0, %v4455
  %v5834 = vsub.f32 0.0, %v4599
  %v5835 = vsub.f32 0.0, %v4601
  %v5836 = vsub.f32 0.0, %v4745
  %v5837 = vsub.f32 0.0, %v4747
  %v5838 = vsub.f32 0.0, %v4891
  %v5839 = vsub.f32 0.0, %v4893
  %v5840 = vsub.f32 0.0, %v5037
  %v5841 = vsub.f32 0.0, %v5039
  %v5842 = vsub.f32 0.0, %v5183
  %v5843 = vsub.f32 0.0, %v5185
  %v5844 = vsub.f32 0.0, %v5329
  %v5845 = vsub.f32 0.0, %v5331
  %v5846 = vsub.f32 0.0, %v5475
  %v5847 = vsub.f32 0.0, %v5477
  %v5848 = vsub.f32 0.0, %v5621
  %v5849 = vsub.f32 0.0, %v5623
  %v5850 = vsub.f32 0.0, %v5756
  %v5851 = vsub.f32 0.0, %v4459
  %v5852 = vsub.f32 0.0, %v4461
  %v5853 = vsub.f32 0.0, %v4605
  %v5854 = vsub.f32 0.0, %v4607
  %v5855 = vsub.f32 0.0, %v4751
  %v5856 = vsub.f32 0.0, %v4753
  %v5857 = vsub.f32 0.0, %v4897
  %v5858 = vsub.f32 0.0, %v4899
  %v5859 = vsub.f32 0.0, %v5043
  %v5860 = vsub.f32 0.0, %v5045
  %v5861 = vsub.f32 0.0, %v5189
  %v5862 = vsub.f32 0.0, %v5191
  %v5863 = vsub.f32 0.0, %v5335
  %v5864 = vsub.f32 0.0, %v5337
  %v5865 = vsub.f32 0.0, %v5481
  %v5866 = vsub.f32 0.0, %v5483
  %v5867 = vsub.f32 0.0, %v5627
  %v5868 = vsub.f32 0.0, %v5629
  %v5869 = vsub.f32 0.0, %v5761
  %v5870 = vsub.f32 0.0, %v4463
  %v5871 = vsub.f32 0.0, %v4465
  %v5872 = vsub.f32 0.0, %v4609
  %v5873 = vsub.f32 0.0, %v4611
  %v5874 = vsub.f32 0.0, %v4755
  %v5875 = vsub.f32 0.0, %v4757
  %v5876 = vsub.f32 0.0, %v4901
  %v5877 = vsub.f32 0.0, %v4903
  %v5878 = vsub.f32 0.0, %v5047
  %v5879 = vsub.f32 0.0, %v5049
  %v5880 = vsub.f32 0.0, %v5193
  %v5881 = vsub.f32 0.0, %v5195
  %v5882 = vsub.f32 0.0, %v5339
  %v5883 = vsub.f32 0.0, %v5341
  %v5884 = vsub.f32 0.0, %v5485
  %v5885 = vsub.f32 0.0, %v5487
  %v5886 = vsub.f32 0.0, %v5631
  %v5887 = vsub.f32 0.0, %v5633
  %v5888 = vsub.f32 0.0, %v5764
  %v5889 = vsub.f32 0.0, %v4469
  %v5890 = vsub.f32 0.0, %v4471
  %v5891 = vsub.f32 0.0, %v4615
  %v5892 = vsub.f32 0.0, %v4617
  %v5893 = vsub.f32 0.0, %v4761
  %v5894 = vsub.f32 0.0, %v4763
  %v5895 = vsub.f32 0.0, %v4907
  %v5896 = vsub.f32 0.0, %v4909
  %v5897 = vsub.f32 0.0, %v5053
  %v5898 = vsub.f32 0.0, %v5055
  %v5899 = vsub.f32 0.0, %v5199
  %v5900 = vsub.f32 0.0, %v5201
  %v5901 = vsub.f32 0.0, %v5345
  %v5902 = vsub.f32 0.0, %v5347
  %v5903 = vsub.f32 0.0, %v5491
  %v5904 = vsub.f32 0.0, %v5493
  %v5905 = vsub.f32 0.0, %v5637
  %v5906 = vsub.f32 0.0, %v5639
  %v5907 = vsub.f32 0.0, %v5769
  %v5908 = vsub.f32 0.0, %v4473
  %v5909 = vsub.f32 0.0, %v4475
  %v5910 = vsub.f32 0.0, %v4619
  %v5911 = vsub.f32 0.0, %v4621
  %v5912 = vsub.f32 0.0, %v4765
  %v5913 = vsub.f32 0.0, %v4767
  %v5914 = vsub.f32 0.0, %v4911
  %v5915 = vsub.f32 0.0, %v4913
  %v5916 = vsub.f32 0.0, %v5057
  %v5917 = vsub.f32 0.0, %v5059
  %v5918 = vsub.f32 0.0, %v5203
  %v5919 = vsub.f32 0.0, %v5205
  %v5920 = vsub.f32 0.0, %v5349
  %v5921 = vsub.f32 0.0, %v5351
  %v5922 = vsub.f32 0.0, %v5495
  %v5923 = vsub.f32 0.0, %v5497
  %v5924 = vsub.f32 0.0, %v5641
  %v5925 = vsub.f32 0.0, %v5643
  %v5926 = vsub.f32 0.0, %v5772
  %v5927 = vmul.f32 %v5775, 1.442695
  %v5928 = vpow.pop %v5927
  %v5929 = vmul.f32 %v5776, 1.442695
  %v5930 = vpow.pop %v5929
  %v5931 = vmul.f32 %v5777, 1.442695
  %v5932 = vpow.pop %v5931
  %v5933 = vmul.f32 %v5778, 1.442695
  %v5934 = vpow.pop %v5933
  %v5935 = vmul.f32 %v5779, 1.442695
  %v5936 = vpow.pop %v5935
  %v5937 = vmul.f32 %v5780, 1.442695
  %v5938 = vpow.pop %v5937
  %v5939 = vmul.f32 %v5781, 1.442695
  %v5940 = vpow.pop %v5939
  %v5941 = vmul.f32 %v5782, 1.442695
  %v5942 = vpow.pop %v5941
  %v5943 = vmul.f32 %v5783, 1.442695
  %v5944 = vpow.pop %v5943
  %v5945 = vmul.f32 %v5784, 1.442695
  %v5946 = vpow.pop %v5945
  %v5947 = vmul.f32 %v5785, 1.442695
  %v5948 = vpow.pop %v5947
  %v5949 = vmul.f32 %v5786, 1.442695
  %v5950 = vpow.pop %v5949
  %v5951 = vmul.f32 %v5787, 1.442695
  %v5952 = vpow.pop %v5951
  %v5953 = vmul.f32 %v5788, 1.442695
  %v5954 = vpow.pop %v5953
  %v5955 = vmul.f32 %v5789, 1.442695
  %v5956 = vpow.pop %v5955
  %v5957 = vmul.f32 %v5790, 1.442695
  %v5958 = vpow.pop %v5957
  %v5959 = vmul.f32 %v5791, 1.442695
  %v5960 = vpow.pop %v5959
  %v5961 = vmul.f32 %v5792, 1.442695
  %v5962 = vpow.pop %v5961
  %v5963 = vmul.f32 %v5793, 1.442695
  %v5964 = vpow.pop %v5963
  %v5965 = vmul.f32 %v5794, 1.442695
  %v5966 = vpow.pop %v5965
  %v5967 = vmul.f32 %v5795, 1.442695
  %v5968 = vpow.pop %v5967
  %v5969 = vmul.f32 %v5796, 1.442695
  %v5970 = vpow.pop %v5969
  %v5971 = vmul.f32 %v5797, 1.442695
  %v5972 = vpow.pop %v5971
  %v5973 = vmul.f32 %v5798, 1.442695
  %v5974 = vpow.pop %v5973
  %v5975 = vmul.f32 %v5799, 1.442695
  %v5976 = vpow.pop %v5975
  %v5977 = vmul.f32 %v5800, 1.442695
  %v5978 = vpow.pop %v5977
  %v5979 = vmul.f32 %v5801, 1.442695
  %v5980 = vpow.pop %v5979
  %v5981 = vmul.f32 %v5802, 1.442695
  %v5982 = vpow.pop %v5981
  %v5983 = vmul.f32 %v5803, 1.442695
  %v5984 = vpow.pop %v5983
  %v5985 = vmul.f32 %v5804, 1.442695
  %v5986 = vpow.pop %v5985
  %v5987 = vmul.f32 %v5805, 1.442695
  %v5988 = vpow.pop %v5987
  %v5989 = vmul.f32 %v5806, 1.442695
  %v5990 = vpow.pop %v5989
  %v5991 = vmul.f32 %v5807, 1.442695
  %v5992 = vpow.pop %v5991
  %v5993 = vmul.f32 %v5808, 1.442695
  %v5994 = vpow.pop %v5993
  %v5995 = vmul.f32 %v5809, 1.442695
  %v5996 = vpow.pop %v5995
  %v5997 = vmul.f32 %v5810, 1.442695
  %v5998 = vpow.pop %v5997
  %v5999 = vmul.f32 %v5811, 1.442695
  %v6000 = vpow.pop %v5999
  %v6001 = vmul.f32 %v5812, 1.442695
  %v6002 = vpow.pop %v6001
  %v6003 = vmul.f32 %v5813, 1.442695
  %v6004 = vpow.pop %v6003
  %v6005 = vmul.f32 %v5814, 1.442695
  %v6006 = vpow.pop %v6005
  %v6007 = vmul.f32 %v5815, 1.442695
  %v6008 = vpow.pop %v6007
  %v6009 = vmul.f32 %v5816, 1.442695
  %v6010 = vpow.pop %v6009
  %v6011 = vmul.f32 %v5817, 1.442695
  %v6012 = vpow.pop %v6011
  %v6013 = vmul.f32 %v5818, 1.442695
  %v6014 = vpow.pop %v6013
  %v6015 = vmul.f32 %v5819, 1.442695
  %v6016 = vpow.pop %v6015
  %v6017 = vmul.f32 %v5820, 1.442695
  %v6018 = vpow.pop %v6017
  %v6019 = vmul.f32 %v5821, 1.442695
  %v6020 = vpow.pop %v6019
  %v6021 = vmul.f32 %v5822, 1.442695
  %v6022 = vpow.pop %v6021
  %v6023 = vmul.f32 %v5823, 1.442695
  %v6024 = vpow.pop %v6023
  %v6025 = vmul.f32 %v5824, 1.442695
  %v6026 = vpow.pop %v6025
  %v6027 = vmul.f32 %v5825, 1.442695
  %v6028 = vpow.pop %v6027
  %v6029 = vmul.f32 %v5826, 1.442695
  %v6030 = vpow.pop %v6029
  %v6031 = vmul.f32 %v5827, 1.442695
  %v6032 = vpow.pop %v6031
  %v6033 = vmul.f32 %v5828, 1.442695
  %v6034 = vpow.pop %v6033
  %v6035 = vmul.f32 %v5829, 1.442695
  %v6036 = vpow.pop %v6035
  %v6037 = vmul.f32 %v5830, 1.442695
  %v6038 = vpow.pop %v6037
  %v6039 = vmul.f32 %v5831, 1.442695
  %v6040 = vpow.pop %v6039
  %v6041 = vmul.f32 %v5832, 1.442695
  %v6042 = vpow.pop %v6041
  %v6043 = vmul.f32 %v5833, 1.442695
  %v6044 = vpow.pop %v6043
  %v6045 = vmul.f32 %v5834, 1.442695
  %v6046 = vpow.pop %v6045
  %v6047 = vmul.f32 %v5835, 1.442695
  %v6048 = vpow.pop %v6047
  %v6049 = vmul.f32 %v5836, 1.442695
  %v6050 = vpow.pop %v6049
  %v6051 = vmul.f32 %v5837, 1.442695
  %v6052 = vpow.pop %v6051
  %v6053 = vmul.f32 %v5838, 1.442695
  %v6054 = vpow.pop %v6053
  %v6055 = vmul.f32 %v5839, 1.442695
  %v6056 = vpow.pop %v6055
  %v6057 = vmul.f32 %v5840, 1.442695
  %v6058 = vpow.pop %v6057
  %v6059 = vmul.f32 %v5841, 1.442695
  %v6060 = vpow.pop %v6059
  %v6061 = vmul.f32 %v5842, 1.442695
  %v6062 = vpow.pop %v6061
  %v6063 = vmul.f32 %v5843, 1.442695
  %v6064 = vpow.pop %v6063
  %v6065 = vmul.f32 %v5844, 1.442695
  %v6066 = vpow.pop %v6065
  %v6067 = vmul.f32 %v5845, 1.442695
  %v6068 = vpow.pop %v6067
  %v6069 = vmul.f32 %v5846, 1.442695
  %v6070 = vpow.pop %v6069
  %v6071 = vmul.f32 %v5847, 1.442695
  %v6072 = vpow.pop %v6071
  %v6073 = vmul.f32 %v5848, 1.442695
  %v6074 = vpow.pop %v6073
  %v6075 = vmul.f32 %v5849, 1.442695
  %v6076 = vpow.pop %v6075
  %v6077 = vmul.f32 %v5850, 1.442695
  %v6078 = vpow.pop %v6077
  %v6079 = vmul.f32 %v5851, 1.442695
  %v6080 = vpow.pop %v6079
  %v6081 = vmul.f32 %v5852, 1.442695
  %v6082 = vpow.pop %v6081
  %v6083 = vmul.f32 %v5853, 1.442695
  %v6084 = vpow.pop %v6083
  %v6085 = vmul.f32 %v5854, 1.442695
  %v6086 = vpow.pop %v6085
  %v6087 = vmul.f32 %v5855, 1.442695
  %v6088 = vpow.pop %v6087
  %v6089 = vmul.f32 %v5856, 1.442695
  %v6090 = vpow.pop %v6089
  %v6091 = vmul.f32 %v5857, 1.442695
  %v6092 = vpow.pop %v6091
  %v6093 = vmul.f32 %v5858, 1.442695
  %v6094 = vpow.pop %v6093
  %v6095 = vmul.f32 %v5859, 1.442695
  %v6096 = vpow.pop %v6095
  %v6097 = vmul.f32 %v5860, 1.442695
  %v6098 = vpow.pop %v6097
  %v6099 = vmul.f32 %v5861, 1.442695
  %v6100 = vpow.pop %v6099
  %v6101 = vmul.f32 %v5862, 1.442695
  %v6102 = vpow.pop %v6101
  %v6103 = vmul.f32 %v5863, 1.442695
  %v6104 = vpow.pop %v6103
  %v6105 = vmul.f32 %v5864, 1.442695
  %v6106 = vpow.pop %v6105
  %v6107 = vmul.f32 %v5865, 1.442695
  %v6108 = vpow.pop %v6107
  %v6109 = vmul.f32 %v5866, 1.442695
  %v6110 = vpow.pop %v6109
  %v6111 = vmul.f32 %v5867, 1.442695
  %v6112 = vpow.pop %v6111
  %v6113 = vmul.f32 %v5868, 1.442695
  %v6114 = vpow.pop %v6113
  %v6115 = vmul.f32 %v5869, 1.442695
  %v6116 = vpow.pop %v6115
  %v6117 = vmul.f32 %v5870, 1.442695
  %v6118 = vpow.pop %v6117
  %v6119 = vmul.f32 %v5871, 1.442695
  %v6120 = vpow.pop %v6119
  %v6121 = vmul.f32 %v5872, 1.442695
  %v6122 = vpow.pop %v6121
  %v6123 = vmul.f32 %v5873, 1.442695
  %v6124 = vpow.pop %v6123
  %v6125 = vmul.f32 %v5874, 1.442695
  %v6126 = vpow.pop %v6125
  %v6127 = vmul.f32 %v5875, 1.442695
  %v6128 = vpow.pop %v6127
  %v6129 = vmul.f32 %v5876, 1.442695
  %v6130 = vpow.pop %v6129
  %v6131 = vmul.f32 %v5877, 1.442695
  %v6132 = vpow.pop %v6131
  %v6133 = vmul.f32 %v5878, 1.442695
  %v6134 = vpow.pop %v6133
  %v6135 = vmul.f32 %v5879, 1.442695
  %v6136 = vpow.pop %v6135
  %v6137 = vmul.f32 %v5880, 1.442695
  %v6138 = vpow.pop %v6137
  %v6139 = vmul.f32 %v5881, 1.442695
  %v6140 = vpow.pop %v6139
  %v6141 = vmul.f32 %v5882, 1.442695
  %v6142 = vpow.pop %v6141
  %v6143 = vmul.f32 %v5883, 1.442695
  %v6144 = vpow.pop %v6143
  %v6145 = vmul.f32 %v5884, 1.442695
  %v6146 = vpow.pop %v6145
  %v6147 = vmul.f32 %v5885, 1.442695
  %v6148 = vpow.pop %v6147
  %v6149 = vmul.f32 %v5886, 1.442695
  %v6150 = vpow.pop %v6149
  %v6151 = vmul.f32 %v5887, 1.442695
  %v6152 = vpow.pop %v6151
  %v6153 = vmul.f32 %v5888, 1.442695
  %v6154 = vpow.pop %v6153
  %v6155 = vmul.f32 %v5889, 1.442695
  %v6156 = vpow.pop %v6155
  %v6157 = vmul.f32 %v5890, 1.442695
  %v6158 = vpow.pop %v6157
  %v6159 = vmul.f32 %v5891, 1.442695
  %v6160 = vpow.pop %v6159
  %v6161 = vmul.f32 %v5892, 1.442695
  %v6162 = vpow.pop %v6161
  %v6163 = vmul.f32 %v5893, 1.442695
  %v6164 = vpow.pop %v6163
  %v6165 = vmul.f32 %v5894, 1.442695
  %v6166 = vpow.pop %v6165
  %v6167 = vmul.f32 %v5895, 1.442695
  %v6168 = vpow.pop %v6167
  %v6169 = vmul.f32 %v5896, 1.442695
  %v6170 = vpow.pop %v6169
  %v6171 = vmul.f32 %v5897, 1.442695
  %v6172 = vpow.pop %v6171
  %v6173 = vmul.f32 %v5898, 1.442695
  %v6174 = vpow.pop %v6173
  %v6175 = vmul.f32 %v5899, 1.442695
  %v6176 = vpow.pop %v6175
  %v6177 = vmul.f32 %v5900, 1.442695
  %v6178 = vpow.pop %v6177
  %v6179 = vmul.f32 %v5901, 1.442695
  %v6180 = vpow.pop %v6179
  %v6181 = vmul.f32 %v5902, 1.442695
  %v6182 = vpow.pop %v6181
  %v6183 = vmul.f32 %v5903, 1.442695
  %v6184 = vpow.pop %v6183
  %v6185 = vmul.f32 %v5904, 1.442695
  %v6186 = vpow.pop %v6185
  %v6187 = vmul.f32 %v5905, 1.442695
  %v6188 = vpow.pop %v6187
  %v6189 = vmul.f32 %v5906, 1.442695
  %v6190 = vpow.pop %v6189
  %v6191 = vmul.f32 %v5907, 1.442695
  %v6192 = vpow.pop %v6191
  %v6193 = vmul.f32 %v5908, 1.442695
  %v6194 = vpow.pop %v6193
  %v6195 = vmul.f32 %v5909, 1.442695
  %v6196 = vpow.pop %v6195
  %v6197 = vmul.f32 %v5910, 1.442695
  %v6198 = vpow.pop %v6197
  %v6199 = vmul.f32 %v5911, 1.442695
  %v6200 = vpow.pop %v6199
  %v6201 = vmul.f32 %v5912, 1.442695
  %v6202 = vpow.pop %v6201
  %v6203 = vmul.f32 %v5913, 1.442695
  %v6204 = vpow.pop %v6203
  %v6205 = vmul.f32 %v5914, 1.442695
  %v6206 = vpow.pop %v6205
  %v6207 = vmul.f32 %v5915, 1.442695
  %v6208 = vpow.pop %v6207
  %v6209 = vmul.f32 %v5916, 1.442695
  %v6210 = vpow.pop %v6209
  %v6211 = vmul.f32 %v5917, 1.442695
  %v6212 = vpow.pop %v6211
  %v6213 = vmul.f32 %v5918, 1.442695
  %v6214 = vpow.pop %v6213
  %v6215 = vmul.f32 %v5919, 1.442695
  %v6216 = vpow.pop %v6215
  %v6217 = vmul.f32 %v5920, 1.442695
  %v6218 = vpow.pop %v6217
  %v6219 = vmul.f32 %v5921, 1.442695
  %v6220 = vpow.pop %v6219
  %v6221 = vmul.f32 %v5922, 1.442695
  %v6222 = vpow.pop %v6221
  %v6223 = vmul.f32 %v5923, 1.442695
  %v6224 = vpow.pop %v6223
  %v6225 = vmul.f32 %v5924, 1.442695
  %v6226 = vpow.pop %v6225
  %v6227 = vmul.f32 %v5925, 1.442695
  %v6228 = vpow.pop %v6227
  %v6229 = vmul.f32 %v5926, 1.442695
  %v6230 = vpow.pop %v6229
  %v6231 = vadd.f32 %v5928, 1.0
  %v6232 = vadd.f32 %v5930, 1.0
  %v6233 = vadd.f32 %v5932, 1.0
  %v6234 = vadd.f32 %v5934, 1.0
  %v6235 = vadd.f32 %v5936, 1.0
  %v6236 = vadd.f32 %v5938, 1.0
  %v6237 = vadd.f32 %v5940, 1.0
  %v6238 = vadd.f32 %v5942, 1.0
  %v6239 = vadd.f32 %v5944, 1.0
  %v6240 = vadd.f32 %v5946, 1.0
  %v6241 = vadd.f32 %v5948, 1.0
  %v6242 = vadd.f32 %v5950, 1.0
  %v6243 = vadd.f32 %v5952, 1.0
  %v6244 = vadd.f32 %v5954, 1.0
  %v6245 = vadd.f32 %v5956, 1.0
  %v6246 = vadd.f32 %v5958, 1.0
  %v6247 = vadd.f32 %v5960, 1.0
  %v6248 = vadd.f32 %v5962, 1.0
  %v6249 = vadd.f32 %v5964, 1.0
  %v6250 = vadd.f32 %v5966, 1.0
  %v6251 = vadd.f32 %v5968, 1.0
  %v6252 = vadd.f32 %v5970, 1.0
  %v6253 = vadd.f32 %v5972, 1.0
  %v6254 = vadd.f32 %v5974, 1.0
  %v6255 = vadd.f32 %v5976, 1.0
  %v6256 = vadd.f32 %v5978, 1.0
  %v6257 = vadd.f32 %v5980, 1.0
  %v6258 = vadd.f32 %v5982, 1.0
  %v6259 = vadd.f32 %v5984, 1.0
  %v6260 = vadd.f32 %v5986, 1.0
  %v6261 = vadd.f32 %v5988, 1.0
  %v6262 = vadd.f32 %v5990, 1.0
  %v6263 = vadd.f32 %v5992, 1.0
  %v6264 = vadd.f32 %v5994, 1.0
  %v6265 = vadd.f32 %v5996, 1.0
  %v6266 = vadd.f32 %v5998, 1.0
  %v6267 = vadd.f32 %v6000, 1.0
  %v6268 = vadd.f32 %v6002, 1.0
  %v6269 = vadd.f32 %v6004, 1.0
  %v6270 = vadd.f32 %v6006, 1.0
  %v6271 = vadd.f32 %v6008, 1.0
  %v6272 = vadd.f32 %v6010, 1.0
  %v6273 = vadd.f32 %v6012, 1.0
  %v6274 = vadd.f32 %v6014, 1.0
  %v6275 = vadd.f32 %v6016, 1.0
  %v6276 = vadd.f32 %v6018, 1.0
  %v6277 = vadd.f32 %v6020, 1.0
  %v6278 = vadd.f32 %v6022, 1.0
  %v6279 = vadd.f32 %v6024, 1.0
  %v6280 = vadd.f32 %v6026, 1.0
  %v6281 = vadd.f32 %v6028, 1.0
  %v6282 = vadd.f32 %v6030, 1.0
  %v6283 = vadd.f32 %v6032, 1.0
  %v6284 = vadd.f32 %v6034, 1.0
  %v6285 = vadd.f32 %v6036, 1.0
  %v6286 = vadd.f32 %v6038, 1.0
  %v6287 = vadd.f32 %v6040, 1.0
  %v6288 = vadd.f32 %v6042, 1.0
  %v6289 = vadd.f32 %v6044, 1.0
  %v6290 = vadd.f32 %v6046, 1.0
  %v6291 = vadd.f32 %v6048, 1.0
  %v6292 = vadd.f32 %v6050, 1.0
  %v6293 = vadd.f32 %v6052, 1.0
  %v6294 = vadd.f32 %v6054, 1.0
  %v6295 = vadd.f32 %v6056, 1.0
  %v6296 = vadd.f32 %v6058, 1.0
  %v6297 = vadd.f32 %v6060, 1.0
  %v6298 = vadd.f32 %v6062, 1.0
  %v6299 = vadd.f32 %v6064, 1.0
  %v6300 = vadd.f32 %v6066, 1.0
  %v6301 = vadd.f32 %v6068, 1.0
  %v6302 = vadd.f32 %v6070, 1.0
  %v6303 = vadd.f32 %v6072, 1.0
  %v6304 = vadd.f32 %v6074, 1.0
  %v6305 = vadd.f32 %v6076, 1.0
  %v6306 = vadd.f32 %v6078, 1.0
  %v6307 = vadd.f32 %v6080, 1.0
  %v6308 = vadd.f32 %v6082, 1.0
  %v6309 = vadd.f32 %v6084, 1.0
  %v6310 = vadd.f32 %v6086, 1.0
  %v6311 = vadd.f32 %v6088, 1.0
  %v6312 = vadd.f32 %v6090, 1.0
  %v6313 = vadd.f32 %v6092, 1.0
  %v6314 = vadd.f32 %v6094, 1.0
  %v6315 = vadd.f32 %v6096, 1.0
  %v6316 = vadd.f32 %v6098, 1.0
  %v6317 = vadd.f32 %v6100, 1.0
  %v6318 = vadd.f32 %v6102, 1.0
  %v6319 = vadd.f32 %v6104, 1.0
  %v6320 = vadd.f32 %v6106, 1.0
  %v6321 = vadd.f32 %v6108, 1.0
  %v6322 = vadd.f32 %v6110, 1.0
  %v6323 = vadd.f32 %v6112, 1.0
  %v6324 = vadd.f32 %v6114, 1.0
  %v6325 = vadd.f32 %v6116, 1.0
  %v6326 = vadd.f32 %v6118, 1.0
  %v6327 = vadd.f32 %v6120, 1.0
  %v6328 = vadd.f32 %v6122, 1.0
  %v6329 = vadd.f32 %v6124, 1.0
  %v6330 = vadd.f32 %v6126, 1.0
  %v6331 = vadd.f32 %v6128, 1.0
  %v6332 = vadd.f32 %v6130, 1.0
  %v6333 = vadd.f32 %v6132, 1.0
  %v6334 = vadd.f32 %v6134, 1.0
  %v6335 = vadd.f32 %v6136, 1.0
  %v6336 = vadd.f32 %v6138, 1.0
  %v6337 = vadd.f32 %v6140, 1.0
  %v6338 = vadd.f32 %v6142, 1.0
  %v6339 = vadd.f32 %v6144, 1.0
  %v6340 = vadd.f32 %v6146, 1.0
  %v6341 = vadd.f32 %v6148, 1.0
  %v6342 = vadd.f32 %v6150, 1.0
  %v6343 = vadd.f32 %v6152, 1.0
  %v6344 = vadd.f32 %v6154, 1.0
  %v6345 = vadd.f32 %v6156, 1.0
  %v6346 = vadd.f32 %v6158, 1.0
  %v6347 = vadd.f32 %v6160, 1.0
  %v6348 = vadd.f32 %v6162, 1.0
  %v6349 = vadd.f32 %v6164, 1.0
  %v6350 = vadd.f32 %v6166, 1.0
  %v6351 = vadd.f32 %v6168, 1.0
  %v6352 = vadd.f32 %v6170, 1.0
  %v6353 = vadd.f32 %v6172, 1.0
  %v6354 = vadd.f32 %v6174, 1.0
  %v6355 = vadd.f32 %v6176, 1.0
  %v6356 = vadd.f32 %v6178, 1.0
  %v6357 = vadd.f32 %v6180, 1.0
  %v6358 = vadd.f32 %v6182, 1.0
  %v6359 = vadd.f32 %v6184, 1.0
  %v6360 = vadd.f32 %v6186, 1.0
  %v6361 = vadd.f32 %v6188, 1.0
  %v6362 = vadd.f32 %v6190, 1.0
  %v6363 = vadd.f32 %v6192, 1.0
  %v6364 = vadd.f32 %v6194, 1.0
  %v6365 = vadd.f32 %v6196, 1.0
  %v6366 = vadd.f32 %v6198, 1.0
  %v6367 = vadd.f32 %v6200, 1.0
  %v6368 = vadd.f32 %v6202, 1.0
  %v6369 = vadd.f32 %v6204, 1.0
  %v6370 = vadd.f32 %v6206, 1.0
  %v6371 = vadd.f32 %v6208, 1.0
  %v6372 = vadd.f32 %v6210, 1.0
  %v6373 = vadd.f32 %v6212, 1.0
  %v6374 = vadd.f32 %v6214, 1.0
  %v6375 = vadd.f32 %v6216, 1.0
  %v6376 = vadd.f32 %v6218, 1.0
  %v6377 = vadd.f32 %v6220, 1.0
  %v6378 = vadd.f32 %v6222, 1.0
  %v6379 = vadd.f32 %v6224, 1.0
  %v6380 = vadd.f32 %v6226, 1.0
  %v6381 = vadd.f32 %v6228, 1.0
  %v6382 = vadd.f32 %v6230, 1.0
  %v6383 = vrcp.pop %v6231
  %v6384 = vrcp.pop %v6232
  %v6385 = vrcp.pop %v6233
  %v6386 = vrcp.pop %v6234
  %v6387 = vrcp.pop %v6235
  %v6388 = vrcp.pop %v6236
  %v6389 = vrcp.pop %v6237
  %v6390 = vrcp.pop %v6238
  %v6391 = vrcp.pop %v6239
  %v6392 = vrcp.pop %v6240
  %v6393 = vrcp.pop %v6241
  %v6394 = vrcp.pop %v6242
  %v6395 = vrcp.pop %v6243
  %v6396 = vrcp.pop %v6244
  %v6397 = vrcp.pop %v6245
  %v6398 = vrcp.pop %v6246
  %v6399 = vrcp.pop %v6247
  %v6400 = vrcp.pop %v6248
  %v6401 = vrcp.pop %v6249
  %v6402 = vrcp.pop %v6250
  %v6403 = vrcp.pop %v6251
  %v6404 = vrcp.pop %v6252
  %v6405 = vrcp.pop %v6253
  %v6406 = vrcp.pop %v6254
  %v6407 = vrcp.pop %v6255
  %v6408 = vrcp.pop %v6256
  %v6409 = vrcp.pop %v6257
  %v6410 = vrcp.pop %v6258
  %v6411 = vrcp.pop %v6259
  %v6412 = vrcp.pop %v6260
  %v6413 = vrcp.pop %v6261
  %v6414 = vrcp.pop %v6262
  %v6415 = vrcp.pop %v6263
  %v6416 = vrcp.pop %v6264
  %v6417 = vrcp.pop %v6265
  %v6418 = vrcp.pop %v6266
  %v6419 = vrcp.pop %v6267
  %v6420 = vrcp.pop %v6268
  %v6421 = vrcp.pop %v6269
  %v6422 = vrcp.pop %v6270
  %v6423 = vrcp.pop %v6271
  %v6424 = vrcp.pop %v6272
  %v6425 = vrcp.pop %v6273
  %v6426 = vrcp.pop %v6274
  %v6427 = vrcp.pop %v6275
  %v6428 = vrcp.pop %v6276
  %v6429 = vrcp.pop %v6277
  %v6430 = vrcp.pop %v6278
  %v6431 = vrcp.pop %v6279
  %v6432 = vrcp.pop %v6280
  %v6433 = vrcp.pop %v6281
  %v6434 = vrcp.pop %v6282
  %v6435 = vrcp.pop %v6283
  %v6436 = vrcp.pop %v6284
  %v6437 = vrcp.pop %v6285
  %v6438 = vrcp.pop %v6286
  %v6439 = vrcp.pop %v6287
  %v6440 = vrcp.pop %v6288
  %v6441 = vrcp.pop %v6289
  %v6442 = vrcp.pop %v6290
  %v6443 = vrcp.pop %v6291
  %v6444 = vrcp.pop %v6292
  %v6445 = vrcp.pop %v6293
  %v6446 = vrcp.pop %v6294
  %v6447 = vrcp.pop %v6295
  %v6448 = vrcp.pop %v6296
  %v6449 = vrcp.pop %v6297
  %v6450 = vrcp.pop %v6298
  %v6451 = vrcp.pop %v6299
  %v6452 = vrcp.pop %v6300
  %v6453 = vrcp.pop %v6301
  %v6454 = vrcp.pop %v6302
  %v6455 = vrcp.pop %v6303
  %v6456 = vrcp.pop %v6304
  %v6457 = vrcp.pop %v6305
  %v6458 = vrcp.pop %v6306
  %v6459 = vrcp.pop %v6307
  %v6460 = vrcp.pop %v6308
  %v6461 = vrcp.pop %v6309
  %v6462 = vrcp.pop %v6310
  %v6463 = vrcp.pop %v6311
  %v6464 = vrcp.pop %v6312
  %v6465 = vrcp.pop %v6313
  %v6466 = vrcp.pop %v6314
  %v6467 = vrcp.pop %v6315
  %v6468 = vrcp.pop %v6316
  %v6469 = vrcp.pop %v6317
  %v6470 = vrcp.pop %v6318
  %v6471 = vrcp.pop %v6319
  %v6472 = vrcp.pop %v6320
  %v6473 = vrcp.pop %v6321
  %v6474 = vrcp.pop %v6322
  %v6475 = vrcp.pop %v6323
  %v6476 = vrcp.pop %v6324
  %v6477 = vrcp.pop %v6325
  %v6478 = vrcp.pop %v6326
  %v6479 = vrcp.pop %v6327
  %v6480 = vrcp.pop %v6328
  %v6481 = vrcp.pop %v6329
  %v6482 = vrcp.pop %v6330
  %v6483 = vrcp.pop %v6331
  %v6484 = vrcp.pop %v6332
  %v6485 = vrcp.pop %v6333
  %v6486 = vrcp.pop %v6334
  %v6487 = vrcp.pop %v6335
  %v6488 = vrcp.pop %v6336
  %v6489 = vrcp.pop %v6337
  %v6490 = vrcp.pop %v6338
  %v6491 = vrcp.pop %v6339
  %v6492 = vrcp.pop %v6340
  %v6493 = vrcp.pop %v6341
  %v6494 = vrcp.pop %v6342
  %v6495 = vrcp.pop %v6343
  %v6496 = vrcp.pop %v6344
  %v6497 = vrcp.pop %v6345
  %v6498 = vrcp.pop %v6346
  %v6499 = vrcp.pop %v6347
  %v6500 = vrcp.pop %v6348
  %v6501 = vrcp.pop %v6349
  %v6502 = vrcp.pop %v6350
  %v6503 = vrcp.pop %v6351
  %v6504 = vrcp.pop %v6352
  %v6505 = vrcp.pop %v6353
  %v6506 = vrcp.pop %v6354
  %v6507 = vrcp.pop %v6355
  %v6508 = vrcp.pop %v6356
  %v6509 = vrcp.pop %v6357
  %v6510 = vrcp.pop %v6358
  %v6511 = vrcp.pop %v6359
  %v6512 = vrcp.pop %v6360
  %v6513 = vrcp.pop %v6361
  %v6514 = vrcp.pop %v6362
  %v6515 = vrcp.pop %v6363
  %v6516 = vrcp.pop %v6364
  %v6517 = vrcp.pop %v6365
  %v6518 = vrcp.pop %v6366
  %v6519 = vrcp.pop %v6367
  %v6520 = vrcp.pop %v6368
  %v6521 = vrcp.pop %v6369
  %v6522 = vrcp.pop %v6370
  %v6523 = vrcp.pop %v6371
  %v6524 = vrcp.pop %v6372
  %v6525 = vrcp.pop %v6373
  %v6526 = vrcp.pop %v6374
  %v6527 = vrcp.pop %v6375
  %v6528 = vrcp.pop %v6376
  %v6529 = vrcp.pop %v6377
  %v6530 = vrcp.pop %v6378
  %v6531 = vrcp.pop %v6379
  %v6532 = vrcp.pop %v6380
  %v6533 = vrcp.pop %v6381
  %v6534 = vrcp.pop %v6382
  %6535 = vst [vmem:[%s5] sm:$0xff] %v6383
  %6536 = vst [vmem:[%s5 + $0x8] sm:$0xff] %v6384
  %6537 = vst [vmem:[%s5 + $0x10] sm:$0xff] %v6385
  %6538 = vst [vmem:[%s5 + $0x18] sm:$0xff] %v6386
  %6539 = vst [vmem:[%s5 + $0x20] sm:$0xff] %v6387
  %6540 = vst [vmem:[%s5 + $0x28] sm:$0xff] %v6388
  %6541 = vst [vmem:[%s5 + $0x30] sm:$0xff] %v6389
  %6542 = vst [vmem:[%s5 + $0x38] sm:$0xff] %v6390
  %6543 = vst [vmem:[%s5 + $0x40] sm:$0xff] %v6391
  %6544 = vst [vmem:[%s5 + $0x48] sm:$0xff] %v6392
  %6545 = vst [vmem:[%s5 + $0x50] sm:$0xff] %v6393
  %6546 = vst [vmem:[%s5 + $0x58] sm:$0xff] %v6394
  %6547 = vst [vmem:[%s5 + $0x60] sm:$0xff] %v6395
  %6548 = vst [vmem:[%s5 + $0x68] sm:$0xff] %v6396
  %6549 = vst [vmem:[%s5 + $0x70] sm:$0xff] %v6397
  %6550 = vst [vmem:[%s5 + $0x78] sm:$0xff] %v6398
  %6551 = vst [vmem:[%s5 + $0x80] sm:$0xff] %v6399
  %6552 = vst [vmem:[%s5 + $0x88] sm:$0xff] %v6400
  %6553 = vst [vmem:[%s5 + $0x90] sm:$0xff] %v6401
  %6554 = vst [vmem:[%s5 + $0x98] sm:$0xff] %v6402
  %6555 = vst [vmem:[%s5 + $0xa0] sm:$0xff] %v6403
  %6556 = vst [vmem:[%s5 + $0xa8] sm:$0xff] %v6404
  %6557 = vst [vmem:[%s5 + $0xb0] sm:$0xff] %v6405
  %6558 = vst [vmem:[%s5 + $0xb8] sm:$0xff] %v6406
  %6559 = vst [vmem:[%s5 + $0xc0] sm:$0xff] %v6407
  %6560 = vst [vmem:[%s5 + $0xc8] sm:$0xff] %v6408
  %6561 = vst [vmem:[%s5 + $0xd0] sm:$0xff] %v6409
  %6562 = vst [vmem:[%s5 + $0xd8] sm:$0xff] %v6410
  %6563 = vst [vmem:[%s5 + $0xe0] sm:$0xff] %v6411
  %6564 = vst [vmem:[%s5 + $0xe8] sm:$0xff] %v6412
  %6565 = vst [vmem:[%s5 + $0xf0] sm:$0xff] %v6413
  %6566 = vst [vmem:[%s5 + $0xf8] sm:$0xff] %v6414
  %6567 = vst [vmem:[%s5 + $0x100] sm:$0xff] %v6415
  %6568 = vst [vmem:[%s5 + $0x108] sm:$0xff] %v6416
  %6569 = vst [vmem:[%s5 + $0x110] sm:$0xff] %v6417
  %6570 = vst [vmem:[%s5 + $0x118] sm:$0xff] %v6418
  %6571 = vst [vmem:[%s5 + $0x120] sm:$0xff] %v6419
  %6572 = vst [vmem:[%s5 + $0x128] sm:$0xff] %v6420
  %6573 = vst [vmem:[%s5 + $0x130] sm:$0xff] %v6421
  %6574 = vst [vmem:[%s5 + $0x138] sm:$0xff] %v6422
  %6575 = vst [vmem:[%s5 + $0x140] sm:$0xff] %v6423
  %6576 = vst [vmem:[%s5 + $0x148] sm:$0xff] %v6424
  %6577 = vst [vmem:[%s5 + $0x150] sm:$0xff] %v6425
  %6578 = vst [vmem:[%s5 + $0x158] sm:$0xff] %v6426
  %6579 = vst [vmem:[%s5 + $0x160] sm:$0xff] %v6427
  %6580 = vst [vmem:[%s5 + $0x168] sm:$0xff] %v6428
  %6581 = vst [vmem:[%s5 + $0x170] sm:$0xff] %v6429
  %6582 = vst [vmem:[%s5 + $0x178] sm:$0xff] %v6430
  %6583 = vst [vmem:[%s5 + $0x180] sm:$0xff] %v6431
  %6584 = vst [vmem:[%s5 + $0x188] sm:$0xff] %v6432
  %6585 = vst [vmem:[%s5 + $0x190] sm:$0xff] %v6433
  %6586 = vst [vmem:[%s5 + $0x198] sm:$0xff] %v6434
  %6587 = vst [vmem:[%s5 + $0x1a0] sm:$0xff] %v6435
  %6588 = vst [vmem:[%s5 + $0x1a8] sm:$0xff] %v6436
  %6589 = vst [vmem:[%s5 + $0x1b0] sm:$0xff] %v6437
  %6590 = vst [vmem:[%s5 + $0x1b8] sm:$0xff] %v6438
  %6591 = vst [vmem:[%s5 + $0x1c0] sm:$0xff] %v6439
  %6592 = vst [vmem:[%s5 + $0x1c8] sm:$0xff] %v6440
  %6593 = vst [vmem:[%s5 + $0x1d0] sm:$0xff] %v6441
  %6594 = vst [vmem:[%s5 + $0x1d8] sm:$0xff] %v6442
  %6595 = vst [vmem:[%s5 + $0x1e0] sm:$0xff] %v6443
  %6596 = vst [vmem:[%s5 + $0x1e8] sm:$0xff] %v6444
  %6597 = vst [vmem:[%s5 + $0x1f0] sm:$0xff] %v6445
  %6598 = vst [vmem:[%s5 + $0x1f8] sm:$0xff] %v6446
  %6599 = vst [vmem:[%s5 + $0x200] sm:$0xff] %v6447
  %6600 = vst [vmem:[%s5 + $0x208] sm:$0xff] %v6448
  %6601 = vst [vmem:[%s5 + $0x210] sm:$0xff] %v6449
  %6602 = vst [vmem:[%s5 + $0x218] sm:$0xff] %v6450
  %6603 = vst [vmem:[%s5 + $0x220] sm:$0xff] %v6451
  %6604 = vst [vmem:[%s5 + $0x228] sm:$0xff] %v6452
  %6605 = vst [vmem:[%s5 + $0x230] sm:$0xff] %v6453
  %6606 = vst [vmem:[%s5 + $0x238] sm:$0xff] %v6454
  %6607 = vst [vmem:[%s5 + $0x240] sm:$0xff] %v6455
  %6608 = vst [vmem:[%s5 + $0x248] sm:$0xff] %v6456
  %6609 = vst [vmem:[%s5 + $0x250] sm:$0xff] %v6457
  %6610 = vst [vmem:[%s5 + $0x258] sm:$0xff] %v6458
  %6611 = vst [vmem:[%s5 + $0x260] sm:$0xff] %v6459
  %6612 = vst [vmem:[%s5 + $0x268] sm:$0xff] %v6460
  %6613 = vst [vmem:[%s5 + $0x270] sm:$0xff] %v6461
  %6614 = vst [vmem:[%s5 + $0x278] sm:$0xff] %v6462
  %6615 = vst [vmem:[%s5 + $0x280] sm:$0xff] %v6463
  %6616 = vst [vmem:[%s5 + $0x288] sm:$0xff] %v6464
  %6617 = vst [vmem:[%s5 + $0x290] sm:$0xff] %v6465
  %6618 = vst [vmem:[%s5 + $0x298] sm:$0xff] %v6466
  %6619 = vst [vmem:[%s5 + $0x2a0] sm:$0xff] %v6467
  %6620 = vst [vmem:[%s5 + $0x2a8] sm:$0xff] %v6468
  %6621 = vst [vmem:[%s5 + $0x2b0] sm:$0xff] %v6469
  %6622 = vst [vmem:[%s5 + $0x2b8] sm:$0xff] %v6470
  %6623 = vst [vmem:[%s5 + $0x2c0] sm:$0xff] %v6471
  %6624 = vst [vmem:[%s5 + $0x2c8] sm:$0xff] %v6472
  %6625 = vst [vmem:[%s5 + $0x2d0] sm:$0xff] %v6473
  %6626 = vst [vmem:[%s5 + $0x2d8] sm:$0xff] %v6474
  %6627 = vst [vmem:[%s5 + $0x2e0] sm:$0xff] %v6475
  %6628 = vst [vmem:[%s5 + $0x2e8] sm:$0xff] %v6476
  %6629 = vst [vmem:[%s5 + $0x2f0] sm:$0xff] %v6477
  %6630 = vst [vmem:[%s5 + $0x2f8] sm:$0xff] %v6478
  %6631 = vst [vmem:[%s5 + $0x300] sm:$0xff] %v6479
  %6632 = vst [vmem:[%s5 + $0x308] sm:$0xff] %v6480
  %6633 = vst [vmem:[%s5 + $0x310] sm:$0xff] %v6481
  %6634 = vst [vmem:[%s5 + $0x318] sm:$0xff] %v6482
  %6635 = vst [vmem:[%s5 + $0x320] sm:$0xff] %v6483
  %6636 = vst [vmem:[%s5 + $0x328] sm:$0xff] %v6484
  %6637 = vst [vmem:[%s5 + $0x330] sm:$0xff] %v6485
  %6638 = vst [vmem:[%s5 + $0x338] sm:$0xff] %v6486
  %6639 = vst [vmem:[%s5 + $0x340] sm:$0xff] %v6487
  %6640 = vst [vmem:[%s5 + $0x348] sm:$0xff] %v6488
  %6641 = vst [vmem:[%s5 + $0x350] sm:$0xff] %v6489
  %6642 = vst [vmem:[%s5 + $0x358] sm:$0xff] %v6490
  %6643 = vst [vmem:[%s5 + $0x360] sm:$0xff] %v6491
  %6644 = vst [vmem:[%s5 + $0x368] sm:$0xff] %v6492
  %6645 = vst [vmem:[%s5 + $0x370] sm:$0xff] %v6493
  %6646 = vst [vmem:[%s5 + $0x378] sm:$0xff] %v6494
  %6647 = vst [vmem:[%s5 + $0x380] sm:$0xff] %v6495
  %6648 = vst [vmem:[%s5 + $0x388] sm:$0xff] %v6496
  %6649 = vst [vmem:[%s5 + $0x390] sm:$0xff] %v6497
  %6650 = vst [vmem:[%s5 + $0x398] sm:$0xff] %v6498
  %6651 = vst [vmem:[%s5 + $0x3a0] sm:$0xff] %v6499
  %6652 = vst [vmem:[%s5 + $0x3a8] sm:$0xff] %v6500
  %6653 = vst [vmem:[%s5 + $0x3b0] sm:$0xff] %v6501
  %6654 = vst [vmem:[%s5 + $0x3b8] sm:$0xff] %v6502
  %6655 = vst [vmem:[%s5 + $0x3c0] sm:$0xff] %v6503
  %6656 = vst [vmem:[%s5 + $0x3c8] sm:$0xff] %v6504
  %6657 = vst [vmem:[%s5 + $0x3d0] sm:$0xff] %v6505
  %6658 = vst [vmem:[%s5 + $0x3d8] sm:$0xff] %v6506
  %6659 = vst [vmem:[%s5 + $0x3e0] sm:$0xff] %v6507
  %6660 = vst [vmem:[%s5 + $0x3e8] sm:$0xff] %v6508
  %6661 = vst [vmem:[%s5 + $0x3f0] sm:$0xff] %v6509
  %6662 = vst [vmem:[%s5 + $0x3f8] sm:$0xff] %v6510
  %6663 = vst [vmem:[%s5 + $0x400] sm:$0xff] %v6511
  %6664 = vst [vmem:[%s5 + $0x408] sm:$0xff] %v6512
  %6665 = vst [vmem:[%s5 + $0x410] sm:$0xff] %v6513
  %6666 = vst [vmem:[%s5 + $0x418] sm:$0xff] %v6514
  %6667 = vst [vmem:[%s5 + $0x420] sm:$0xff] %v6515
  %6668 = vst [vmem:[%s5 + $0x428] sm:$0xff] %v6516
  %6669 = vst [vmem:[%s5 + $0x430] sm:$0xff] %v6517
  %6670 = vst [vmem:[%s5 + $0x438] sm:$0xff] %v6518
  %6671 = vst [vmem:[%s5 + $0x440] sm:$0xff] %v6519
  %6672 = vst [vmem:[%s5 + $0x448] sm:$0xff] %v6520
  %6673 = vst [vmem:[%s5 + $0x450] sm:$0xff] %v6521
  %6674 = vst [vmem:[%s5 + $0x458] sm:$0xff] %v6522
  %6675 = vst [vmem:[%s5 + $0x460] sm:$0xff] %v6523
  %6676 = vst [vmem:[%s5 + $0x468] sm:$0xff] %v6524
  %6677 = vst [vmem:[%s5 + $0x470] sm:$0xff] %v6525
  %6678 = vst [vmem:[%s5 + $0x478] sm:$0xff] %v6526
  %6679 = vst [vmem:[%s5 + $0x480] sm:$0xff] %v6527
  %6680 = vst [vmem:[%s5 + $0x488] sm:$0xff] %v6528
  %6681 = vst [vmem:[%s5 + $0x490] sm:$0xff] %v6529
  %6682 = vst [vmem:[%s5 + $0x498] sm:$0xff] %v6530
  %6683 = vst [vmem:[%s5 + $0x4a0] sm:$0xff] %v6531
  %6684 = vst [vmem:[%s5 + $0x4a8] sm:$0xff] %v6532
  %6685 = vst [vmem:[%s5 + $0x4b0] sm:$0xff] %v6533
  %6686 = vst [vmem:[%s5 + $0x4b8] sm:$0xff] %v6534
  // Predicated region
  $region22: #{continuous_decoder.1} parent=0 // pred_check
    _
  $region23: #{continuous_decoder.1} parent=0 // pred_check_branch
    %6688 = sbr.rel (0) target = $region25
  $region24: #{continuous_decoder.1} parent=0 // pred_region
    _
  $region25: #{continuous_decoder.1} parent=0 // pred_fallthru
    _
  // Predicated region
  $region26: #{continuous_decoder.1} parent=0 // pred_check
    _
  $region27: #{continuous_decoder.1} parent=0 // pred_check_branch
    %6690 = sbr.rel (0) target = $region29
  $region28: #{continuous_decoder.1} parent=0 // pred_region
    _
  $region29: #{continuous_decoder.1} parent=0 // pred_fallthru
    _

</llo_original>
